<compile_context>
chip_gen: v7x
topology: tpu7x:2x2x1
jax: 0.10.0
libtpu: 0.0.40
codegen_flags: <defaults>
</compile_context>

<pallas_src>
import jax
import jax.numpy as jnp
from jax.experimental import pallas as pl
from jax.experimental.pallas import tpu as pltpu


# ----------------------------- activations ----------------------------------
def _silu(x):
    return x * jax.nn.sigmoid(x)


def _leaky_relu(x, slope=0.01):
    return jnp.where(x >= 0, x, slope * x)


def _bdot(x, w_ref):
    """MXU matmul: bf16 operands, f32 accumulation."""
    return jnp.dot(x.astype(jnp.bfloat16), w_ref[...],
                   preferred_element_type=jnp.float32)


# ------------------------------- fused kernel --------------------------------
def mp_fused_kernel(
    # edge-tiled inputs                                  shapes per grid step
    src_ref, dst_ref, ef_ref, dsti_ref,                  # [TE,Dn] [TE,Dn] [TE,Dc] [TE,1]
    # resident graph inputs
    nodes_ref, invdeg_ref,                               # [N,Dn]  [N,1]
    # edge_update MLP params (W1 split into src/dst/edge rows; weights bf16)
    w1s, w1d, w1e, b1, w2, b2, w3, b3, w4, b4, w5, b5, w6, b6,
    # node_update MLP params (W1 split into dst/edge rows)
    nw1d, nw1e, nb1, nw2, nb2,
    # outputs
    edge_out_ref,                                        # [TE, Dc]
    node_out_ref,                                        # [N, Dn]  (resident)
    # scratch
    acc_ref,                                             # [N, Dn] f32 accumulator
):
    step = pl.program_id(0)

    @pl.when(step == 0)
    def _init():
        acc_ref[...] = jnp.zeros_like(acc_ref)

    ef = ef_ref[...]  # f32, kept around for the residual add (no slicing needed)

    # ---- edge_update MLP (+ residual): chained bf16 MXU matmuls, f32 acc ----
    h = _silu(_bdot(src_ref[...], w1s) + _bdot(dst_ref[...], w1d)
              + _bdot(ef, w1e) + b1[...])
    h = _silu(_bdot(h, w2) + b2[...])
    h = _silu(_bdot(h, w3) + b3[...])
    h = _leaky_relu(_bdot(h, w4) + b4[...])
    h = _silu(_bdot(h, w5) + b5[...])
    e_upd = _bdot(h, w6) + b6[...] + ef                  # [TE, Dc] f32
    edge_out_ref[...] = e_upd

    # ---- node_update MLP on per-edge messages (concat as split-weight sum) --
    m = _silu(_bdot(dst_ref[...], nw1d) + _bdot(e_upd, nw1e) + nb1[...])
    per_edge = _bdot(m, nw2) + nb2[...]                  # [TE, Dn] f32

    # ---- scatter-add over dst: one-hot built in-registers, MXU contraction --
    te = per_edge.shape[0]
    n_nodes = acc_ref.shape[0]
    col_ids = jax.lax.broadcasted_iota(jnp.int32, (te, n_nodes), 1)
    onehot = (col_ids == dsti_ref[...]).astype(jnp.float32)      # [TE, N]
    acc_ref[...] += jax.lax.dot_general(
        onehot, per_edge, (((0,), (0,)), ((), ())),
        preferred_element_type=jnp.float32)

    @pl.when(step == pl.num_programs(0) - 1)
    def _finalize():
        node_out_ref[...] = acc_ref[...] * invdeg_ref[...] + nodes_ref[...]


# ------------------------------ parameters -----------------------------------
def _linear_params(key, fan_in, fan_out):
    """PyTorch-style uniform(-1/sqrt(fan_in), 1/sqrt(fan_in)) init. W is [in, out]."""
    kw, kb = jax.random.split(key)
    bound = 1.0 / jnp.sqrt(jnp.float32(fan_in))
    w = jax.random.uniform(kw, (fan_in, fan_out), jnp.float32, -bound, bound)
    b = jax.random.uniform(kb, (1, fan_out), jnp.float32, -bound, bound)
    return w, b


def init_params(key, node_dim, edge_radial_dim, edge_angular_dim, hidden_dim):
    dc = edge_radial_dim + edge_angular_dim
    keys = jax.random.split(key, 8)
    # node_update: (Dn + Dc) -> H -> Dn
    node_params = [*_linear_params(keys[0], node_dim + dc, hidden_dim),
                   *_linear_params(keys[1], hidden_dim, node_dim)]
    # edge_update: (Dc + 2*Dn) -> H -> H -> H/2 -> H -> H -> Dc
    h2 = hidden_dim // 2
    edge_params = [*_linear_params(keys[2], dc + 2 * node_dim, hidden_dim),
                   *_linear_params(keys[3], hidden_dim, hidden_dim),
                   *_linear_params(keys[4], hidden_dim, h2),
                   *_linear_params(keys[5], h2, hidden_dim),
                   *_linear_params(keys[6], hidden_dim, hidden_dim),
                   *_linear_params(keys[7], hidden_dim, dc)]
    return node_params, edge_params


def _prep_kernel_params(node_params, edge_params, node_dim):
    """Split the concat-facing first layers and cast weights to bf16 (MXU native)."""
    w1, b1, w2, b2, w3, b3, w4, b4, w5, b5, w6, b6 = edge_params
    nw1, nb1, nw2, nb2 = node_params
    bf = lambda w: w.astype(jnp.bfloat16)
    # edge_inputs = cat(src, dst, edge) -> rows of w1 split the same way
    edge_k = (bf(w1[:node_dim]), bf(w1[node_dim:2 * node_dim]), bf(w1[2 * node_dim:]),
              b1, bf(w2), b2, bf(w3), b3, bf(w4), b4, bf(w5), b5, bf(w6), b6)
    # messages = cat(dst_feat, edge_updated) -> rows of nw1 split the same way
    node_k = (bf(nw1[:node_dim]), bf(nw1[node_dim:]), nb1, bf(nw2), nb2)
    return edge_k, node_k


# ------------------------------- forward --------------------------------------
def message_passing_forward(node_features, edge_radial, edge_angular, edge_index,
                            node_params, edge_params, *, edge_tile=128):
    num_nodes, node_dim = node_features.shape
    num_edges = edge_index.shape[1]
    dc = edge_radial.shape[1] + edge_angular.shape[1]

    edge_features = jnp.concatenate([edge_radial, edge_angular], axis=-1)  # [E, Dc]
    src, dst = edge_index[0], edge_index[1]
    # TODO(synk): at scale, do these gathers in-kernel via scalar prefetch.
    src_features = node_features[src]                                      # [E, Dn]
    dst_features = node_features[dst]                                      # [E, Dn]

    # in-degree normalization depends only on dst: precompute 1/max(deg,1) once.
    deg = jax.ops.segment_sum(jnp.ones((num_edges,), jnp.float32), dst,
                              num_segments=num_nodes)
    inv_deg = (1.0 / jnp.maximum(deg, 1.0))[:, None]                       # [N, 1]

    # Tile the edge axis. Padded edges get dst = num_nodes (out of range) so their
    # one-hot row is all-zero and they contribute nothing to the aggregation.
    te = min(edge_tile, num_edges)
    e_pad = ((num_edges + te - 1) // te) * te
    pad = e_pad - num_edges
    dst_idx = dst.astype(jnp.int32)
    if pad:
        src_features = jnp.pad(src_features, ((0, pad), (0, 0)))
        dst_features = jnp.pad(dst_features, ((0, pad), (0, 0)))
        edge_features_p = jnp.pad(edge_features, ((0, pad), (0, 0)))
        dst_idx = jnp.pad(dst_idx, (0, pad), constant_values=num_nodes)
    else:
        edge_features_p = edge_features
    dst_idx2d = dst_idx[:, None]                                           # [E_pad, 1]

    edge_k, node_k = _prep_kernel_params(node_params, edge_params, node_dim)

    grid = (e_pad // te,)
    etile = lambda d: pl.BlockSpec((te, d), lambda i: (i, 0))      # edge-tiled
    resident = lambda a: pl.BlockSpec(a.shape, lambda i: (0, 0))   # stays in VMEM

    in_specs = [etile(node_dim), etile(node_dim), etile(dc), etile(1),
                resident(node_features), resident(inv_deg)]
    in_specs += [resident(p) for p in edge_k]
    in_specs += [resident(p) for p in node_k]

    out_shape = (jax.ShapeDtypeStruct((e_pad, dc), jnp.float32),
                 jax.ShapeDtypeStruct((num_nodes, node_dim), jnp.float32))
    out_specs = (pl.BlockSpec((te, dc), lambda i: (i, 0)),
                 pl.BlockSpec((num_nodes, node_dim), lambda i: (0, 0)))

    edge_upd_p, node_upd = pl.pallas_call(
        mp_fused_kernel,
        out_shape=out_shape,
        grid_spec=pltpu.PrefetchScalarGridSpec(
            num_scalar_prefetch=0,
            grid=grid,
            in_specs=in_specs,
            out_specs=out_specs,
            scratch_shapes=[pltpu.VMEM((num_nodes, node_dim), jnp.float32)],
        ),
        compiler_params=pltpu.CompilerParams(
            # edge axis carries the node-aggregation accumulator -> must be arbitrary
            dimension_semantics=("arbitrary",),
            vmem_limit_bytes=32 * 1024 * 1024,   # explicit budget, fits v5e/v6e/v7x
        ),
    )(src_features, dst_features, edge_features_p, dst_idx2d,
      node_features, inv_deg, *edge_k, *node_k)

    return node_upd, edge_upd_p[:num_edges]


# ----------------------------- pure-JAX reference -----------------------------
def reference_forward(node_features, edge_radial, edge_angular, edge_index,
                      node_params, edge_params):
    edge_features = jnp.concatenate([edge_radial, edge_angular], axis=-1)
    src, dst = edge_index[0], edge_index[1]
    x = jnp.concatenate([node_features[src], node_features[dst], edge_features], -1)

    w1, b1, w2, b2, w3, b3, w4, b4, w5, b5, w6, b6 = edge_params
    h = _silu(x @ w1 + b1)
    h = _silu(h @ w2 + b2)
    h = _silu(h @ w3 + b3)
    h = _leaky_relu(h @ w4 + b4)
    h = _silu(h @ w5 + b5)
    edge_updated = h @ w6 + b6 + edge_features

    nw1, nb1, nw2, nb2 = node_params
    msg = jnp.concatenate([node_features[dst], edge_updated], -1)
    per_edge = _silu(msg @ nw1 + nb1) @ nw2 + nb2
    num_nodes = node_features.shape[0]
    agg = jax.ops.segment_sum(per_edge, dst, num_segments=num_nodes)
    deg = jax.ops.segment_sum(jnp.ones((dst.shape[0],)), dst, num_segments=num_nodes)
    deg = jnp.maximum(deg, 1.0)[:, None]
    node_updated = agg / deg + node_features
    return node_updated, edge_updated


# --------------------------------- main ---------------------------------------
if __name__ == "__main__":
    node_dim = 8
    edge_radial_dim = 8
    edge_angular_dim = 8
    hidden_dim = 128     # module default; also gives lane-dense MXU operands
    num_nodes = 16
    num_edges = 256      # 2 edge tiles of 128 -> exercises gridded accumulation

    key = jax.random.PRNGKey(0)
    k_nf, k_er, k_ea, k_ei, k_params = jax.random.split(key, 5)

    node_features = jax.random.normal(k_nf, (num_nodes, node_dim), jnp.float32)
    edge_radial = jax.random.normal(k_er, (num_edges, edge_radial_dim), jnp.float32)
    edge_angular = jax.random.normal(k_ea, (num_edges, edge_angular_dim), jnp.float32)
    edge_index = jax.random.randint(k_ei, (2, num_edges), 0, num_nodes, jnp.int32)

    node_params, edge_params = init_params(
        k_params, node_dim, edge_radial_dim, edge_angular_dim, hidden_dim)

    node_out, edge_out = message_passing_forward(
        node_features, edge_radial, edge_angular, edge_index,
        node_params, edge_params)
    jax.block_until_ready((node_out, edge_out))

    node_ref, edge_ref = reference_forward(
        node_features, edge_radial, edge_angular, edge_index,
        node_params, edge_params)

    # Kernel matmuls use bf16 MXU operands (f32 accumulation); the pure-f32
    # reference therefore matches to ~1e-3, so compare with mixed-precision tol.
    assert jnp.allclose(edge_out, edge_ref, atol=2e-2, rtol=2e-2), "edge mismatch"
    assert jnp.allclose(node_out, node_ref, atol=2e-2, rtol=2e-2), "node mismatch"

    print("KERNEL_OK")
</pallas_src>

<mosaic_0001>
module attributes {stable_mosaic.version = 11 : i64} {
  func.func @mp_fused_kernel(%arg0: i32, %arg1: memref<128x8xf32, #tpu.memory_space<vmem>>, %arg2: memref<128x8xf32, #tpu.memory_space<vmem>>, %arg3: memref<128x16xf32, #tpu.memory_space<vmem>>, %arg4: memref<128x1xi32, #tpu.memory_space<vmem>>, %arg5: memref<16x8xf32, #tpu.memory_space<vmem>>, %arg6: memref<16x1xf32, #tpu.memory_space<vmem>>, %arg7: memref<8x128xbf16, #tpu.memory_space<vmem>>, %arg8: memref<8x128xbf16, #tpu.memory_space<vmem>>, %arg9: memref<16x128xbf16, #tpu.memory_space<vmem>>, %arg10: memref<1x128xf32, #tpu.memory_space<vmem>>, %arg11: memref<128x128xbf16, #tpu.memory_space<vmem>>, %arg12: memref<1x128xf32, #tpu.memory_space<vmem>>, %arg13: memref<128x64xbf16, #tpu.memory_space<vmem>>, %arg14: memref<1x64xf32, #tpu.memory_space<vmem>>, %arg15: memref<64x128xbf16, #tpu.memory_space<vmem>>, %arg16: memref<1x128xf32, #tpu.memory_space<vmem>>, %arg17: memref<128x128xbf16, #tpu.memory_space<vmem>>, %arg18: memref<1x128xf32, #tpu.memory_space<vmem>>, %arg19: memref<128x16xbf16, #tpu.memory_space<vmem>>, %arg20: memref<1x16xf32, #tpu.memory_space<vmem>>, %arg21: memref<8x128xbf16, #tpu.memory_space<vmem>>, %arg22: memref<16x128xbf16, #tpu.memory_space<vmem>>, %arg23: memref<1x128xf32, #tpu.memory_space<vmem>>, %arg24: memref<128x8xbf16, #tpu.memory_space<vmem>>, %arg25: memref<1x8xf32, #tpu.memory_space<vmem>>, %arg26: memref<128x16xf32, #tpu.memory_space<vmem>>, %arg27: memref<16x8xf32, #tpu.memory_space<vmem>>, %arg28: memref<16x8xf32, #tpu.memory_space<vmem>>) attributes {dimension_semantics = [#tpu.dimension_semantics<arbitrary>], iteration_bounds = array<i64: 2>, scalar_prefetch = 0 : i64, scratch_operands = 1 : i64, tpu.core_type = #tpu.core_type<tc>, window_params = [{transform_indices = @transform_0, window_bounds = array<i64: 128, 8>}, {transform_indices = @transform_1, window_bounds = array<i64: 128, 8>}, {transform_indices = @transform_2, window_bounds = array<i64: 128, 16>}, {transform_indices = @transform_3, window_bounds = array<i64: 128, 1>}, {pipeline_mode = #tpu.pipeline_mode<synchronous>, transform_indices = @transform_4, window_bounds = array<i64: 16, 8>}, {pipeline_mode = #tpu.pipeline_mode<synchronous>, transform_indices = @transform_5, window_bounds = array<i64: 16, 1>}, {pipeline_mode = #tpu.pipeline_mode<synchronous>, transform_indices = @transform_6, window_bounds = array<i64: 8, 128>}, {pipeline_mode = #tpu.pipeline_mode<synchronous>, transform_indices = @transform_7, window_bounds = array<i64: 8, 128>}, {pipeline_mode = #tpu.pipeline_mode<synchronous>, transform_indices = @transform_8, window_bounds = array<i64: 16, 128>}, {pipeline_mode = #tpu.pipeline_mode<synchronous>, transform_indices = @transform_9, window_bounds = array<i64: 1, 128>}, {pipeline_mode = #tpu.pipeline_mode<synchronous>, transform_indices = @transform_10, window_bounds = array<i64: 128, 128>}, {pipeline_mode = #tpu.pipeline_mode<synchronous>, transform_indices = @transform_11, window_bounds = array<i64: 1, 128>}, {pipeline_mode = #tpu.pipeline_mode<synchronous>, transform_indices = @transform_12, window_bounds = array<i64: 128, 64>}, {pipeline_mode = #tpu.pipeline_mode<synchronous>, transform_indices = @transform_13, window_bounds = array<i64: 1, 64>}, {pipeline_mode = #tpu.pipeline_mode<synchronous>, transform_indices = @transform_14, window_bounds = array<i64: 64, 128>}, {pipeline_mode = #tpu.pipeline_mode<synchronous>, transform_indices = @transform_15, window_bounds = array<i64: 1, 128>}, {pipeline_mode = #tpu.pipeline_mode<synchronous>, transform_indices = @transform_16, window_bounds = array<i64: 128, 128>}, {pipeline_mode = #tpu.pipeline_mode<synchronous>, transform_indices = @transform_17, window_bounds = array<i64: 1, 128>}, {pipeline_mode = #tpu.pipeline_mode<synchronous>, transform_indices = @transform_18, window_bounds = array<i64: 128, 16>}, {pipeline_mode = #tpu.pipeline_mode<synchronous>, transform_indices = @transform_19, window_bounds = array<i64: 1, 16>}, {pipeline_mode = #tpu.pipeline_mode<synchronous>, transform_indices = @transform_20, window_bounds = array<i64: 8, 128>}, {pipeline_mode = #tpu.pipeline_mode<synchronous>, transform_indices = @transform_21, window_bounds = array<i64: 16, 128>}, {pipeline_mode = #tpu.pipeline_mode<synchronous>, transform_indices = @transform_22, window_bounds = array<i64: 1, 128>}, {pipeline_mode = #tpu.pipeline_mode<synchronous>, transform_indices = @transform_23, window_bounds = array<i64: 128, 8>}, {pipeline_mode = #tpu.pipeline_mode<synchronous>, transform_indices = @transform_24, window_bounds = array<i64: 1, 8>}, {transform_indices = @transform_25, window_bounds = array<i64: 128, 16>}, {pipeline_mode = #tpu.pipeline_mode<synchronous>, transform_indices = @transform_26, window_bounds = array<i64: 16, 8>}]} {
    %c0_i32 = arith.constant 0 : i32
    %0 = arith.cmpi eq, %arg0, %c0_i32 : i32
    %1 = arith.extui %0 : i1 to i32
    %c0_i32_0 = arith.constant 0 : i32
    %2 = arith.cmpi ne, %1, %c0_i32_0 : i32
    scf.if %2 {
      %cst_73 = arith.constant 0.000000e+00 : f32
      %117 = vector.broadcast %cst_73 : f32 to vector<16x8xf32>
      %c0_74 = arith.constant 0 : index
      %c0_75 = arith.constant 0 : index
      %118 = vector.load %arg28[%c0_74, %c0_75] : memref<16x8xf32, #tpu.memory_space<vmem>>, vector<16x8xf32>
      tpu.vector_store %arg28[%c0_74, %c0_75], %117 {strides = array<i32>} : memref<16x8xf32, #tpu.memory_space<vmem>>, vector<16x8xf32>,
    } else {
    }
    %c0 = arith.constant 0 : index
    %c0_1 = arith.constant 0 : index
    %3 = vector.load %arg3[%c0, %c0_1] : memref<128x16xf32, #tpu.memory_space<vmem>>, vector<128x16xf32>
    %c0_2 = arith.constant 0 : index
    %c0_3 = arith.constant 0 : index
    %4 = vector.load %arg1[%c0_2, %c0_3] : memref<128x8xf32, #tpu.memory_space<vmem>>, vector<128x8xf32>
    %5 = arith.truncf %4 : vector<128x8xf32> to vector<128x8xbf16>
    %c0_4 = arith.constant 0 : index
    %c0_5 = arith.constant 0 : index
    %6 = vector.load %arg7[%c0_4, %c0_5] : memref<8x128xbf16, #tpu.memory_space<vmem>>, vector<8x128xbf16>
    %cst = arith.constant dense<0.000000e+00> : vector<128x128xf32>
    %7 = tpu.matmul %5, %6, %cst {dimension_numbers = #tpu.dot_dimension_numbers<[1], [0], [0], [1], [0, 0, 1, 1], [], []>} : vector<128x8xbf16>, vector<8x128xbf16>, vector<128x128xf32> -> vector<128x128xf32>
    %c0_6 = arith.constant 0 : index
    %c0_7 = arith.constant 0 : index
    %8 = vector.load %arg2[%c0_6, %c0_7] : memref<128x8xf32, #tpu.memory_space<vmem>>, vector<128x8xf32>
    %9 = arith.truncf %8 : vector<128x8xf32> to vector<128x8xbf16>
    %c0_8 = arith.constant 0 : index
    %c0_9 = arith.constant 0 : index
    %10 = vector.load %arg8[%c0_8, %c0_9] : memref<8x128xbf16, #tpu.memory_space<vmem>>, vector<8x128xbf16>
    %cst_10 = arith.constant dense<0.000000e+00> : vector<128x128xf32>
    %11 = tpu.matmul %9, %10, %cst_10 {dimension_numbers = #tpu.dot_dimension_numbers<[1], [0], [0], [1], [0, 0, 1, 1], [], []>} : vector<128x8xbf16>, vector<8x128xbf16>, vector<128x128xf32> -> vector<128x128xf32>
    %12 = arith.addf %7, %11 : vector<128x128xf32>
    %13 = arith.truncf %3 : vector<128x16xf32> to vector<128x16xbf16>
    %c0_11 = arith.constant 0 : index
    %c0_12 = arith.constant 0 : index
    %14 = vector.load %arg9[%c0_11, %c0_12] : memref<16x128xbf16, #tpu.memory_space<vmem>>, vector<16x128xbf16>
    %cst_13 = arith.constant dense<0.000000e+00> : vector<128x128xf32>
    %15 = tpu.matmul %13, %14, %cst_13 {dimension_numbers = #tpu.dot_dimension_numbers<[1], [0], [0], [1], [0, 0, 1, 1], [], []>} : vector<128x16xbf16>, vector<16x128xbf16>, vector<128x128xf32> -> vector<128x128xf32>
    %16 = arith.addf %12, %15 : vector<128x128xf32>
    %c0_14 = arith.constant 0 : index
    %c0_15 = arith.constant 0 : index
    %17 = vector.load %arg10[%c0_14, %c0_15] : memref<1x128xf32, #tpu.memory_space<vmem>>, vector<1x128xf32>
    %18 = vector.broadcast %17 : vector<1x128xf32> to vector<128x128xf32>
    %19 = arith.addf %16, %18 : vector<128x128xf32>
    %20 = arith.negf %19 : vector<128x128xf32>
    %21 = math.exp %20 : vector<128x128xf32>
    %cst_16 = arith.constant 1.000000e+00 : f32
    %22 = vector.broadcast %cst_16 : f32 to vector<128x128xf32>
    %23 = arith.addf %22, %21 : vector<128x128xf32>
    %24 = arith.divf %22, %23 : vector<128x128xf32>
    %25 = arith.mulf %19, %24 : vector<128x128xf32>
    %26 = arith.truncf %25 : vector<128x128xf32> to vector<128x128xbf16>
    %c0_17 = arith.constant 0 : index
    %c0_18 = arith.constant 0 : index
    %27 = vector.load %arg11[%c0_17, %c0_18] : memref<128x128xbf16, #tpu.memory_space<vmem>>, vector<128x128xbf16>
    %cst_19 = arith.constant dense<0.000000e+00> : vector<128x128xf32>
    %28 = tpu.matmul %26, %27, %cst_19 {dimension_numbers = #tpu.dot_dimension_numbers<[1], [0], [0], [1], [0, 0, 1, 1], [], []>} : vector<128x128xbf16>, vector<128x128xbf16>, vector<128x128xf32> -> vector<128x128xf32>
    %c0_20 = arith.constant 0 : index
    %c0_21 = arith.constant 0 : index
    %29 = vector.load %arg12[%c0_20, %c0_21] : memref<1x128xf32, #tpu.memory_space<vmem>>, vector<1x128xf32>
    %30 = vector.broadcast %29 : vector<1x128xf32> to vector<128x128xf32>
    %31 = arith.addf %28, %30 : vector<128x128xf32>
    %32 = arith.negf %31 : vector<128x128xf32>
    %33 = math.exp %32 : vector<128x128xf32>
    %cst_22 = arith.constant 1.000000e+00 : f32
    %34 = vector.broadcast %cst_22 : f32 to vector<128x128xf32>
    %35 = arith.addf %34, %33 : vector<128x128xf32>
    %36 = arith.divf %34, %35 : vector<128x128xf32>
    %37 = arith.mulf %31, %36 : vector<128x128xf32>
    %38 = arith.truncf %37 : vector<128x128xf32> to vector<128x128xbf16>
    %c0_23 = arith.constant 0 : index
    %c0_24 = arith.constant 0 : index
    %39 = vector.load %arg13[%c0_23, %c0_24] : memref<128x64xbf16, #tpu.memory_space<vmem>>, vector<128x64xbf16>
    %cst_25 = arith.constant dense<0.000000e+00> : vector<128x64xf32>
    %40 = tpu.matmul %38, %39, %cst_25 {dimension_numbers = #tpu.dot_dimension_numbers<[1], [0], [0], [1], [0, 0, 1, 1], [], []>} : vector<128x128xbf16>, vector<128x64xbf16>, vector<128x64xf32> -> vector<128x64xf32>
    %c0_26 = arith.constant 0 : index
    %c0_27 = arith.constant 0 : index
    %41 = vector.load %arg14[%c0_26, %c0_27] : memref<1x64xf32, #tpu.memory_space<vmem>>, vector<1x64xf32>
    %42 = vector.broadcast %41 : vector<1x64xf32> to vector<128x64xf32>
    %43 = arith.addf %40, %42 : vector<128x64xf32>
    %44 = arith.negf %43 : vector<128x64xf32>
    %45 = math.exp %44 : vector<128x64xf32>
    %cst_28 = arith.constant 1.000000e+00 : f32
    %46 = vector.broadcast %cst_28 : f32 to vector<128x64xf32>
    %47 = arith.addf %46, %45 : vector<128x64xf32>
    %48 = arith.divf %46, %47 : vector<128x64xf32>
    %49 = arith.mulf %43, %48 : vector<128x64xf32>
    %50 = arith.truncf %49 : vector<128x64xf32> to vector<128x64xbf16>
    %c0_29 = arith.constant 0 : index
    %c0_30 = arith.constant 0 : index
    %51 = vector.load %arg15[%c0_29, %c0_30] : memref<64x128xbf16, #tpu.memory_space<vmem>>, vector<64x128xbf16>
    %cst_31 = arith.constant dense<0.000000e+00> : vector<128x128xf32>
    %52 = tpu.matmul %50, %51, %cst_31 {dimension_numbers = #tpu.dot_dimension_numbers<[1], [0], [0], [1], [0, 0, 1, 1], [], []>} : vector<128x64xbf16>, vector<64x128xbf16>, vector<128x128xf32> -> vector<128x128xf32>
    %c0_32 = arith.constant 0 : index
    %c0_33 = arith.constant 0 : index
    %53 = vector.load %arg16[%c0_32, %c0_33] : memref<1x128xf32, #tpu.memory_space<vmem>>, vector<1x128xf32>
    %54 = vector.broadcast %53 : vector<1x128xf32> to vector<128x128xf32>
    %55 = arith.addf %52, %54 : vector<128x128xf32>
    %cst_34 = arith.constant 0.000000e+00 : f32
    %56 = vector.broadcast %cst_34 : f32 to vector<128x128xf32>
    %57 = arith.cmpf oge, %55, %56 : vector<128x128xf32>
    %cst_35 = arith.constant 0.00999999977 : f32
    %58 = vector.broadcast %cst_35 : f32 to vector<128x128xf32>
    %59 = arith.mulf %58, %55 : vector<128x128xf32>
    %60 = arith.select %57, %55, %59 : vector<128x128xi1>, vector<128x128xf32>
    %61 = arith.truncf %60 : vector<128x128xf32> to vector<128x128xbf16>
    %c0_36 = arith.constant 0 : index
    %c0_37 = arith.constant 0 : index
    %62 = vector.load %arg17[%c0_36, %c0_37] : memref<128x128xbf16, #tpu.memory_space<vmem>>, vector<128x128xbf16>
    %cst_38 = arith.constant dense<0.000000e+00> : vector<128x128xf32>
    %63 = tpu.matmul %61, %62, %cst_38 {dimension_numbers = #tpu.dot_dimension_numbers<[1], [0], [0], [1], [0, 0, 1, 1], [], []>} : vector<128x128xbf16>, vector<128x128xbf16>, vector<128x128xf32> -> vector<128x128xf32>
    %c0_39 = arith.constant 0 : index
    %c0_40 = arith.constant 0 : index
    %64 = vector.load %arg18[%c0_39, %c0_40] : memref<1x128xf32, #tpu.memory_space<vmem>>, vector<1x128xf32>
    %65 = vector.broadcast %64 : vector<1x128xf32> to vector<128x128xf32>
    %66 = arith.addf %63, %65 : vector<128x128xf32>
    %67 = arith.negf %66 : vector<128x128xf32>
    %68 = math.exp %67 : vector<128x128xf32>
    %cst_41 = arith.constant 1.000000e+00 : f32
    %69 = vector.broadcast %cst_41 : f32 to vector<128x128xf32>
    %70 = arith.addf %69, %68 : vector<128x128xf32>
    %71 = arith.divf %69, %70 : vector<128x128xf32>
    %72 = arith.mulf %66, %71 : vector<128x128xf32>
    %73 = arith.truncf %72 : vector<128x128xf32> to vector<128x128xbf16>
    %c0_42 = arith.constant 0 : index
    %c0_43 = arith.constant 0 : index
    %74 = vector.load %arg19[%c0_42, %c0_43] : memref<128x16xbf16, #tpu.memory_space<vmem>>, vector<128x16xbf16>
    %cst_44 = arith.constant dense<0.000000e+00> : vector<128x16xf32>
    %75 = tpu.matmul %73, %74, %cst_44 {dimension_numbers = #tpu.dot_dimension_numbers<[1], [0], [0], [1], [0, 0, 1, 1], [], []>} : vector<128x128xbf16>, vector<128x16xbf16>, vector<128x16xf32> -> vector<128x16xf32>
    %c0_45 = arith.constant 0 : index
    %c0_46 = arith.constant 0 : index
    %76 = vector.load %arg20[%c0_45, %c0_46] : memref<1x16xf32, #tpu.memory_space<vmem>>, vector<1x16xf32>
    %77 = vector.broadcast %76 : vector<1x16xf32> to vector<128x16xf32>
    %78 = arith.addf %75, %77 : vector<128x16xf32>
    %79 = arith.addf %78, %3 : vector<128x16xf32>
    %c0_47 = arith.constant 0 : index
    %c0_48 = arith.constant 0 : index
    %80 = vector.load %arg26[%c0_47, %c0_48] : memref<128x16xf32, #tpu.memory_space<vmem>>, vector<128x16xf32>
    tpu.vector_store %arg26[%c0_47, %c0_48], %79 {strides = array<i32>} : memref<128x16xf32, #tpu.memory_space<vmem>>, vector<128x16xf32>,
    %c0_49 = arith.constant 0 : index
    %c0_50 = arith.constant 0 : index
    %81 = vector.load %arg2[%c0_49, %c0_50] : memref<128x8xf32, #tpu.memory_space<vmem>>, vector<128x8xf32>
    %82 = arith.truncf %81 : vector<128x8xf32> to vector<128x8xbf16>
    %c0_51 = arith.constant 0 : index
    %c0_52 = arith.constant 0 : index
    %83 = vector.load %arg21[%c0_51, %c0_52] : memref<8x128xbf16, #tpu.memory_space<vmem>>, vector<8x128xbf16>
    %cst_53 = arith.constant dense<0.000000e+00> : vector<128x128xf32>
    %84 = tpu.matmul %82, %83, %cst_53 {dimension_numbers = #tpu.dot_dimension_numbers<[1], [0], [0], [1], [0, 0, 1, 1], [], []>} : vector<128x8xbf16>, vector<8x128xbf16>, vector<128x128xf32> -> vector<128x128xf32>
    %85 = arith.truncf %79 : vector<128x16xf32> to vector<128x16xbf16>
    %c0_54 = arith.constant 0 : index
    %c0_55 = arith.constant 0 : index
    %86 = vector.load %arg22[%c0_54, %c0_55] : memref<16x128xbf16, #tpu.memory_space<vmem>>, vector<16x128xbf16>
    %cst_56 = arith.constant dense<0.000000e+00> : vector<128x128xf32>
    %87 = tpu.matmul %85, %86, %cst_56 {dimension_numbers = #tpu.dot_dimension_numbers<[1], [0], [0], [1], [0, 0, 1, 1], [], []>} : vector<128x16xbf16>, vector<16x128xbf16>, vector<128x128xf32> -> vector<128x128xf32>
    %88 = arith.addf %84, %87 : vector<128x128xf32>
    %c0_57 = arith.constant 0 : index
    %c0_58 = arith.constant 0 : index
    %89 = vector.load %arg23[%c0_57, %c0_58] : memref<1x128xf32, #tpu.memory_space<vmem>>, vector<1x128xf32>
    %90 = vector.broadcast %89 : vector<1x128xf32> to vector<128x128xf32>
    %91 = arith.addf %88, %90 : vector<128x128xf32>
    %92 = arith.negf %91 : vector<128x128xf32>
    %93 = math.exp %92 : vector<128x128xf32>
    %cst_59 = arith.constant 1.000000e+00 : f32
    %94 = vector.broadcast %cst_59 : f32 to vector<128x128xf32>
    %95 = arith.addf %94, %93 : vector<128x128xf32>
    %96 = arith.divf %94, %95 : vector<128x128xf32>
    %97 = arith.mulf %91, %96 : vector<128x128xf32>
    %98 = arith.truncf %97 : vector<128x128xf32> to vector<128x128xbf16>
    %c0_60 = arith.constant 0 : index
    %c0_61 = arith.constant 0 : index
    %99 = vector.load %arg24[%c0_60, %c0_61] : memref<128x8xbf16, #tpu.memory_space<vmem>>, vector<128x8xbf16>
    %cst_62 = arith.constant dense<0.000000e+00> : vector<128x8xf32>
    %100 = tpu.matmul %98, %99, %cst_62 {dimension_numbers = #tpu.dot_dimension_numbers<[1], [0], [0], [1], [0, 0, 1, 1], [], []>} : vector<128x128xbf16>, vector<128x8xbf16>, vector<128x8xf32> -> vector<128x8xf32>
    %c0_63 = arith.constant 0 : index
    %c0_64 = arith.constant 0 : index
    %101 = vector.load %arg25[%c0_63, %c0_64] : memref<1x8xf32, #tpu.memory_space<vmem>>, vector<1x8xf32>
    %102 = vector.broadcast %101 : vector<1x8xf32> to vector<128x8xf32>
    %103 = arith.addf %100, %102 : vector<128x8xf32>
    %104 = tpu.iota {dimensions = array<i32: 1>} : vector<128x16xi32>
    %c0_65 = arith.constant 0 : index
    %c0_66 = arith.constant 0 : index
    %105 = vector.load %arg4[%c0_65, %c0_66] : memref<128x1xi32, #tpu.memory_space<vmem>>, vector<128x1xi32>
    %106 = vector.broadcast %105 : vector<128x1xi32> to vector<128x16xi32>
    %107 = arith.cmpi eq, %104, %106 : vector<128x16xi32>
    %108 = arith.extui %107 : vector<128x16xi1> to vector<128x16xi32>
    %109 = arith.sitofp %108 : vector<128x16xi32> to vector<128x16xf32>
    %c0_67 = arith.constant 0 : index
    %c0_68 = arith.constant 0 : index
    %110 = vector.load %arg28[%c0_67, %c0_68] : memref<16x8xf32, #tpu.memory_space<vmem>>, vector<16x8xf32>
    %cst_69 = arith.constant dense<0.000000e+00> : vector<16x8xf32>
    %111 = tpu.matmul %109, %103, %cst_69 {dimension_numbers = #tpu.dot_dimension_numbers<[0], [0], [1], [1], [0, 1, 1, 1], [], []>} : vector<128x16xf32>, vector<128x8xf32>, vector<16x8xf32> -> vector<16x8xf32>
    %112 = arith.addf %110, %111 : vector<16x8xf32>
    %c0_70 = arith.constant 0 : index
    %c0_71 = arith.constant 0 : index
    %113 = vector.load %arg28[%c0_70, %c0_71] : memref<16x8xf32, #tpu.memory_space<vmem>>, vector<16x8xf32>
    tpu.vector_store %arg28[%c0_70, %c0_71], %112 {strides = array<i32>} : memref<16x8xf32, #tpu.memory_space<vmem>>, vector<16x8xf32>,
    %c1_i32 = arith.constant 1 : i32
    %114 = arith.cmpi eq, %arg0, %c1_i32 : i32
    %115 = arith.extui %114 : i1 to i32
    %c0_i32_72 = arith.constant 0 : i32
    %116 = arith.cmpi ne, %115, %c0_i32_72 : i32
    scf.if %116 {
      %c0_73 = arith.constant 0 : index
      %c0_74 = arith.constant 0 : index
      %117 = vector.load %arg28[%c0_73, %c0_74] : memref<16x8xf32, #tpu.memory_space<vmem>>, vector<16x8xf32>
      %c0_75 = arith.constant 0 : index
      %c0_76 = arith.constant 0 : index
      %118 = vector.load %arg6[%c0_75, %c0_76] : memref<16x1xf32, #tpu.memory_space<vmem>>, vector<16x1xf32>
      %119 = vector.broadcast %118 : vector<16x1xf32> to vector<16x8xf32>
      %120 = arith.mulf %117, %119 : vector<16x8xf32>
      %c0_77 = arith.constant 0 : index
      %c0_78 = arith.constant 0 : index
      %121 = vector.load %arg5[%c0_77, %c0_78] : memref<16x8xf32, #tpu.memory_space<vmem>>, vector<16x8xf32>
      %122 = arith.addf %120, %121 : vector<16x8xf32>
      %c0_79 = arith.constant 0 : index
      %c0_80 = arith.constant 0 : index
      %123 = vector.load %arg27[%c0_79, %c0_80] : memref<16x8xf32, #tpu.memory_space<vmem>>, vector<16x8xf32>
      tpu.vector_store %arg27[%c0_79, %c0_80], %122 {strides = array<i32>} : memref<16x8xf32, #tpu.memory_space<vmem>>, vector<16x8xf32>,
    } else {
    }
    return
  }
  func.func @transform_0(%arg0: i32) -> (i32, i32) {
    %c0_i32 = arith.constant 0 : i32
    %c0_i32_0 = arith.constant 0 : i32
    return %arg0, %c0_i32 : i32, i32
  }
  func.func @transform_1(%arg0: i32) -> (i32, i32) {
    %c0_i32 = arith.constant 0 : i32
    %c0_i32_0 = arith.constant 0 : i32
    return %arg0, %c0_i32 : i32, i32
  }
  func.func @transform_2(%arg0: i32) -> (i32, i32) {
    %c0_i32 = arith.constant 0 : i32
    %c0_i32_0 = arith.constant 0 : i32
    return %arg0, %c0_i32 : i32, i32
  }
  func.func @transform_3(%arg0: i32) -> (i32, i32) {
    %c0_i32 = arith.constant 0 : i32
    %c0_i32_0 = arith.constant 0 : i32
    return %arg0, %c0_i32 : i32, i32
  }
  func.func @transform_4(%arg0: i32) -> (i32, i32) {
    %c0_i32 = arith.constant 0 : i32
    %c0_i32_0 = arith.constant 0 : i32
    %c0_i32_1 = arith.constant 0 : i32
    return %c0_i32, %c0_i32_0 : i32, i32
  }
  func.func @transform_5(%arg0: i32) -> (i32, i32) {
    %c0_i32 = arith.constant 0 : i32
    %c0_i32_0 = arith.constant 0 : i32
    %c0_i32_1 = arith.constant 0 : i32
    return %c0_i32, %c0_i32_0 : i32, i32
  }
  func.func @transform_6(%arg0: i32) -> (i32, i32) {
    %c0_i32 = arith.constant 0 : i32
    %c0_i32_0 = arith.constant 0 : i32
    %c0_i32_1 = arith.constant 0 : i32
    return %c0_i32, %c0_i32_0 : i32, i32
  }
  func.func @transform_7(%arg0: i32) -> (i32, i32) {
    %c0_i32 = arith.constant 0 : i32
    %c0_i32_0 = arith.constant 0 : i32
    %c0_i32_1 = arith.constant 0 : i32
    return %c0_i32, %c0_i32_0 : i32, i32
  }
  func.func @transform_8(%arg0: i32) -> (i32, i32) {
    %c0_i32 = arith.constant 0 : i32
    %c0_i32_0 = arith.constant 0 : i32
    %c0_i32_1 = arith.constant 0 : i32
    return %c0_i32, %c0_i32_0 : i32, i32
  }
  func.func @transform_9(%arg0: i32) -> (i32, i32) {
    %c0_i32 = arith.constant 0 : i32
    %c0_i32_0 = arith.constant 0 : i32
    %c0_i32_1 = arith.constant 0 : i32
    return %c0_i32, %c0_i32_0 : i32, i32
  }
  func.func @transform_10(%arg0: i32) -> (i32, i32) {
    %c0_i32 = arith.constant 0 : i32
    %c0_i32_0 = arith.constant 0 : i32
    %c0_i32_1 = arith.constant 0 : i32
    return %c0_i32, %c0_i32_0 : i32, i32
  }
  func.func @transform_11(%arg0: i32) -> (i32, i32) {
    %c0_i32 = arith.constant 0 : i32
    %c0_i32_0 = arith.constant 0 : i32
    %c0_i32_1 = arith.constant 0 : i32
    return %c0_i32, %c0_i32_0 : i32, i32
  }
  func.func @transform_12(%arg0: i32) -> (i32, i32) {
    %c0_i32 = arith.constant 0 : i32
    %c0_i32_0 = arith.constant 0 : i32
    %c0_i32_1 = arith.constant 0 : i32
    return %c0_i32, %c0_i32_0 : i32, i32
  }
  func.func @transform_13(%arg0: i32) -> (i32, i32) {
    %c0_i32 = arith.constant 0 : i32
    %c0_i32_0 = arith.constant 0 : i32
    %c0_i32_1 = arith.constant 0 : i32
    return %c0_i32, %c0_i32_0 : i32, i32
  }
  func.func @transform_14(%arg0: i32) -> (i32, i32) {
    %c0_i32 = arith.constant 0 : i32
    %c0_i32_0 = arith.constant 0 : i32
    %c0_i32_1 = arith.constant 0 : i32
    return %c0_i32, %c0_i32_0 : i32, i32
  }
  func.func @transform_15(%arg0: i32) -> (i32, i32) {
    %c0_i32 = arith.constant 0 : i32
    %c0_i32_0 = arith.constant 0 : i32
    %c0_i32_1 = arith.constant 0 : i32
    return %c0_i32, %c0_i32_0 : i32, i32
  }
  func.func @transform_16(%arg0: i32) -> (i32, i32) {
    %c0_i32 = arith.constant 0 : i32
    %c0_i32_0 = arith.constant 0 : i32
    %c0_i32_1 = arith.constant 0 : i32
    return %c0_i32, %c0_i32_0 : i32, i32
  }
  func.func @transform_17(%arg0: i32) -> (i32, i32) {
    %c0_i32 = arith.constant 0 : i32
    %c0_i32_0 = arith.constant 0 : i32
    %c0_i32_1 = arith.constant 0 : i32
    return %c0_i32, %c0_i32_0 : i32, i32
  }
  func.func @transform_18(%arg0: i32) -> (i32, i32) {
    %c0_i32 = arith.constant 0 : i32
    %c0_i32_0 = arith.constant 0 : i32
    %c0_i32_1 = arith.constant 0 : i32
    return %c0_i32, %c0_i32_0 : i32, i32
  }
  func.func @transform_19(%arg0: i32) -> (i32, i32) {
    %c0_i32 = arith.constant 0 : i32
    %c0_i32_0 = arith.constant 0 : i32
    %c0_i32_1 = arith.constant 0 : i32
    return %c0_i32, %c0_i32_0 : i32, i32
  }
  func.func @transform_20(%arg0: i32) -> (i32, i32) {
    %c0_i32 = arith.constant 0 : i32
    %c0_i32_0 = arith.constant 0 : i32
    %c0_i32_1 = arith.constant 0 : i32
    return %c0_i32, %c0_i32_0 : i32, i32
  }
  func.func @transform_21(%arg0: i32) -> (i32, i32) {
    %c0_i32 = arith.constant 0 : i32
    %c0_i32_0 = arith.constant 0 : i32
    %c0_i32_1 = arith.constant 0 : i32
    return %c0_i32, %c0_i32_0 : i32, i32
  }
  func.func @transform_22(%arg0: i32) -> (i32, i32) {
    %c0_i32 = arith.constant 0 : i32
    %c0_i32_0 = arith.constant 0 : i32
    %c0_i32_1 = arith.constant 0 : i32
    return %c0_i32, %c0_i32_0 : i32, i32
  }
  func.func @transform_23(%arg0: i32) -> (i32, i32) {
    %c0_i32 = arith.constant 0 : i32
    %c0_i32_0 = arith.constant 0 : i32
    %c0_i32_1 = arith.constant 0 : i32
    return %c0_i32, %c0_i32_0 : i32, i32
  }
  func.func @transform_24(%arg0: i32) -> (i32, i32) {
    %c0_i32 = arith.constant 0 : i32
    %c0_i32_0 = arith.constant 0 : i32
    %c0_i32_1 = arith.constant 0 : i32
    return %c0_i32, %c0_i32_0 : i32, i32
  }
  func.func @transform_25(%arg0: i32) -> (i32, i32) {
    %c0_i32 = arith.constant 0 : i32
    %c0_i32_0 = arith.constant 0 : i32
    return %arg0, %c0_i32 : i32, i32
  }
  func.func @transform_26(%arg0: i32) -> (i32, i32) {
    %c0_i32 = arith.constant 0 : i32
    %c0_i32_0 = arith.constant 0 : i32
    %c0_i32_1 = arith.constant 0 : i32
    return %c0_i32, %c0_i32_0 : i32, i32
  }
}

</mosaic_0001>

<llo_original>
// kernel: tpu_custom_call.1
$region0: #{tpu_custom_call.1}
  #allocation0 [shape = 'u32[]', space=smem, size = 0x4, offset = 0x4, fixed_abs, tag = 'smem constant byte address 0x4 - core index']
  #allocation1 [shape = 'u32[144,128]{1,0:T(1,128)}', space=vmem, size = 0x12000, scoped, tag = 'internal scratch']
  #allocation2 [shape = 'f32[16,8]{1,0:T(8,128)}', space=vmem, size = 0x2000, scoped, tag = 'scratch operand']
  %s0 = inlined_call_operand.vmem [shape: f32[256,8], index: 0, kind: input, shape index: {}]
  %s1 = inlined_call_operand.vmem [shape: f32[256,8], index: 1, kind: input, shape index: {}]
  %s2 = inlined_call_operand.vmem [shape: f32[256,16], index: 2, kind: input, shape index: {}]
  %s3 = inlined_call_operand.vmem [shape: s32[256,1], index: 3, kind: input, shape index: {}]
  %s4 = inlined_call_operand.vmem [shape: f32[16,8], index: 4, kind: input, shape index: {}]
  %s5 = inlined_call_operand.vmem [shape: f32[16,1], index: 5, kind: input, shape index: {}]
  %s6 = inlined_call_operand.vmem [shape: bf16[8,128], index: 6, kind: input, shape index: {}]
  %s7 = inlined_call_operand.vmem [shape: bf16[8,128], index: 7, kind: input, shape index: {}]
  %s8 = inlined_call_operand.vmem [shape: bf16[16,128], index: 8, kind: input, shape index: {}]
  %s9 = inlined_call_operand.vmem [shape: f32[1,128], index: 9, kind: input, shape index: {}]
  %s10 = inlined_call_operand.vmem [shape: bf16[128,128], index: 10, kind: input, shape index: {}]
  %s11 = inlined_call_operand.vmem [shape: f32[1,128], index: 11, kind: input, shape index: {}]
  %s12 = inlined_call_operand.vmem [shape: bf16[128,64], index: 12, kind: input, shape index: {}]
  %s13 = inlined_call_operand.vmem [shape: f32[1,64], index: 13, kind: input, shape index: {}]
  %s14 = inlined_call_operand.vmem [shape: bf16[64,128], index: 14, kind: input, shape index: {}]
  %s15 = inlined_call_operand.vmem [shape: f32[1,128], index: 15, kind: input, shape index: {}]
  %s16 = inlined_call_operand.vmem [shape: bf16[128,128], index: 16, kind: input, shape index: {}]
  %s17 = inlined_call_operand.vmem [shape: f32[1,128], index: 17, kind: input, shape index: {}]
  %s18 = inlined_call_operand.vmem [shape: bf16[128,16], index: 18, kind: input, shape index: {}]
  %s19 = inlined_call_operand.vmem [shape: f32[1,16], index: 19, kind: input, shape index: {}]
  %s20 = inlined_call_operand.vmem [shape: bf16[8,128], index: 20, kind: input, shape index: {}]
  %s21 = inlined_call_operand.vmem [shape: bf16[16,128], index: 21, kind: input, shape index: {}]
  %s22 = inlined_call_operand.vmem [shape: f32[1,128], index: 22, kind: input, shape index: {}]
  %s23 = inlined_call_operand.vmem [shape: bf16[128,8], index: 23, kind: input, shape index: {}]
  %s24 = inlined_call_operand.vmem [shape: f32[1,8], index: 24, kind: input, shape index: {}]
  %s25 = inlined_call_operand.vmem [shape: f32[256,16], index: 25, kind: output, shape index: {0}]
  %s26 = inlined_call_operand.vmem [shape: f32[16,8], index: 26, kind: output, shape index: {1}]
  %27 = xla_tuple %s25, %s26
  %s28 = sld [smem:[#allocation0]]
  $region149: #{tpu_custom_call.1} parent=0
    _
  %s30 = ssub.s32 1, %s28
  %s31 = scalar_select 0, %s30, %s28
  loop: start=0, step=1, limit=4
  $region2: #{tpu_custom_call.1} parent=0 // loop_pre_header
    _
  $region3: #{tpu_custom_call.1} parent=0 // loop_header
    %s33 = sphi 0, %s37
    %p34 = scmp.ge.s32.totalorder %s33, 4
    %s43 = sphi 0, %s45
    %s46 = sphi 0, %s43
    %s47 = sphi 0, %s46
    %s63 = sphi 0, %s47
    %s69 = sphi 0, %s71
    %s72 = sphi 0, %s69
    %s73 = sphi 0, %s72
    %s89 = sphi 0, %s73
    %s95 = sphi 0, %s97
    %s98 = sphi 0, %s95
    %s99 = sphi 0, %s98
    %s115 = sphi 0, %s99
    %s121 = sphi 0, %s123
    %s124 = sphi 0, %s121
    %s125 = sphi 0, %s124
    %s141 = sphi 0, %s125
    %s145 = sphi 0, %s145
    %s147 = sphi 0, %s145
    %s148 = sphi 0, %s147
    %s162 = sphi 0, %s148
    %s166 = sphi 0, %s166
    %s168 = sphi 0, %s166
    %s169 = sphi 0, %s168
    %s183 = sphi 0, %s169
    %s187 = sphi 0, %s187
    %s189 = sphi 0, %s187
    %s190 = sphi 0, %s189
    %s204 = sphi 0, %s190
    %s208 = sphi 0, %s208
    %s210 = sphi 0, %s208
    %s211 = sphi 0, %s210
    %s225 = sphi 0, %s211
    %s229 = sphi 0, %s229
    %s231 = sphi 0, %s229
    %s232 = sphi 0, %s231
    %s246 = sphi 0, %s232
    %s250 = sphi 0, %s250
    %s252 = sphi 0, %s250
    %s253 = sphi 0, %s252
    %s267 = sphi 0, %s253
    %s271 = sphi 0, %s271
    %s273 = sphi 0, %s271
    %s274 = sphi 0, %s273
    %s288 = sphi 0, %s274
    %s292 = sphi 0, %s292
    %s294 = sphi 0, %s292
    %s295 = sphi 0, %s294
    %s309 = sphi 0, %s295
    %s313 = sphi 0, %s313
    %s315 = sphi 0, %s313
    %s316 = sphi 0, %s315
    %s330 = sphi 0, %s316
    %s334 = sphi 0, %s334
    %s336 = sphi 0, %s334
    %s337 = sphi 0, %s336
    %s351 = sphi 0, %s337
    %s355 = sphi 0, %s355
    %s357 = sphi 0, %s355
    %s358 = sphi 0, %s357
    %s372 = sphi 0, %s358
    %s376 = sphi 0, %s376
    %s378 = sphi 0, %s376
    %s379 = sphi 0, %s378
    %s393 = sphi 0, %s379
    %s397 = sphi 0, %s397
    %s399 = sphi 0, %s397
    %s400 = sphi 0, %s399
    %s414 = sphi 0, %s400
    %s418 = sphi 0, %s418
    %s420 = sphi 0, %s418
    %s421 = sphi 0, %s420
    %s435 = sphi 0, %s421
    %s439 = sphi 0, %s439
    %s441 = sphi 0, %s439
    %s442 = sphi 0, %s441
    %s456 = sphi 0, %s442
    %s460 = sphi 0, %s460
    %s462 = sphi 0, %s460
    %s463 = sphi 0, %s462
    %s477 = sphi 0, %s463
    %s481 = sphi 0, %s481
    %s483 = sphi 0, %s481
    %s484 = sphi 0, %s483
    %s498 = sphi 0, %s484
    %s502 = sphi 0, %s502
    %s504 = sphi 0, %s502
    %s505 = sphi 0, %s504
    %s519 = sphi 0, %s505
    %s523 = sphi 0, %s523
    %s525 = sphi 0, %s523
    %s526 = sphi 0, %s525
    %s540 = sphi 0, %s526
    %s544 = sphi 0, %s544
    %s546 = sphi 0, %s544
    %s547 = sphi 0, %s546
    %s561 = sphi 0, %s547
    %s565 = sphi 0, %s565
    %s567 = sphi 0, %s565
    %s568 = sphi 0, %s567
    %s582 = sphi 0, %s568
    %s588 = sphi 0, %s590
    %s591 = sphi 0, %s588
    %s592 = sphi 0, %s591
    %s608 = sphi 0, %s592
    %s612 = sphi 0, %s612
    %s614 = sphi 0, %s612
    %s615 = sphi 0, %s614
    %s629 = sphi 0, %s615
  $region4: #{tpu_custom_call.1} parent=0 // loop_header_branch
    %36 = sbr.rel (%p34) target = $region8
  $region5: #{tpu_custom_call.1} parent=0 // loop_body
    %s38 = ssub.s32 %s33, 1
    %s39 = ssub.s32 %s33, 2
    %s40 = sadd.s32 %s33, 1
    %s41 = ssub.s32 %s33, %s40
    %p42 = scmp.eq.s32.totalorder %s41, 0
    %s44 = sadd.s32 %s43, 1
    %s45 = scalar_select %p42, %s43, %s44
    %p48 = pneg %p42
    %p49 = scmp.eq.s32.totalorder %s33, 1
    %p50 = por %p48, %p49
    %p51 = scmp.ne.s32.totalorder %s43, %s46
    %p52 = scmp.eq.s32.totalorder %s33, 0
    %p53 = por %p51, %p52
    %p54 = scmp.ne.s32.totalorder %s43, %s46
    %p55 = scmp.eq.s32.totalorder %s38, 1
    %p56 = por %p54, %p55
    %p57 = scmp.ne.s32.totalorder %s46, %s47
    %p58 = scmp.eq.s32.totalorder %s38, 0
    %p59 = por %p57, %p58
    %p60 = scmp.ne.s32.totalorder %s46, %s47
    %p61 = scmp.eq.s32.totalorder %s39, 1
    %p62 = por %p60, %p61
    %p64 = scmp.ne.s32.totalorder %s47, %s63
    %p65 = scmp.eq.s32.totalorder %s39, 0
    %p66 = por %p64, %p65
    %s67 = ssub.s32 %s33, %s40
    %p68 = scmp.eq.s32.totalorder %s67, 0
    %s70 = sadd.s32 %s69, 1
    %s71 = scalar_select %p68, %s69, %s70
    %p74 = pneg %p68
    %p75 = scmp.eq.s32.totalorder %s33, 1
    %p76 = por %p74, %p75
    %p77 = scmp.ne.s32.totalorder %s69, %s72
    %p78 = scmp.eq.s32.totalorder %s33, 0
    %p79 = por %p77, %p78
    %p80 = scmp.ne.s32.totalorder %s69, %s72
    %p81 = scmp.eq.s32.totalorder %s38, 1
    %p82 = por %p80, %p81
    %p83 = scmp.ne.s32.totalorder %s72, %s73
    %p84 = scmp.eq.s32.totalorder %s38, 0
    %p85 = por %p83, %p84
    %p86 = scmp.ne.s32.totalorder %s72, %s73
    %p87 = scmp.eq.s32.totalorder %s39, 1
    %p88 = por %p86, %p87
    %p90 = scmp.ne.s32.totalorder %s73, %s89
    %p91 = scmp.eq.s32.totalorder %s39, 0
    %p92 = por %p90, %p91
    %s93 = ssub.s32 %s33, %s40
    %p94 = scmp.eq.s32.totalorder %s93, 0
    %s96 = sadd.s32 %s95, 1
    %s97 = scalar_select %p94, %s95, %s96
    %p100 = pneg %p94
    %p101 = scmp.eq.s32.totalorder %s33, 1
    %p102 = por %p100, %p101
    %p103 = scmp.ne.s32.totalorder %s95, %s98
    %p104 = scmp.eq.s32.totalorder %s33, 0
    %p105 = por %p103, %p104
    %p106 = scmp.ne.s32.totalorder %s95, %s98
    %p107 = scmp.eq.s32.totalorder %s38, 1
    %p108 = por %p106, %p107
    %p109 = scmp.ne.s32.totalorder %s98, %s99
    %p110 = scmp.eq.s32.totalorder %s38, 0
    %p111 = por %p109, %p110
    %p112 = scmp.ne.s32.totalorder %s98, %s99
    %p113 = scmp.eq.s32.totalorder %s39, 1
    %p114 = por %p112, %p113
    %p116 = scmp.ne.s32.totalorder %s99, %s115
    %p117 = scmp.eq.s32.totalorder %s39, 0
    %p118 = por %p116, %p117
    %s119 = ssub.s32 %s33, %s40
    %p120 = scmp.eq.s32.totalorder %s119, 0
    %s122 = sadd.s32 %s121, 1
    %s123 = scalar_select %p120, %s121, %s122
    %p126 = pneg %p120
    %p127 = scmp.eq.s32.totalorder %s33, 1
    %p128 = por %p126, %p127
    %p129 = scmp.ne.s32.totalorder %s121, %s124
    %p130 = scmp.eq.s32.totalorder %s33, 0
    %p131 = por %p129, %p130
    %p132 = scmp.ne.s32.totalorder %s121, %s124
    %p133 = scmp.eq.s32.totalorder %s38, 1
    %p134 = por %p132, %p133
    %p135 = scmp.ne.s32.totalorder %s124, %s125
    %p136 = scmp.eq.s32.totalorder %s38, 0
    %p137 = por %p135, %p136
    %p138 = scmp.ne.s32.totalorder %s124, %s125
    %p139 = scmp.eq.s32.totalorder %s39, 1
    %p140 = por %p138, %p139
    %p142 = scmp.ne.s32.totalorder %s125, %s141
    %p143 = scmp.eq.s32.totalorder %s39, 0
    %p144 = por %p142, %p143
    %s146 = sadd.s32 %s145, 1
    %p149 = scmp.eq.s32.totalorder %s33, 1
    %p150 = scmp.ne.s32.totalorder %s145, %s147
    %p151 = scmp.eq.s32.totalorder %s33, 0
    %p152 = por %p150, %p151
    %p153 = scmp.ne.s32.totalorder %s145, %s147
    %p154 = scmp.eq.s32.totalorder %s38, 1
    %p155 = por %p153, %p154
    %p156 = scmp.ne.s32.totalorder %s147, %s148
    %p157 = scmp.eq.s32.totalorder %s38, 0
    %p158 = por %p156, %p157
    %p159 = scmp.ne.s32.totalorder %s147, %s148
    %p160 = scmp.eq.s32.totalorder %s39, 1
    %p161 = por %p159, %p160
    %p163 = scmp.ne.s32.totalorder %s148, %s162
    %p164 = scmp.eq.s32.totalorder %s39, 0
    %p165 = por %p163, %p164
    %s167 = sadd.s32 %s166, 1
    %p170 = scmp.eq.s32.totalorder %s33, 1
    %p171 = scmp.ne.s32.totalorder %s166, %s168
    %p172 = scmp.eq.s32.totalorder %s33, 0
    %p173 = por %p171, %p172
    %p174 = scmp.ne.s32.totalorder %s166, %s168
    %p175 = scmp.eq.s32.totalorder %s38, 1
    %p176 = por %p174, %p175
    %p177 = scmp.ne.s32.totalorder %s168, %s169
    %p178 = scmp.eq.s32.totalorder %s38, 0
    %p179 = por %p177, %p178
    %p180 = scmp.ne.s32.totalorder %s168, %s169
    %p181 = scmp.eq.s32.totalorder %s39, 1
    %p182 = por %p180, %p181
    %p184 = scmp.ne.s32.totalorder %s169, %s183
    %p185 = scmp.eq.s32.totalorder %s39, 0
    %p186 = por %p184, %p185
    %s188 = sadd.s32 %s187, 1
    %p191 = scmp.eq.s32.totalorder %s33, 1
    %p192 = scmp.ne.s32.totalorder %s187, %s189
    %p193 = scmp.eq.s32.totalorder %s33, 0
    %p194 = por %p192, %p193
    %p195 = scmp.ne.s32.totalorder %s187, %s189
    %p196 = scmp.eq.s32.totalorder %s38, 1
    %p197 = por %p195, %p196
    %p198 = scmp.ne.s32.totalorder %s189, %s190
    %p199 = scmp.eq.s32.totalorder %s38, 0
    %p200 = por %p198, %p199
    %p201 = scmp.ne.s32.totalorder %s189, %s190
    %p202 = scmp.eq.s32.totalorder %s39, 1
    %p203 = por %p201, %p202
    %p205 = scmp.ne.s32.totalorder %s190, %s204
    %p206 = scmp.eq.s32.totalorder %s39, 0
    %p207 = por %p205, %p206
    %s209 = sadd.s32 %s208, 1
    %p212 = scmp.eq.s32.totalorder %s33, 1
    %p213 = scmp.ne.s32.totalorder %s208, %s210
    %p214 = scmp.eq.s32.totalorder %s33, 0
    %p215 = por %p213, %p214
    %p216 = scmp.ne.s32.totalorder %s208, %s210
    %p217 = scmp.eq.s32.totalorder %s38, 1
    %p218 = por %p216, %p217
    %p219 = scmp.ne.s32.totalorder %s210, %s211
    %p220 = scmp.eq.s32.totalorder %s38, 0
    %p221 = por %p219, %p220
    %p222 = scmp.ne.s32.totalorder %s210, %s211
    %p223 = scmp.eq.s32.totalorder %s39, 1
    %p224 = por %p222, %p223
    %p226 = scmp.ne.s32.totalorder %s211, %s225
    %p227 = scmp.eq.s32.totalorder %s39, 0
    %p228 = por %p226, %p227
    %s230 = sadd.s32 %s229, 1
    %p233 = scmp.eq.s32.totalorder %s33, 1
    %p234 = scmp.ne.s32.totalorder %s229, %s231
    %p235 = scmp.eq.s32.totalorder %s33, 0
    %p236 = por %p234, %p235
    %p237 = scmp.ne.s32.totalorder %s229, %s231
    %p238 = scmp.eq.s32.totalorder %s38, 1
    %p239 = por %p237, %p238
    %p240 = scmp.ne.s32.totalorder %s231, %s232
    %p241 = scmp.eq.s32.totalorder %s38, 0
    %p242 = por %p240, %p241
    %p243 = scmp.ne.s32.totalorder %s231, %s232
    %p244 = scmp.eq.s32.totalorder %s39, 1
    %p245 = por %p243, %p244
    %p247 = scmp.ne.s32.totalorder %s232, %s246
    %p248 = scmp.eq.s32.totalorder %s39, 0
    %p249 = por %p247, %p248
    %s251 = sadd.s32 %s250, 1
    %p254 = scmp.eq.s32.totalorder %s33, 1
    %p255 = scmp.ne.s32.totalorder %s250, %s252
    %p256 = scmp.eq.s32.totalorder %s33, 0
    %p257 = por %p255, %p256
    %p258 = scmp.ne.s32.totalorder %s250, %s252
    %p259 = scmp.eq.s32.totalorder %s38, 1
    %p260 = por %p258, %p259
    %p261 = scmp.ne.s32.totalorder %s252, %s253
    %p262 = scmp.eq.s32.totalorder %s38, 0
    %p263 = por %p261, %p262
    %p264 = scmp.ne.s32.totalorder %s252, %s253
    %p265 = scmp.eq.s32.totalorder %s39, 1
    %p266 = por %p264, %p265
    %p268 = scmp.ne.s32.totalorder %s253, %s267
    %p269 = scmp.eq.s32.totalorder %s39, 0
    %p270 = por %p268, %p269
    %s272 = sadd.s32 %s271, 1
    %p275 = scmp.eq.s32.totalorder %s33, 1
    %p276 = scmp.ne.s32.totalorder %s271, %s273
    %p277 = scmp.eq.s32.totalorder %s33, 0
    %p278 = por %p276, %p277
    %p279 = scmp.ne.s32.totalorder %s271, %s273
    %p280 = scmp.eq.s32.totalorder %s38, 1
    %p281 = por %p279, %p280
    %p282 = scmp.ne.s32.totalorder %s273, %s274
    %p283 = scmp.eq.s32.totalorder %s38, 0
    %p284 = por %p282, %p283
    %p285 = scmp.ne.s32.totalorder %s273, %s274
    %p286 = scmp.eq.s32.totalorder %s39, 1
    %p287 = por %p285, %p286
    %p289 = scmp.ne.s32.totalorder %s274, %s288
    %p290 = scmp.eq.s32.totalorder %s39, 0
    %p291 = por %p289, %p290
    %s293 = sadd.s32 %s292, 1
    %p296 = scmp.eq.s32.totalorder %s33, 1
    %p297 = scmp.ne.s32.totalorder %s292, %s294
    %p298 = scmp.eq.s32.totalorder %s33, 0
    %p299 = por %p297, %p298
    %p300 = scmp.ne.s32.totalorder %s292, %s294
    %p301 = scmp.eq.s32.totalorder %s38, 1
    %p302 = por %p300, %p301
    %p303 = scmp.ne.s32.totalorder %s294, %s295
    %p304 = scmp.eq.s32.totalorder %s38, 0
    %p305 = por %p303, %p304
    %p306 = scmp.ne.s32.totalorder %s294, %s295
    %p307 = scmp.eq.s32.totalorder %s39, 1
    %p308 = por %p306, %p307
    %p310 = scmp.ne.s32.totalorder %s295, %s309
    %p311 = scmp.eq.s32.totalorder %s39, 0
    %p312 = por %p310, %p311
    %s314 = sadd.s32 %s313, 1
    %p317 = scmp.eq.s32.totalorder %s33, 1
    %p318 = scmp.ne.s32.totalorder %s313, %s315
    %p319 = scmp.eq.s32.totalorder %s33, 0
    %p320 = por %p318, %p319
    %p321 = scmp.ne.s32.totalorder %s313, %s315
    %p322 = scmp.eq.s32.totalorder %s38, 1
    %p323 = por %p321, %p322
    %p324 = scmp.ne.s32.totalorder %s315, %s316
    %p325 = scmp.eq.s32.totalorder %s38, 0
    %p326 = por %p324, %p325
    %p327 = scmp.ne.s32.totalorder %s315, %s316
    %p328 = scmp.eq.s32.totalorder %s39, 1
    %p329 = por %p327, %p328
    %p331 = scmp.ne.s32.totalorder %s316, %s330
    %p332 = scmp.eq.s32.totalorder %s39, 0
    %p333 = por %p331, %p332
    %s335 = sadd.s32 %s334, 1
    %p338 = scmp.eq.s32.totalorder %s33, 1
    %p339 = scmp.ne.s32.totalorder %s334, %s336
    %p340 = scmp.eq.s32.totalorder %s33, 0
    %p341 = por %p339, %p340
    %p342 = scmp.ne.s32.totalorder %s334, %s336
    %p343 = scmp.eq.s32.totalorder %s38, 1
    %p344 = por %p342, %p343
    %p345 = scmp.ne.s32.totalorder %s336, %s337
    %p346 = scmp.eq.s32.totalorder %s38, 0
    %p347 = por %p345, %p346
    %p348 = scmp.ne.s32.totalorder %s336, %s337
    %p349 = scmp.eq.s32.totalorder %s39, 1
    %p350 = por %p348, %p349
    %p352 = scmp.ne.s32.totalorder %s337, %s351
    %p353 = scmp.eq.s32.totalorder %s39, 0
    %p354 = por %p352, %p353
    %s356 = sadd.s32 %s355, 1
    %p359 = scmp.eq.s32.totalorder %s33, 1
    %p360 = scmp.ne.s32.totalorder %s355, %s357
    %p361 = scmp.eq.s32.totalorder %s33, 0
    %p362 = por %p360, %p361
    %p363 = scmp.ne.s32.totalorder %s355, %s357
    %p364 = scmp.eq.s32.totalorder %s38, 1
    %p365 = por %p363, %p364
    %p366 = scmp.ne.s32.totalorder %s357, %s358
    %p367 = scmp.eq.s32.totalorder %s38, 0
    %p368 = por %p366, %p367
    %p369 = scmp.ne.s32.totalorder %s357, %s358
    %p370 = scmp.eq.s32.totalorder %s39, 1
    %p371 = por %p369, %p370
    %p373 = scmp.ne.s32.totalorder %s358, %s372
    %p374 = scmp.eq.s32.totalorder %s39, 0
    %p375 = por %p373, %p374
    %s377 = sadd.s32 %s376, 1
    %p380 = scmp.eq.s32.totalorder %s33, 1
    %p381 = scmp.ne.s32.totalorder %s376, %s378
    %p382 = scmp.eq.s32.totalorder %s33, 0
    %p383 = por %p381, %p382
    %p384 = scmp.ne.s32.totalorder %s376, %s378
    %p385 = scmp.eq.s32.totalorder %s38, 1
    %p386 = por %p384, %p385
    %p387 = scmp.ne.s32.totalorder %s378, %s379
    %p388 = scmp.eq.s32.totalorder %s38, 0
    %p389 = por %p387, %p388
    %p390 = scmp.ne.s32.totalorder %s378, %s379
    %p391 = scmp.eq.s32.totalorder %s39, 1
    %p392 = por %p390, %p391
    %p394 = scmp.ne.s32.totalorder %s379, %s393
    %p395 = scmp.eq.s32.totalorder %s39, 0
    %p396 = por %p394, %p395
    %s398 = sadd.s32 %s397, 1
    %p401 = scmp.eq.s32.totalorder %s33, 1
    %p402 = scmp.ne.s32.totalorder %s397, %s399
    %p403 = scmp.eq.s32.totalorder %s33, 0
    %p404 = por %p402, %p403
    %p405 = scmp.ne.s32.totalorder %s397, %s399
    %p406 = scmp.eq.s32.totalorder %s38, 1
    %p407 = por %p405, %p406
    %p408 = scmp.ne.s32.totalorder %s399, %s400
    %p409 = scmp.eq.s32.totalorder %s38, 0
    %p410 = por %p408, %p409
    %p411 = scmp.ne.s32.totalorder %s399, %s400
    %p412 = scmp.eq.s32.totalorder %s39, 1
    %p413 = por %p411, %p412
    %p415 = scmp.ne.s32.totalorder %s400, %s414
    %p416 = scmp.eq.s32.totalorder %s39, 0
    %p417 = por %p415, %p416
    %s419 = sadd.s32 %s418, 1
    %p422 = scmp.eq.s32.totalorder %s33, 1
    %p423 = scmp.ne.s32.totalorder %s418, %s420
    %p424 = scmp.eq.s32.totalorder %s33, 0
    %p425 = por %p423, %p424
    %p426 = scmp.ne.s32.totalorder %s418, %s420
    %p427 = scmp.eq.s32.totalorder %s38, 1
    %p428 = por %p426, %p427
    %p429 = scmp.ne.s32.totalorder %s420, %s421
    %p430 = scmp.eq.s32.totalorder %s38, 0
    %p431 = por %p429, %p430
    %p432 = scmp.ne.s32.totalorder %s420, %s421
    %p433 = scmp.eq.s32.totalorder %s39, 1
    %p434 = por %p432, %p433
    %p436 = scmp.ne.s32.totalorder %s421, %s435
    %p437 = scmp.eq.s32.totalorder %s39, 0
    %p438 = por %p436, %p437
    %s440 = sadd.s32 %s439, 1
    %p443 = scmp.eq.s32.totalorder %s33, 1
    %p444 = scmp.ne.s32.totalorder %s439, %s441
    %p445 = scmp.eq.s32.totalorder %s33, 0
    %p446 = por %p444, %p445
    %p447 = scmp.ne.s32.totalorder %s439, %s441
    %p448 = scmp.eq.s32.totalorder %s38, 1
    %p449 = por %p447, %p448
    %p450 = scmp.ne.s32.totalorder %s441, %s442
    %p451 = scmp.eq.s32.totalorder %s38, 0
    %p452 = por %p450, %p451
    %p453 = scmp.ne.s32.totalorder %s441, %s442
    %p454 = scmp.eq.s32.totalorder %s39, 1
    %p455 = por %p453, %p454
    %p457 = scmp.ne.s32.totalorder %s442, %s456
    %p458 = scmp.eq.s32.totalorder %s39, 0
    %p459 = por %p457, %p458
    %s461 = sadd.s32 %s460, 1
    %p464 = scmp.eq.s32.totalorder %s33, 1
    %p465 = scmp.ne.s32.totalorder %s460, %s462
    %p466 = scmp.eq.s32.totalorder %s33, 0
    %p467 = por %p465, %p466
    %p468 = scmp.ne.s32.totalorder %s460, %s462
    %p469 = scmp.eq.s32.totalorder %s38, 1
    %p470 = por %p468, %p469
    %p471 = scmp.ne.s32.totalorder %s462, %s463
    %p472 = scmp.eq.s32.totalorder %s38, 0
    %p473 = por %p471, %p472
    %p474 = scmp.ne.s32.totalorder %s462, %s463
    %p475 = scmp.eq.s32.totalorder %s39, 1
    %p476 = por %p474, %p475
    %p478 = scmp.ne.s32.totalorder %s463, %s477
    %p479 = scmp.eq.s32.totalorder %s39, 0
    %p480 = por %p478, %p479
    %s482 = sadd.s32 %s481, 1
    %p485 = scmp.eq.s32.totalorder %s33, 1
    %p486 = scmp.ne.s32.totalorder %s481, %s483
    %p487 = scmp.eq.s32.totalorder %s33, 0
    %p488 = por %p486, %p487
    %p489 = scmp.ne.s32.totalorder %s481, %s483
    %p490 = scmp.eq.s32.totalorder %s38, 1
    %p491 = por %p489, %p490
    %p492 = scmp.ne.s32.totalorder %s483, %s484
    %p493 = scmp.eq.s32.totalorder %s38, 0
    %p494 = por %p492, %p493
    %p495 = scmp.ne.s32.totalorder %s483, %s484
    %p496 = scmp.eq.s32.totalorder %s39, 1
    %p497 = por %p495, %p496
    %p499 = scmp.ne.s32.totalorder %s484, %s498
    %p500 = scmp.eq.s32.totalorder %s39, 0
    %p501 = por %p499, %p500
    %s503 = sadd.s32 %s502, 1
    %p506 = scmp.eq.s32.totalorder %s33, 1
    %p507 = scmp.ne.s32.totalorder %s502, %s504
    %p508 = scmp.eq.s32.totalorder %s33, 0
    %p509 = por %p507, %p508
    %p510 = scmp.ne.s32.totalorder %s502, %s504
    %p511 = scmp.eq.s32.totalorder %s38, 1
    %p512 = por %p510, %p511
    %p513 = scmp.ne.s32.totalorder %s504, %s505
    %p514 = scmp.eq.s32.totalorder %s38, 0
    %p515 = por %p513, %p514
    %p516 = scmp.ne.s32.totalorder %s504, %s505
    %p517 = scmp.eq.s32.totalorder %s39, 1
    %p518 = por %p516, %p517
    %p520 = scmp.ne.s32.totalorder %s505, %s519
    %p521 = scmp.eq.s32.totalorder %s39, 0
    %p522 = por %p520, %p521
    %s524 = sadd.s32 %s523, 1
    %p527 = scmp.eq.s32.totalorder %s33, 1
    %p528 = scmp.ne.s32.totalorder %s523, %s525
    %p529 = scmp.eq.s32.totalorder %s33, 0
    %p530 = por %p528, %p529
    %p531 = scmp.ne.s32.totalorder %s523, %s525
    %p532 = scmp.eq.s32.totalorder %s38, 1
    %p533 = por %p531, %p532
    %p534 = scmp.ne.s32.totalorder %s525, %s526
    %p535 = scmp.eq.s32.totalorder %s38, 0
    %p536 = por %p534, %p535
    %p537 = scmp.ne.s32.totalorder %s525, %s526
    %p538 = scmp.eq.s32.totalorder %s39, 1
    %p539 = por %p537, %p538
    %p541 = scmp.ne.s32.totalorder %s526, %s540
    %p542 = scmp.eq.s32.totalorder %s39, 0
    %p543 = por %p541, %p542
    %s545 = sadd.s32 %s544, 1
    %p548 = scmp.eq.s32.totalorder %s33, 1
    %p549 = scmp.ne.s32.totalorder %s544, %s546
    %p550 = scmp.eq.s32.totalorder %s33, 0
    %p551 = por %p549, %p550
    %p552 = scmp.ne.s32.totalorder %s544, %s546
    %p553 = scmp.eq.s32.totalorder %s38, 1
    %p554 = por %p552, %p553
    %p555 = scmp.ne.s32.totalorder %s546, %s547
    %p556 = scmp.eq.s32.totalorder %s38, 0
    %p557 = por %p555, %p556
    %p558 = scmp.ne.s32.totalorder %s546, %s547
    %p559 = scmp.eq.s32.totalorder %s39, 1
    %p560 = por %p558, %p559
    %p562 = scmp.ne.s32.totalorder %s547, %s561
    %p563 = scmp.eq.s32.totalorder %s39, 0
    %p564 = por %p562, %p563
    %s566 = sadd.s32 %s565, 1
    %p569 = scmp.eq.s32.totalorder %s33, 1
    %p570 = scmp.ne.s32.totalorder %s565, %s567
    %p571 = scmp.eq.s32.totalorder %s33, 0
    %p572 = por %p570, %p571
    %p573 = scmp.ne.s32.totalorder %s565, %s567
    %p574 = scmp.eq.s32.totalorder %s38, 1
    %p575 = por %p573, %p574
    %p576 = scmp.ne.s32.totalorder %s567, %s568
    %p577 = scmp.eq.s32.totalorder %s38, 0
    %p578 = por %p576, %p577
    %p579 = scmp.ne.s32.totalorder %s567, %s568
    %p580 = scmp.eq.s32.totalorder %s39, 1
    %p581 = por %p579, %p580
    %p583 = scmp.ne.s32.totalorder %s568, %s582
    %p584 = scmp.eq.s32.totalorder %s39, 0
    %p585 = por %p583, %p584
    %s586 = ssub.s32 %s33, %s40
    %p587 = scmp.eq.s32.totalorder %s586, 0
    %s589 = sadd.s32 %s588, 1
    %s590 = scalar_select %p587, %s588, %s589
    %p593 = pneg %p587
    %p594 = scmp.eq.s32.totalorder %s33, 1
    %p595 = por %p593, %p594
    %p596 = scmp.ne.s32.totalorder %s588, %s591
    %p597 = scmp.eq.s32.totalorder %s33, 0
    %p598 = por %p596, %p597
    %p599 = scmp.ne.s32.totalorder %s588, %s591
    %p600 = scmp.eq.s32.totalorder %s38, 1
    %p601 = por %p599, %p600
    %p602 = scmp.ne.s32.totalorder %s591, %s592
    %p603 = scmp.eq.s32.totalorder %s38, 0
    %p604 = por %p602, %p603
    %p605 = scmp.ne.s32.totalorder %s591, %s592
    %p606 = scmp.eq.s32.totalorder %s39, 1
    %p607 = por %p605, %p606
    %p609 = scmp.ne.s32.totalorder %s592, %s608
    %p610 = scmp.eq.s32.totalorder %s39, 0
    %p611 = por %p609, %p610
    %s613 = sadd.s32 %s612, 1
    %p616 = scmp.eq.s32.totalorder %s33, 1
    %p617 = scmp.ne.s32.totalorder %s612, %s614
    %p618 = scmp.eq.s32.totalorder %s33, 0
    %p619 = por %p617, %p618
    %p620 = scmp.ne.s32.totalorder %s612, %s614
    %p621 = scmp.eq.s32.totalorder %s38, 1
    %p622 = por %p620, %p621
    %p623 = scmp.ne.s32.totalorder %s614, %s615
    %p624 = scmp.eq.s32.totalorder %s38, 0
    %p625 = por %p623, %p624
    %p626 = scmp.ne.s32.totalorder %s614, %s615
    %p627 = scmp.eq.s32.totalorder %s39, 1
    %p628 = por %p626, %p627
    %p630 = scmp.ne.s32.totalorder %s615, %s629
    %p631 = scmp.eq.s32.totalorder %s39, 0
    %p632 = por %p630, %p631
    %p633 = scmp.le.s32.totalorder 1, %s33
    %p634 = scmp.lt.s32.totalorder %s33, 3
    %p635 = pnand %p633, %p634
    %p636 = pneg %p635
    // Predicated region
    $region9: #{tpu_custom_call.1} parent=5 // pred_check
      _
    $region10: #{tpu_custom_call.1} parent=5 // pred_check_branch
      %638 = sbr.rel (%p635) target = $region12
    $region11: #{tpu_custom_call.1} parent=5 // pred_region
      %s639 = ssub.s32 %s33, 1
      // Predicated region
      $region13: #{tpu_custom_call.1} parent=11 // pred_check
        %p640 = pneg %p158
      $region14: #{tpu_custom_call.1} parent=11 // pred_check_branch
        %642 = sbr.rel (%p640) target = $region16
      $region15: #{tpu_custom_call.1} parent=11 // pred_region
        _
      $region16: #{tpu_custom_call.1} parent=11 // pred_fallthru
        _
      // Predicated region
      $region17: #{tpu_custom_call.1} parent=11 // pred_check
        %p643 = pneg %p179
      $region18: #{tpu_custom_call.1} parent=11 // pred_check_branch
        %645 = sbr.rel (%p643) target = $region20
      $region19: #{tpu_custom_call.1} parent=11 // pred_region
        _
      $region20: #{tpu_custom_call.1} parent=11 // pred_fallthru
        _
      // Predicated region
      $region21: #{tpu_custom_call.1} parent=11 // pred_check
        %p646 = pneg %p200
      $region22: #{tpu_custom_call.1} parent=11 // pred_check_branch
        %648 = sbr.rel (%p646) target = $region24
      $region23: #{tpu_custom_call.1} parent=11 // pred_region
        _
      $region24: #{tpu_custom_call.1} parent=11 // pred_fallthru
        _
      // Predicated region
      $region25: #{tpu_custom_call.1} parent=11 // pred_check
        %p649 = pneg %p221
      $region26: #{tpu_custom_call.1} parent=11 // pred_check_branch
        %651 = sbr.rel (%p649) target = $region28
      $region27: #{tpu_custom_call.1} parent=11 // pred_region
        _
      $region28: #{tpu_custom_call.1} parent=11 // pred_fallthru
        _
      // Predicated region
      $region29: #{tpu_custom_call.1} parent=11 // pred_check
        %p652 = pneg %p242
      $region30: #{tpu_custom_call.1} parent=11 // pred_check_branch
        %654 = sbr.rel (%p652) target = $region32
      $region31: #{tpu_custom_call.1} parent=11 // pred_region
        _
      $region32: #{tpu_custom_call.1} parent=11 // pred_fallthru
        _
      // Predicated region
      $region33: #{tpu_custom_call.1} parent=11 // pred_check
        %p655 = pneg %p263
      $region34: #{tpu_custom_call.1} parent=11 // pred_check_branch
        %657 = sbr.rel (%p655) target = $region36
      $region35: #{tpu_custom_call.1} parent=11 // pred_region
        _
      $region36: #{tpu_custom_call.1} parent=11 // pred_fallthru
        _
      // Predicated region
      $region37: #{tpu_custom_call.1} parent=11 // pred_check
        %p658 = pneg %p284
      $region38: #{tpu_custom_call.1} parent=11 // pred_check_branch
        %660 = sbr.rel (%p658) target = $region40
      $region39: #{tpu_custom_call.1} parent=11 // pred_region
        _
      $region40: #{tpu_custom_call.1} parent=11 // pred_fallthru
        _
      // Predicated region
      $region41: #{tpu_custom_call.1} parent=11 // pred_check
        %p661 = pneg %p305
      $region42: #{tpu_custom_call.1} parent=11 // pred_check_branch
        %663 = sbr.rel (%p661) target = $region44
      $region43: #{tpu_custom_call.1} parent=11 // pred_region
        _
      $region44: #{tpu_custom_call.1} parent=11 // pred_fallthru
        _
      // Predicated region
      $region45: #{tpu_custom_call.1} parent=11 // pred_check
        %p664 = pneg %p326
      $region46: #{tpu_custom_call.1} parent=11 // pred_check_branch
        %666 = sbr.rel (%p664) target = $region48
      $region47: #{tpu_custom_call.1} parent=11 // pred_region
        _
      $region48: #{tpu_custom_call.1} parent=11 // pred_fallthru
        _
      // Predicated region
      $region49: #{tpu_custom_call.1} parent=11 // pred_check
        %p667 = pneg %p347
      $region50: #{tpu_custom_call.1} parent=11 // pred_check_branch
        %669 = sbr.rel (%p667) target = $region52
      $region51: #{tpu_custom_call.1} parent=11 // pred_region
        _
      $region52: #{tpu_custom_call.1} parent=11 // pred_fallthru
        _
      // Predicated region
      $region53: #{tpu_custom_call.1} parent=11 // pred_check
        %p670 = pneg %p368
      $region54: #{tpu_custom_call.1} parent=11 // pred_check_branch
        %672 = sbr.rel (%p670) target = $region56
      $region55: #{tpu_custom_call.1} parent=11 // pred_region
        _
      $region56: #{tpu_custom_call.1} parent=11 // pred_fallthru
        _
      // Predicated region
      $region57: #{tpu_custom_call.1} parent=11 // pred_check
        %p673 = pneg %p389
      $region58: #{tpu_custom_call.1} parent=11 // pred_check_branch
        %675 = sbr.rel (%p673) target = $region60
      $region59: #{tpu_custom_call.1} parent=11 // pred_region
        _
      $region60: #{tpu_custom_call.1} parent=11 // pred_fallthru
        _
      // Predicated region
      $region61: #{tpu_custom_call.1} parent=11 // pred_check
        %p676 = pneg %p410
      $region62: #{tpu_custom_call.1} parent=11 // pred_check_branch
        %678 = sbr.rel (%p676) target = $region64
      $region63: #{tpu_custom_call.1} parent=11 // pred_region
        _
      $region64: #{tpu_custom_call.1} parent=11 // pred_fallthru
        _
      // Predicated region
      $region65: #{tpu_custom_call.1} parent=11 // pred_check
        %p679 = pneg %p431
      $region66: #{tpu_custom_call.1} parent=11 // pred_check_branch
        %681 = sbr.rel (%p679) target = $region68
      $region67: #{tpu_custom_call.1} parent=11 // pred_region
        _
      $region68: #{tpu_custom_call.1} parent=11 // pred_fallthru
        _
      // Predicated region
      $region69: #{tpu_custom_call.1} parent=11 // pred_check
        %p682 = pneg %p452
      $region70: #{tpu_custom_call.1} parent=11 // pred_check_branch
        %684 = sbr.rel (%p682) target = $region72
      $region71: #{tpu_custom_call.1} parent=11 // pred_region
        _
      $region72: #{tpu_custom_call.1} parent=11 // pred_fallthru
        _
      // Predicated region
      $region73: #{tpu_custom_call.1} parent=11 // pred_check
        %p685 = pneg %p473
      $region74: #{tpu_custom_call.1} parent=11 // pred_check_branch
        %687 = sbr.rel (%p685) target = $region76
      $region75: #{tpu_custom_call.1} parent=11 // pred_region
        _
      $region76: #{tpu_custom_call.1} parent=11 // pred_fallthru
        _
      // Predicated region
      $region77: #{tpu_custom_call.1} parent=11 // pred_check
        %p688 = pneg %p494
      $region78: #{tpu_custom_call.1} parent=11 // pred_check_branch
        %690 = sbr.rel (%p688) target = $region80
      $region79: #{tpu_custom_call.1} parent=11 // pred_region
        _
      $region80: #{tpu_custom_call.1} parent=11 // pred_fallthru
        _
      // Predicated region
      $region81: #{tpu_custom_call.1} parent=11 // pred_check
        %p691 = pneg %p515
      $region82: #{tpu_custom_call.1} parent=11 // pred_check_branch
        %693 = sbr.rel (%p691) target = $region84
      $region83: #{tpu_custom_call.1} parent=11 // pred_region
        _
      $region84: #{tpu_custom_call.1} parent=11 // pred_fallthru
        _
      // Predicated region
      $region85: #{tpu_custom_call.1} parent=11 // pred_check
        %p694 = pneg %p536
      $region86: #{tpu_custom_call.1} parent=11 // pred_check_branch
        %696 = sbr.rel (%p694) target = $region88
      $region87: #{tpu_custom_call.1} parent=11 // pred_region
        _
      $region88: #{tpu_custom_call.1} parent=11 // pred_fallthru
        _
      // Predicated region
      $region89: #{tpu_custom_call.1} parent=11 // pred_check
        %p697 = pneg %p557
      $region90: #{tpu_custom_call.1} parent=11 // pred_check_branch
        %699 = sbr.rel (%p697) target = $region92
      $region91: #{tpu_custom_call.1} parent=11 // pred_region
        _
      $region92: #{tpu_custom_call.1} parent=11 // pred_fallthru
        _
      // Predicated region
      $region93: #{tpu_custom_call.1} parent=11 // pred_check
        %p700 = pneg %p578
      $region94: #{tpu_custom_call.1} parent=11 // pred_check_branch
        %702 = sbr.rel (%p700) target = $region96
      $region95: #{tpu_custom_call.1} parent=11 // pred_region
        _
      $region96: #{tpu_custom_call.1} parent=11 // pred_fallthru
        _
    $region12: #{tpu_custom_call.1} parent=5 // pred_fallthru
      _
    %p703 = scmp.lt.s32.totalorder %s33, 2
    // Predicated region
    $region97: #{tpu_custom_call.1} parent=5 // pred_check
      %p704 = pneg %p703
    $region98: #{tpu_custom_call.1} parent=5 // pred_check_branch
      %706 = sbr.rel (%p704) target = $region100
    $region99: #{tpu_custom_call.1} parent=5 // pred_region
      // Predicated region
      $region101: #{tpu_custom_call.1} parent=99 // pred_check
        %p707 = pneg %p53
      $region102: #{tpu_custom_call.1} parent=99 // pred_check_branch
        %709 = sbr.rel (%p707) target = $region104
      $region103: #{tpu_custom_call.1} parent=99 // pred_region
        %s710 = smul.u32 16, %s33
        %p711 = scmp.lt.s32.totalorder %s710, 31
        %s712 = scalar_select %p711, %s710, 31
        %s713 = smul.addr %s712, 8
        %s714 = scalar_lea.vmem %s0, %s713
        %s715 = smul.u32 16, %s33
      $region104: #{tpu_custom_call.1} parent=99 // pred_fallthru
        _
      // Predicated region
      $region105: #{tpu_custom_call.1} parent=99 // pred_check
        %p716 = pneg %p79
      $region106: #{tpu_custom_call.1} parent=99 // pred_check_branch
        %718 = sbr.rel (%p716) target = $region108
      $region107: #{tpu_custom_call.1} parent=99 // pred_region
        %s719 = smul.u32 16, %s33
        %p720 = scmp.lt.s32.totalorder %s719, 31
        %s721 = scalar_select %p720, %s719, 31
        %s722 = smul.addr %s721, 8
        %s723 = scalar_lea.vmem %s1, %s722
        %s724 = smul.u32 16, %s33
      $region108: #{tpu_custom_call.1} parent=99 // pred_fallthru
        _
      // Predicated region
      $region109: #{tpu_custom_call.1} parent=99 // pred_check
        %p725 = pneg %p105
      $region110: #{tpu_custom_call.1} parent=99 // pred_check_branch
        %727 = sbr.rel (%p725) target = $region112
      $region111: #{tpu_custom_call.1} parent=99 // pred_region
        %s728 = smul.u32 16, %s33
        %p729 = scmp.lt.s32.totalorder %s728, 31
        %s730 = scalar_select %p729, %s728, 31
        %s731 = smul.addr %s730, 8
        %s732 = scalar_lea.vmem %s2, %s731
        %s733 = smul.u32 16, %s33
      $region112: #{tpu_custom_call.1} parent=99 // pred_fallthru
        _
      // Predicated region
      $region113: #{tpu_custom_call.1} parent=99 // pred_check
        %p734 = pneg %p131
      $region114: #{tpu_custom_call.1} parent=99 // pred_check_branch
        %736 = sbr.rel (%p734) target = $region116
      $region115: #{tpu_custom_call.1} parent=99 // pred_region
        %s737 = smul.u32 16, %s33
        %p738 = scmp.lt.s32.totalorder %s737, 31
        %s739 = scalar_select %p738, %s737, 31
        %s740 = smul.addr %s739, 8
        %s741 = scalar_lea.vmem %s3, %s740
        %s742 = smul.u32 16, %s33
      $region116: #{tpu_custom_call.1} parent=99 // pred_fallthru
        _
    $region100: #{tpu_custom_call.1} parent=5 // pred_fallthru
      _
    %p743 = scmp.le.s32.totalorder 1, %s33
    %p744 = scmp.lt.s32.totalorder %s33, 3
    %p745 = pnand %p743, %p744
    %p746 = pneg %p745
    // Predicated region
    $region117: #{tpu_custom_call.1} parent=5 // pred_check
      _
    $region118: #{tpu_custom_call.1} parent=5 // pred_check_branch
      %748 = sbr.rel (%p745) target = $region120
    $region119: #{tpu_custom_call.1} parent=5 // pred_region
      %s749 = ssub.s32 %s33, 1
      %s750 = smul.u32 16, %s38
      %p751 = scmp.lt.s32.totalorder %s750, 31
      %s752 = scalar_select %p751, %s750, 31
      %s753 = smul.addr %s752, 8
      %s754 = scalar_lea.vmem %s0, %s753
      %p755 = pneg %p59
      %p756 = pneg %p56
      %s757 = smul.u32 16, %s38
      %p758 = scmp.lt.s32.totalorder %s757, 31
      %s759 = scalar_select %p758, %s757, 31
      %s760 = smul.addr %s759, 8
      %s761 = scalar_lea.vmem %s1, %s760
      %p762 = pneg %p85
      %p763 = pneg %p82
      %s764 = smul.u32 16, %s38
      %p765 = scmp.lt.s32.totalorder %s764, 31
      %s766 = scalar_select %p765, %s764, 31
      %s767 = smul.addr %s766, 8
      %s768 = scalar_lea.vmem %s2, %s767
      %p769 = pneg %p111
      %p770 = pneg %p108
      %s771 = smul.u32 16, %s38
      %p772 = scmp.lt.s32.totalorder %s771, 31
      %s773 = scalar_select %p772, %s771, 31
      %s774 = smul.addr %s773, 8
      %s775 = scalar_lea.vmem %s3, %s774
      %p776 = pneg %p137
      %p777 = pneg %p134
      %p778 = pneg %p158
      %p779 = pneg %p155
      %p780 = pneg %p179
      %p781 = pneg %p176
      %p782 = pneg %p200
      %p783 = pneg %p197
      %p784 = pneg %p221
      %p785 = pneg %p218
      %p786 = pneg %p242
      %p787 = pneg %p239
      %p788 = pneg %p263
      %p789 = pneg %p260
      %p790 = pneg %p284
      %p791 = pneg %p281
      %p792 = pneg %p305
      %p793 = pneg %p302
      %p794 = pneg %p326
      %p795 = pneg %p323
      %p796 = pneg %p347
      %p797 = pneg %p344
      %p798 = pneg %p368
      %p799 = pneg %p365
      %p800 = pneg %p389
      %p801 = pneg %p386
      %p802 = pneg %p410
      %p803 = pneg %p407
      %p804 = pneg %p431
      %p805 = pneg %p428
      %p806 = pneg %p452
      %p807 = pneg %p449
      %p808 = pneg %p473
      %p809 = pneg %p470
      %p810 = pneg %p494
      %p811 = pneg %p491
      %p812 = pneg %p515
      %p813 = pneg %p512
      %p814 = pneg %p536
      %p815 = pneg %p533
      %p816 = pneg %p557
      %p817 = pneg %p554
      %p818 = pneg %p578
      %p819 = pneg %p575
      %p820 = pneg %p604
      %p821 = pneg %p601
      %s822 = smul.u32 16, %s38
      %p823 = scmp.lt.s32.totalorder %s822, 31
      %s824 = scalar_select %p823, %s822, 31
      %s825 = smul.addr %s824, 8
      %s826 = scalar_lea.vmem %s25, %s825
      %p827 = pneg %p625
      %p828 = pneg %p622
      %s829 = smul.u32 16, %s38
      %p830 = scmp.lt.s32.totalorder %s829, 31
      %s831 = scalar_select %p830, %s829, 31
      %s832 = smul.addr %s831, 8
      %s833 = scalar_lea.vmem %s0, %s832
      %s834 = smul.u32 16, %s38
      %s835 = smul.u32 16, %s38
      %p836 = scmp.lt.s32.totalorder %s835, 31
      %s837 = scalar_select %p836, %s835, 31
      %s838 = smul.addr %s837, 8
      %s839 = scalar_lea.vmem %s1, %s838
      %s840 = smul.u32 16, %s38
      %s841 = smul.u32 16, %s38
      %p842 = scmp.lt.s32.totalorder %s841, 31
      %s843 = scalar_select %p842, %s841, 31
      %s844 = smul.addr %s843, 8
      %s845 = scalar_lea.vmem %s2, %s844
      %s846 = smul.u32 16, %s38
      %s847 = smul.u32 16, %s38
      %p848 = scmp.lt.s32.totalorder %s847, 31
      %s849 = scalar_select %p848, %s847, 31
      %s850 = smul.addr %s849, 8
      %s851 = scalar_lea.vmem %s3, %s850
      %s852 = smul.u32 16, %s38
      %s853 = smul.u32 16, %s38
      %p854 = scmp.lt.s32.totalorder %s853, 31
      %s855 = scalar_select %p854, %s853, 31
      %s856 = smul.addr %s855, 8
      %s857 = scalar_lea.vmem %s25, %s856
      %s858 = smul.u32 16, %s38
      %p860 = scmp.eq.s32.totalorder %s38, 0
      // Predicated region
      $region121: #{tpu_custom_call.1} parent=119 // pred_check
        %p861 = pneg %p860
      $region122: #{tpu_custom_call.1} parent=119 // pred_check_branch
        %863 = sbr.rel (%p861) target = $region124
      $region123: #{tpu_custom_call.1} parent=119 // pred_region
        %vm864 = vcmask 64512
        %865 = vst.msk [vmem:[#allocation2] sm:$0xff] %vm864, 0.0
        %866 = vst.msk [vmem:[#allocation2 + $0x8] sm:$0xff] %vm864, 0.0
      $region124: #{tpu_custom_call.1} parent=119 // pred_fallthru
        _
      %v867 = vld [vmem:[%s845] sm:$0xff]
      %v868 = vld [vmem:[%s845 + $0x8] sm:$0xff]
      %v869 = vld [vmem:[%s845 + $0x10] sm:$0xff]
      %v870 = vld [vmem:[%s845 + $0x18] sm:$0xff]
      %v871 = vld [vmem:[%s845 + $0x20] sm:$0xff]
      %v872 = vld [vmem:[%s845 + $0x28] sm:$0xff]
      %v873 = vld [vmem:[%s845 + $0x30] sm:$0xff]
      %v874 = vld [vmem:[%s845 + $0x38] sm:$0xff]
      %v875 = vld [vmem:[%s845 + $0x40] sm:$0xff]
      %v876 = vld [vmem:[%s845 + $0x48] sm:$0xff]
      %v877 = vld [vmem:[%s845 + $0x50] sm:$0xff]
      %v878 = vld [vmem:[%s845 + $0x58] sm:$0xff]
      %v879 = vld [vmem:[%s845 + $0x60] sm:$0xff]
      %v880 = vld [vmem:[%s845 + $0x68] sm:$0xff]
      %v881 = vld [vmem:[%s845 + $0x70] sm:$0xff]
      %v882 = vld [vmem:[%s845 + $0x78] sm:$0xff]
      %v883 = vld [vmem:[%s833] sm:$0xff]
      %v884 = vld [vmem:[%s833 + $0x8] sm:$0xff]
      %v885 = vld [vmem:[%s833 + $0x10] sm:$0xff]
      %v886 = vld [vmem:[%s833 + $0x18] sm:$0xff]
      %v887 = vld [vmem:[%s833 + $0x20] sm:$0xff]
      %v888 = vld [vmem:[%s833 + $0x28] sm:$0xff]
      %v889 = vld [vmem:[%s833 + $0x30] sm:$0xff]
      %v890 = vld [vmem:[%s833 + $0x38] sm:$0xff]
      %v891 = vld [vmem:[%s833 + $0x40] sm:$0xff]
      %v892 = vld [vmem:[%s833 + $0x48] sm:$0xff]
      %v893 = vld [vmem:[%s833 + $0x50] sm:$0xff]
      %v894 = vld [vmem:[%s833 + $0x58] sm:$0xff]
      %v895 = vld [vmem:[%s833 + $0x60] sm:$0xff]
      %v896 = vld [vmem:[%s833 + $0x68] sm:$0xff]
      %v897 = vld [vmem:[%s833 + $0x70] sm:$0xff]
      %v898 = vld [vmem:[%s833 + $0x78] sm:$0xff]
      %v899 = vpack.c.bf16 %v884, %v883
      %v900 = vpack.c.bf16 %v886, %v885
      %v901 = vpack.c.bf16 %v888, %v887
      %v902 = vpack.c.bf16 %v890, %v889
      %v903 = vpack.c.bf16 %v892, %v891
      %v904 = vpack.c.bf16 %v894, %v893
      %v905 = vpack.c.bf16 %v896, %v895
      %v906 = vpack.c.bf16 %v898, %v897
      %v907 = vld [vmem:[%s6] sm:$0xf]
      %v908 = vld [vmem:[%s839] sm:$0xff]
      %v909 = vld [vmem:[%s839 + $0x8] sm:$0xff]
      %v910 = vld [vmem:[%s839 + $0x10] sm:$0xff]
      %v911 = vld [vmem:[%s839 + $0x18] sm:$0xff]
      %v912 = vld [vmem:[%s839 + $0x20] sm:$0xff]
      %v913 = vld [vmem:[%s839 + $0x28] sm:$0xff]
      %v914 = vld [vmem:[%s839 + $0x30] sm:$0xff]
      %v915 = vld [vmem:[%s839 + $0x38] sm:$0xff]
      %v916 = vld [vmem:[%s839 + $0x40] sm:$0xff]
      %v917 = vld [vmem:[%s839 + $0x48] sm:$0xff]
      %v918 = vld [vmem:[%s839 + $0x50] sm:$0xff]
      %v919 = vld [vmem:[%s839 + $0x58] sm:$0xff]
      %v920 = vld [vmem:[%s839 + $0x60] sm:$0xff]
      %v921 = vld [vmem:[%s839 + $0x68] sm:$0xff]
      %v922 = vld [vmem:[%s839 + $0x70] sm:$0xff]
      %v923 = vld [vmem:[%s839 + $0x78] sm:$0xff]
      %v924 = vpack.c.bf16 %v909, %v908
      %v925 = vpack.c.bf16 %v911, %v910
      %v926 = vpack.c.bf16 %v913, %v912
      %v927 = vpack.c.bf16 %v915, %v914
      %v928 = vpack.c.bf16 %v917, %v916
      %v929 = vpack.c.bf16 %v919, %v918
      %v930 = vpack.c.bf16 %v921, %v920
      %v931 = vpack.c.bf16 %v923, %v922
      %v932 = vld [vmem:[%s7] sm:$0xf]
      %vm933 = vcmask 64512
      %v935 = vsel %vm933, %v924, 0
      %v938 = vsel %vm933, %v925, 0
      %v941 = vsel %vm933, %v926, 0
      %v944 = vsel %vm933, %v927, 0
      %v947 = vsel %vm933, %v928, 0
      %v950 = vsel %vm933, %v929, 0
      %v953 = vsel %vm933, %v930, 0
      %v956 = vsel %vm933, %v931, 0
      %vm958 = vcmask 1043456
      %v960 = vsel %vm958, %v932, 0
      %962 = vmatprep.subr.bf16.mxu0 0
      %963 = vmatpush1.bf16.msra.mxu0 %v960
      %964 = vmatprep.subr.bf16.mxu0 0
      %965 = vmatpush1.bf16.msra.mxu0 0
      %966 = vmatprep.subr.bf16.mxu0 0
      %967 = vmatpush1.bf16.msra.mxu0 0
      %968 = vmatprep.subr.bf16.mxu0 0
      %969 = vmatpush1.bf16.msra.mxu0 0
      %970 = vmatprep.subr.bf16.mxu0 0
      %971 = vmatpush1.bf16.msra.mxu0 0
      %972 = vmatprep.subr.bf16.mxu0 0
      %973 = vmatpush1.bf16.msra.mxu0 0
      %974 = vmatprep.subr.bf16.mxu0 0
      %975 = vmatpush1.bf16.msra.mxu0 0
      %976 = vmatprep.subr.bf16.mxu0 0
      %977 = vmatpush1.bf16.msra.mxu0 0
      %978 = vmatprep.subr.bf16.mxu0 0
      %979 = vmatpush1.bf16.msra.mxu0 0
      %980 = vmatprep.subr.bf16.mxu0 0
      %981 = vmatpush1.bf16.msra.mxu0 0
      %982 = vmatprep.subr.bf16.mxu0 0
      %983 = vmatpush1.bf16.msra.mxu0 0
      %984 = vmatprep.subr.bf16.mxu0 0
      %985 = vmatpush1.bf16.msra.mxu0 0
      %986 = vmatprep.subr.bf16.mxu0 0
      %987 = vmatpush1.bf16.msra.mxu0 0
      %988 = vmatprep.subr.bf16.mxu0 0
      %989 = vmatpush1.bf16.msra.mxu0 0
      %990 = vmatprep.subr.bf16.mxu0 0
      %991 = vmatpush1.bf16.msra.mxu0 0
      %992 = vmatprep.subr.bf16.mxu0 0
      %993 = vmatpush1.bf16.msra.mxu0 0
      %994 = vmatprep.mubr.bf16.mxu0 0
      %995 = vmatmul.mubr.bf16.gmra.mrb[0].mxu0 %v935
      %v996 = vpop.f32.mrb[0].mxu0
      %v997 = vadd.f32 0.0, %v996
      %v998 = vpop.f32.mrb[0].mxu0
      %v999 = vpop.f32.mrb[0].mxu0
      %v1000 = vadd.f32 0.0, %v999
      %v1001 = vpop.f32.mrb[0].mxu0
      %1002 = vmatprep.mubr.bf16.mxu0 0
      %1003 = vmatmul.mubr.bf16.gmra.mrb[0].mxu0 %v938
      %v1004 = vpop.f32.mrb[0].mxu0
      %v1005 = vadd.f32 0.0, %v1004
      %v1006 = vpop.f32.mrb[0].mxu0
      %v1007 = vpop.f32.mrb[0].mxu0
      %v1008 = vadd.f32 0.0, %v1007
      %v1009 = vpop.f32.mrb[0].mxu0
      %1010 = vmatprep.mubr.bf16.mxu0 0
      %1011 = vmatmul.mubr.bf16.gmra.mrb[0].mxu0 %v941
      %v1012 = vpop.f32.mrb[0].mxu0
      %v1013 = vadd.f32 0.0, %v1012
      %v1014 = vpop.f32.mrb[0].mxu0
      %v1015 = vpop.f32.mrb[0].mxu0
      %v1016 = vadd.f32 0.0, %v1015
      %v1017 = vpop.f32.mrb[0].mxu0
      %1018 = vmatprep.mubr.bf16.mxu0 0
      %1019 = vmatmul.mubr.bf16.gmra.mrb[0].mxu0 %v944
      %v1020 = vpop.f32.mrb[0].mxu0
      %v1021 = vadd.f32 0.0, %v1020
      %v1022 = vpop.f32.mrb[0].mxu0
      %v1023 = vpop.f32.mrb[0].mxu0
      %v1024 = vadd.f32 0.0, %v1023
      %v1025 = vpop.f32.mrb[0].mxu0
      %1026 = vmatprep.mubr.bf16.mxu0 0
      %1027 = vmatmul.mubr.bf16.gmra.mrb[0].mxu0 %v947
      %v1028 = vpop.f32.mrb[0].mxu0
      %v1029 = vadd.f32 0.0, %v1028
      %v1030 = vpop.f32.mrb[0].mxu0
      %v1031 = vpop.f32.mrb[0].mxu0
      %v1032 = vadd.f32 0.0, %v1031
      %v1033 = vpop.f32.mrb[0].mxu0
      %1034 = vmatprep.mubr.bf16.mxu0 0
      %1035 = vmatmul.mubr.bf16.gmra.mrb[0].mxu0 %v950
      %v1036 = vpop.f32.mrb[0].mxu0
      %v1037 = vadd.f32 0.0, %v1036
      %v1038 = vpop.f32.mrb[0].mxu0
      %v1039 = vpop.f32.mrb[0].mxu0
      %v1040 = vadd.f32 0.0, %v1039
      %v1041 = vpop.f32.mrb[0].mxu0
      %1042 = vmatprep.mubr.bf16.mxu0 0
      %1043 = vmatmul.mubr.bf16.gmra.mrb[0].mxu0 %v953
      %v1044 = vpop.f32.mrb[0].mxu0
      %v1045 = vadd.f32 0.0, %v1044
      %v1046 = vpop.f32.mrb[0].mxu0
      %v1047 = vpop.f32.mrb[0].mxu0
      %v1048 = vadd.f32 0.0, %v1047
      %v1049 = vpop.f32.mrb[0].mxu0
      %1050 = vmatprep.mubr.bf16.mxu0 0
      %1051 = vmatmul.mubr.bf16.gmra.mrb[0].mxu0 %v956
      %v1052 = vpop.f32.mrb[0].mxu0
      %v1053 = vadd.f32 0.0, %v1052
      %v1054 = vpop.f32.mrb[0].mxu0
      %v1055 = vpop.f32.mrb[0].mxu0
      %v1056 = vadd.f32 0.0, %v1055
      %v1057 = vpop.f32.mrb[0].mxu0
      %1058 = vdwg.mxu0
      %v1060 = vsel %vm933, %v899, 0
      %v1063 = vsel %vm933, %v900, 0
      %v1066 = vsel %vm933, %v901, 0
      %v1069 = vsel %vm933, %v902, 0
      %v1072 = vsel %vm933, %v903, 0
      %v1075 = vsel %vm933, %v904, 0
      %v1078 = vsel %vm933, %v905, 0
      %v1081 = vsel %vm933, %v906, 0
      %v1084 = vsel %vm958, %v907, 0
      %1086 = vmatprep.subr.bf16.mxu0 0
      %1087 = vmatpush1.bf16.msra.mxu0 %v1084
      %1088 = vmatprep.subr.bf16.mxu0 0
      %1089 = vmatpush1.bf16.msra.mxu0 0
      %1090 = vmatprep.subr.bf16.mxu0 0
      %1091 = vmatpush1.bf16.msra.mxu0 0
      %1092 = vmatprep.subr.bf16.mxu0 0
      %1093 = vmatpush1.bf16.msra.mxu0 0
      %1094 = vmatprep.subr.bf16.mxu0 0
      %1095 = vmatpush1.bf16.msra.mxu0 0
      %1096 = vmatprep.subr.bf16.mxu0 0
      %1097 = vmatpush1.bf16.msra.mxu0 0
      %1098 = vmatprep.subr.bf16.mxu0 0
      %1099 = vmatpush1.bf16.msra.mxu0 0
      %1100 = vmatprep.subr.bf16.mxu0 0
      %1101 = vmatpush1.bf16.msra.mxu0 0
      %1102 = vmatprep.subr.bf16.mxu0 0
      %1103 = vmatpush1.bf16.msra.mxu0 0
      %1104 = vmatprep.subr.bf16.mxu0 0
      %1105 = vmatpush1.bf16.msra.mxu0 0
      %1106 = vmatprep.subr.bf16.mxu0 0
      %1107 = vmatpush1.bf16.msra.mxu0 0
      %1108 = vmatprep.subr.bf16.mxu0 0
      %1109 = vmatpush1.bf16.msra.mxu0 0
      %1110 = vmatprep.subr.bf16.mxu0 0
      %1111 = vmatpush1.bf16.msra.mxu0 0
      %1112 = vmatprep.subr.bf16.mxu0 0
      %1113 = vmatpush1.bf16.msra.mxu0 0
      %1114 = vmatprep.subr.bf16.mxu0 0
      %1115 = vmatpush1.bf16.msra.mxu0 0
      %1116 = vmatprep.subr.bf16.mxu0 0
      %1117 = vmatpush1.bf16.msra.mxu0 0
      %1118 = vmatprep.mubr.bf16.mxu0 0
      %1119 = vmatmul.mubr.bf16.gmra.mrb[0].mxu0 %v1060
      %v1120 = vpop.f32.mrb[0].mxu0
      %v1121 = vadd.f32 %v997, %v1120
      %v1122 = vpop.f32.mrb[0].mxu0
      %v1123 = vpop.f32.mrb[0].mxu0
      %v1124 = vadd.f32 %v1000, %v1123
      %v1125 = vpop.f32.mrb[0].mxu0
      %1126 = vmatprep.mubr.bf16.mxu0 0
      %1127 = vmatmul.mubr.bf16.gmra.mrb[0].mxu0 %v1063
      %v1128 = vpop.f32.mrb[0].mxu0
      %v1129 = vadd.f32 %v1005, %v1128
      %v1130 = vpop.f32.mrb[0].mxu0
      %v1131 = vpop.f32.mrb[0].mxu0
      %v1132 = vadd.f32 %v1008, %v1131
      %v1133 = vpop.f32.mrb[0].mxu0
      %1134 = vmatprep.mubr.bf16.mxu0 0
      %1135 = vmatmul.mubr.bf16.gmra.mrb[0].mxu0 %v1066
      %v1136 = vpop.f32.mrb[0].mxu0
      %v1137 = vadd.f32 %v1013, %v1136
      %v1138 = vpop.f32.mrb[0].mxu0
      %v1139 = vpop.f32.mrb[0].mxu0
      %v1140 = vadd.f32 %v1016, %v1139
      %v1141 = vpop.f32.mrb[0].mxu0
      %1142 = vmatprep.mubr.bf16.mxu0 0
      %1143 = vmatmul.mubr.bf16.gmra.mrb[0].mxu0 %v1069
      %v1144 = vpop.f32.mrb[0].mxu0
      %v1145 = vadd.f32 %v1021, %v1144
      %v1146 = vpop.f32.mrb[0].mxu0
      %v1147 = vpop.f32.mrb[0].mxu0
      %v1148 = vadd.f32 %v1024, %v1147
      %v1149 = vpop.f32.mrb[0].mxu0
      %1150 = vmatprep.mubr.bf16.mxu0 0
      %1151 = vmatmul.mubr.bf16.gmra.mrb[0].mxu0 %v1072
      %v1152 = vpop.f32.mrb[0].mxu0
      %v1153 = vadd.f32 %v1029, %v1152
      %v1154 = vpop.f32.mrb[0].mxu0
      %v1155 = vpop.f32.mrb[0].mxu0
      %v1156 = vadd.f32 %v1032, %v1155
      %v1157 = vpop.f32.mrb[0].mxu0
      %1158 = vmatprep.mubr.bf16.mxu0 0
      %1159 = vmatmul.mubr.bf16.gmra.mrb[0].mxu0 %v1075
      %v1160 = vpop.f32.mrb[0].mxu0
      %v1161 = vadd.f32 %v1037, %v1160
      %v1162 = vpop.f32.mrb[0].mxu0
      %v1163 = vpop.f32.mrb[0].mxu0
      %v1164 = vadd.f32 %v1040, %v1163
      %v1165 = vpop.f32.mrb[0].mxu0
      %1166 = vmatprep.mubr.bf16.mxu0 0
      %1167 = vmatmul.mubr.bf16.gmra.mrb[0].mxu0 %v1078
      %v1168 = vpop.f32.mrb[0].mxu0
      %v1169 = vadd.f32 %v1045, %v1168
      %v1170 = vpop.f32.mrb[0].mxu0
      %v1171 = vpop.f32.mrb[0].mxu0
      %v1172 = vadd.f32 %v1048, %v1171
      %v1173 = vpop.f32.mrb[0].mxu0
      %1174 = vmatprep.mubr.bf16.mxu0 0
      %1175 = vmatmul.mubr.bf16.gmra.mrb[0].mxu0 %v1081
      %v1176 = vpop.f32.mrb[0].mxu0
      %v1177 = vadd.f32 %v1053, %v1176
      %v1178 = vpop.f32.mrb[0].mxu0
      %v1179 = vpop.f32.mrb[0].mxu0
      %v1180 = vadd.f32 %v1056, %v1179
      %v1181 = vpop.f32.mrb[0].mxu0
      %1182 = vdwg.mxu0
      %v1183 = vpack.c.bf16 %v868, %v867
      %v1184 = vpack.c.bf16 %v870, %v869
      %v1185 = vpack.c.bf16 %v872, %v871
      %v1186 = vpack.c.bf16 %v874, %v873
      %v1187 = vpack.c.bf16 %v876, %v875
      %v1188 = vpack.c.bf16 %v878, %v877
      %v1189 = vpack.c.bf16 %v880, %v879
      %v1190 = vpack.c.bf16 %v882, %v881
      %v1191 = vld [vmem:[%s8] sm:$0xf]
      %v1192 = vld [vmem:[%s8 + $0x4] sm:$0xf]
      %v1195 = vunpack.c.l.b16 %v1191
      %v1196 = vunpack.c.l.b16 %v1192
      %v1197 = vpack.c.b16 %v1196, %v1195
      %vm1199 = vcmask 130048
      %v1201 = vsel %vm1199, %v1183, 0
      %v1204 = vsel %vm1199, %v1184, 0
      %v1207 = vsel %vm1199, %v1185, 0
      %v1210 = vsel %vm1199, %v1186, 0
      %v1213 = vsel %vm1199, %v1187, 0
      %v1216 = vsel %vm1199, %v1188, 0
      %v1219 = vsel %vm1199, %v1189, 0
      %v1222 = vsel %vm1199, %v1190, 0
      %1224 = vmatprep.subr.bf16.mxu0 0
      %1225 = vmatpush1.bf16.msra.mxu0 %v1197
      %1226 = vmatprep.subr.bf16.mxu0 0
      %1227 = vmatpush1.bf16.msra.mxu0 0
      %1228 = vmatprep.subr.bf16.mxu0 0
      %1229 = vmatpush1.bf16.msra.mxu0 0
      %1230 = vmatprep.subr.bf16.mxu0 0
      %1231 = vmatpush1.bf16.msra.mxu0 0
      %1232 = vmatprep.subr.bf16.mxu0 0
      %1233 = vmatpush1.bf16.msra.mxu0 0
      %1234 = vmatprep.subr.bf16.mxu0 0
      %1235 = vmatpush1.bf16.msra.mxu0 0
      %1236 = vmatprep.subr.bf16.mxu0 0
      %1237 = vmatpush1.bf16.msra.mxu0 0
      %1238 = vmatprep.subr.bf16.mxu0 0
      %1239 = vmatpush1.bf16.msra.mxu0 0
      %1240 = vmatprep.subr.bf16.mxu0 0
      %1241 = vmatpush1.bf16.msra.mxu0 0
      %1242 = vmatprep.subr.bf16.mxu0 0
      %1243 = vmatpush1.bf16.msra.mxu0 0
      %1244 = vmatprep.subr.bf16.mxu0 0
      %1245 = vmatpush1.bf16.msra.mxu0 0
      %1246 = vmatprep.subr.bf16.mxu0 0
      %1247 = vmatpush1.bf16.msra.mxu0 0
      %1248 = vmatprep.subr.bf16.mxu0 0
      %1249 = vmatpush1.bf16.msra.mxu0 0
      %1250 = vmatprep.subr.bf16.mxu0 0
      %1251 = vmatpush1.bf16.msra.mxu0 0
      %1252 = vmatprep.subr.bf16.mxu0 0
      %1253 = vmatpush1.bf16.msra.mxu0 0
      %1254 = vmatprep.subr.bf16.mxu0 0
      %1255 = vmatpush1.bf16.msra.mxu0 0
      %1256 = vmatprep.mubr.bf16.mxu0 0
      %1257 = vmatmul.mubr.bf16.gmra.mrb[0].mxu0 %v1201
      %v1258 = vpop.f32.mrb[0].mxu0
      %v1259 = vadd.f32 0.0, %v1258
      %v1260 = vpop.f32.mrb[0].mxu0
      %v1261 = vpop.f32.mrb[0].mxu0
      %v1262 = vadd.f32 0.0, %v1261
      %v1263 = vpop.f32.mrb[0].mxu0
      %1264 = vmatprep.mubr.bf16.mxu0 0
      %1265 = vmatmul.mubr.bf16.gmra.mrb[0].mxu0 %v1204
      %v1266 = vpop.f32.mrb[0].mxu0
      %v1267 = vadd.f32 0.0, %v1266
      %v1268 = vpop.f32.mrb[0].mxu0
      %v1269 = vpop.f32.mrb[0].mxu0
      %v1270 = vadd.f32 0.0, %v1269
      %v1271 = vpop.f32.mrb[0].mxu0
      %1272 = vmatprep.mubr.bf16.mxu0 0
      %1273 = vmatmul.mubr.bf16.gmra.mrb[0].mxu0 %v1207
      %v1274 = vpop.f32.mrb[0].mxu0
      %v1275 = vadd.f32 0.0, %v1274
      %v1276 = vpop.f32.mrb[0].mxu0
      %v1277 = vpop.f32.mrb[0].mxu0
      %v1278 = vadd.f32 0.0, %v1277
      %v1279 = vpop.f32.mrb[0].mxu0
      %1280 = vmatprep.mubr.bf16.mxu0 0
      %1281 = vmatmul.mubr.bf16.gmra.mrb[0].mxu0 %v1210
      %v1282 = vpop.f32.mrb[0].mxu0
      %v1283 = vadd.f32 0.0, %v1282
      %v1284 = vpop.f32.mrb[0].mxu0
      %v1285 = vpop.f32.mrb[0].mxu0
      %v1286 = vadd.f32 0.0, %v1285
      %v1287 = vpop.f32.mrb[0].mxu0
      %1288 = vmatprep.mubr.bf16.mxu0 0
      %1289 = vmatmul.mubr.bf16.gmra.mrb[0].mxu0 %v1213
      %v1290 = vpop.f32.mrb[0].mxu0
      %v1291 = vadd.f32 0.0, %v1290
      %v1292 = vpop.f32.mrb[0].mxu0
      %v1293 = vpop.f32.mrb[0].mxu0
      %v1294 = vadd.f32 0.0, %v1293
      %v1295 = vpop.f32.mrb[0].mxu0
      %1296 = vmatprep.mubr.bf16.mxu0 0
      %1297 = vmatmul.mubr.bf16.gmra.mrb[0].mxu0 %v1216
      %v1298 = vpop.f32.mrb[0].mxu0
      %v1299 = vadd.f32 0.0, %v1298
      %v1300 = vpop.f32.mrb[0].mxu0
      %v1301 = vpop.f32.mrb[0].mxu0
      %v1302 = vadd.f32 0.0, %v1301
      %v1303 = vpop.f32.mrb[0].mxu0
      %1304 = vmatprep.mubr.bf16.mxu0 0
      %1305 = vmatmul.mubr.bf16.gmra.mrb[0].mxu0 %v1219
      %v1306 = vpop.f32.mrb[0].mxu0
      %v1307 = vadd.f32 0.0, %v1306
      %v1308 = vpop.f32.mrb[0].mxu0
      %v1309 = vpop.f32.mrb[0].mxu0
      %v1310 = vadd.f32 0.0, %v1309
      %v1311 = vpop.f32.mrb[0].mxu0
      %1312 = vmatprep.mubr.bf16.mxu0 0
      %1313 = vmatmul.mubr.bf16.gmra.mrb[0].mxu0 %v1222
      %v1314 = vpop.f32.mrb[0].mxu0
      %v1315 = vadd.f32 0.0, %v1314
      %v1316 = vpop.f32.mrb[0].mxu0
      %v1317 = vpop.f32.mrb[0].mxu0
      %v1318 = vadd.f32 0.0, %v1317
      %v1319 = vpop.f32.mrb[0].mxu0
      %1320 = vdwg.mxu0
      %v1321 = vadd.f32 %v1121, %v1259
      %v1322 = vadd.f32 %v1124, %v1262
      %v1323 = vadd.f32 %v1129, %v1267
      %v1324 = vadd.f32 %v1132, %v1270
      %v1325 = vadd.f32 %v1137, %v1275
      %v1326 = vadd.f32 %v1140, %v1278
      %v1327 = vadd.f32 %v1145, %v1283
      %v1328 = vadd.f32 %v1148, %v1286
      %v1329 = vadd.f32 %v1153, %v1291
      %v1330 = vadd.f32 %v1156, %v1294
      %v1331 = vadd.f32 %v1161, %v1299
      %v1332 = vadd.f32 %v1164, %v1302
      %v1333 = vadd.f32 %v1169, %v1307
      %v1334 = vadd.f32 %v1172, %v1310
      %v1335 = vadd.f32 %v1177, %v1315
      %v1336 = vadd.f32 %v1180, %v1318
      %v1337 = vld [vmem:[%s9] sm:$0x1]
      %v1339 = vlaneseq
      %v1340 = vshrl.u32 %v1339, 7
      %v1341 = vsub.s32 0, %v1340
      %v1342 = vrot.slane %v1337, %v1341
      %v1344 = vadd.f32 %v1321, %v1342
      %v1345 = vadd.f32 %v1322, %v1342
      %v1346 = vadd.f32 %v1323, %v1342
      %v1347 = vadd.f32 %v1324, %v1342
      %v1348 = vadd.f32 %v1325, %v1342
      %v1349 = vadd.f32 %v1326, %v1342
      %v1350 = vadd.f32 %v1327, %v1342
      %v1351 = vadd.f32 %v1328, %v1342
      %v1352 = vadd.f32 %v1329, %v1342
      %v1353 = vadd.f32 %v1330, %v1342
      %v1354 = vadd.f32 %v1331, %v1342
      %v1355 = vadd.f32 %v1332, %v1342
      %v1356 = vadd.f32 %v1333, %v1342
      %v1357 = vadd.f32 %v1334, %v1342
      %v1358 = vadd.f32 %v1335, %v1342
      %v1359 = vadd.f32 %v1336, %v1342
      %v1360 = vxor.u32 %v1344, 2147483648
      %v1361 = vxor.u32 %v1345, 2147483648
      %v1362 = vxor.u32 %v1346, 2147483648
      %v1363 = vxor.u32 %v1347, 2147483648
      %v1364 = vxor.u32 %v1348, 2147483648
      %v1365 = vxor.u32 %v1349, 2147483648
      %v1366 = vxor.u32 %v1350, 2147483648
      %v1367 = vxor.u32 %v1351, 2147483648
      %v1368 = vxor.u32 %v1352, 2147483648
      %v1369 = vxor.u32 %v1353, 2147483648
      %v1370 = vxor.u32 %v1354, 2147483648
      %v1371 = vxor.u32 %v1355, 2147483648
      %v1372 = vxor.u32 %v1356, 2147483648
      %v1373 = vxor.u32 %v1357, 2147483648
      %v1374 = vxor.u32 %v1358, 2147483648
      %v1375 = vxor.u32 %v1359, 2147483648
      %v1376 = vmul.f32 %v1360, 1.442695
      %v1377 = vpow.pop %v1376
      %v1378 = vmul.f32 %v1361, 1.442695
      %v1379 = vpow.pop %v1378
      %v1380 = vmul.f32 %v1362, 1.442695
      %v1381 = vpow.pop %v1380
      %v1382 = vmul.f32 %v1363, 1.442695
      %v1383 = vpow.pop %v1382
      %v1384 = vmul.f32 %v1364, 1.442695
      %v1385 = vpow.pop %v1384
      %v1386 = vmul.f32 %v1365, 1.442695
      %v1387 = vpow.pop %v1386
      %v1388 = vmul.f32 %v1366, 1.442695
      %v1389 = vpow.pop %v1388
      %v1390 = vmul.f32 %v1367, 1.442695
      %v1391 = vpow.pop %v1390
      %v1392 = vmul.f32 %v1368, 1.442695
      %v1393 = vpow.pop %v1392
      %v1394 = vmul.f32 %v1369, 1.442695
      %v1395 = vpow.pop %v1394
      %v1396 = vmul.f32 %v1370, 1.442695
      %v1397 = vpow.pop %v1396
      %v1398 = vmul.f32 %v1371, 1.442695
      %v1399 = vpow.pop %v1398
      %v1400 = vmul.f32 %v1372, 1.442695
      %v1401 = vpow.pop %v1400
      %v1402 = vmul.f32 %v1373, 1.442695
      %v1403 = vpow.pop %v1402
      %v1404 = vmul.f32 %v1374, 1.442695
      %v1405 = vpow.pop %v1404
      %v1406 = vmul.f32 %v1375, 1.442695
      %v1407 = vpow.pop %v1406
      %v1408 = vadd.f32 %v1377, 1.0
      %v1409 = vadd.f32 %v1379, 1.0
      %v1410 = vadd.f32 %v1381, 1.0
      %v1411 = vadd.f32 %v1383, 1.0
      %v1412 = vadd.f32 %v1385, 1.0
      %v1413 = vadd.f32 %v1387, 1.0
      %v1414 = vadd.f32 %v1389, 1.0
      %v1415 = vadd.f32 %v1391, 1.0
      %v1416 = vadd.f32 %v1393, 1.0
      %v1417 = vadd.f32 %v1395, 1.0
      %v1418 = vadd.f32 %v1397, 1.0
      %v1419 = vadd.f32 %v1399, 1.0
      %v1420 = vadd.f32 %v1401, 1.0
      %v1421 = vadd.f32 %v1403, 1.0
      %v1422 = vadd.f32 %v1405, 1.0
      %v1423 = vadd.f32 %v1407, 1.0
      %v1424 = vrcp.pop %v1408
      %v1425 = vmul.f32 1.0, %v1424
      %v1426 = vrcp.pop %v1409
      %v1427 = vmul.f32 1.0, %v1426
      %v1428 = vrcp.pop %v1410
      %v1429 = vmul.f32 1.0, %v1428
      %v1430 = vrcp.pop %v1411
      %v1431 = vmul.f32 1.0, %v1430
      %v1432 = vrcp.pop %v1412
      %v1433 = vmul.f32 1.0, %v1432
      %v1434 = vrcp.pop %v1413
      %v1435 = vmul.f32 1.0, %v1434
      %v1436 = vrcp.pop %v1414
      %v1437 = vmul.f32 1.0, %v1436
      %v1438 = vrcp.pop %v1415
      %v1439 = vmul.f32 1.0, %v1438
      %v1440 = vrcp.pop %v1416
      %v1441 = vmul.f32 1.0, %v1440
      %v1442 = vrcp.pop %v1417
      %v1443 = vmul.f32 1.0, %v1442
      %v1444 = vrcp.pop %v1418
      %v1445 = vmul.f32 1.0, %v1444
      %v1446 = vrcp.pop %v1419
      %v1447 = vmul.f32 1.0, %v1446
      %v1448 = vrcp.pop %v1420
      %v1449 = vmul.f32 1.0, %v1448
      %v1450 = vrcp.pop %v1421
      %v1451 = vmul.f32 1.0, %v1450
      %v1452 = vrcp.pop %v1422
      %v1453 = vmul.f32 1.0, %v1452
      %v1454 = vrcp.pop %v1423
      %v1455 = vmul.f32 1.0, %v1454
      %v1456 = vmul.f32 %v1344, %v1425
      %v1457 = vmul.f32 %v1345, %v1427
      %v1458 = vmul.f32 %v1346, %v1429
      %v1459 = vmul.f32 %v1347, %v1431
      %v1460 = vmul.f32 %v1348, %v1433
      %v1461 = vmul.f32 %v1349, %v1435
      %v1462 = vmul.f32 %v1350, %v1437
      %v1463 = vmul.f32 %v1351, %v1439
      %v1464 = vmul.f32 %v1352, %v1441
      %v1465 = vmul.f32 %v1353, %v1443
      %v1466 = vmul.f32 %v1354, %v1445
      %v1467 = vmul.f32 %v1355, %v1447
      %v1468 = vmul.f32 %v1356, %v1449
      %v1469 = vmul.f32 %v1357, %v1451
      %v1470 = vmul.f32 %v1358, %v1453
      %v1471 = vmul.f32 %v1359, %v1455
      %v1472 = vpack.c.bf16 %v1457, %v1456
      %v1473 = vpack.c.bf16 %v1459, %v1458
      %v1474 = vpack.c.bf16 %v1461, %v1460
      %v1475 = vpack.c.bf16 %v1463, %v1462
      %v1476 = vpack.c.bf16 %v1465, %v1464
      %v1477 = vpack.c.bf16 %v1467, %v1466
      %v1478 = vpack.c.bf16 %v1469, %v1468
      %v1479 = vpack.c.bf16 %v1471, %v1470
      %v1480 = vld [vmem:[%s10] sm:$0xf]
      %v1481 = vld [vmem:[%s10 + $0x4] sm:$0xf]
      %v1482 = vld [vmem:[%s10 + $0x8] sm:$0xf]
      %v1483 = vld [vmem:[%s10 + $0xc] sm:$0xf]
      %v1484 = vld [vmem:[%s10 + $0x10] sm:$0xf]
      %v1485 = vld [vmem:[%s10 + $0x14] sm:$0xf]
      %v1486 = vld [vmem:[%s10 + $0x18] sm:$0xf]
      %v1487 = vld [vmem:[%s10 + $0x1c] sm:$0xf]
      %v1488 = vld [vmem:[%s10 + $0x20] sm:$0xf]
      %v1489 = vld [vmem:[%s10 + $0x24] sm:$0xf]
      %v1490 = vld [vmem:[%s10 + $0x28] sm:$0xf]
      %v1491 = vld [vmem:[%s10 + $0x2c] sm:$0xf]
      %v1492 = vld [vmem:[%s10 + $0x30] sm:$0xf]
      %v1493 = vld [vmem:[%s10 + $0x34] sm:$0xf]
      %v1494 = vld [vmem:[%s10 + $0x38] sm:$0xf]
      %v1495 = vld [vmem:[%s10 + $0x3c] sm:$0xf]
      %v1496 = vld [vmem:[%s11] sm:$0x1]
      %v1498 = vlaneseq
      %v1499 = vshrl.u32 %v1498, 7
      %v1500 = vsub.s32 0, %v1499
      %v1501 = vrot.slane %v1496, %v1500
      %v1519 = vunpack.c.l.b16 %v1480
      %v1520 = vunpack.c.l.b16 %v1481
      %v1521 = vunpack.c.l.b16 %v1482
      %v1522 = vunpack.c.l.b16 %v1483
      %v1523 = vunpack.c.l.b16 %v1484
      %v1524 = vunpack.c.l.b16 %v1485
      %v1525 = vunpack.c.l.b16 %v1486
      %v1526 = vunpack.c.l.b16 %v1487
      %v1527 = vunpack.c.l.b16 %v1488
      %v1528 = vunpack.c.l.b16 %v1489
      %v1529 = vunpack.c.l.b16 %v1490
      %v1530 = vunpack.c.l.b16 %v1491
      %v1531 = vunpack.c.l.b16 %v1492
      %v1532 = vunpack.c.l.b16 %v1493
      %v1533 = vunpack.c.l.b16 %v1494
      %v1534 = vunpack.c.l.b16 %v1495
      %v1535 = vpack.c.b16 %v1520, %v1519
      %v1536 = vpack.c.b16 %v1522, %v1521
      %v1537 = vpack.c.b16 %v1524, %v1523
      %v1538 = vpack.c.b16 %v1526, %v1525
      %v1539 = vpack.c.b16 %v1528, %v1527
      %v1540 = vpack.c.b16 %v1530, %v1529
      %v1541 = vpack.c.b16 %v1532, %v1531
      %v1542 = vpack.c.b16 %v1534, %v1533
      %1551 = vmatprep.subr.bf16.mxu0 0
      %1552 = vmatpush1.bf16.msra.mxu0 %v1535
      %1553 = vmatprep.subr.bf16.mxu0 0
      %1554 = vmatpush1.bf16.msra.mxu0 %v1536
      %1555 = vmatprep.subr.bf16.mxu0 0
      %1556 = vmatpush1.bf16.msra.mxu0 %v1537
      %1557 = vmatprep.subr.bf16.mxu0 0
      %1558 = vmatpush1.bf16.msra.mxu0 %v1538
      %1559 = vmatprep.subr.bf16.mxu0 0
      %1560 = vmatpush1.bf16.msra.mxu0 %v1539
      %1561 = vmatprep.subr.bf16.mxu0 0
      %1562 = vmatpush1.bf16.msra.mxu0 %v1540
      %1563 = vmatprep.subr.bf16.mxu0 0
      %1564 = vmatpush1.bf16.msra.mxu0 %v1541
      %1565 = vmatprep.subr.bf16.mxu0 0
      %1566 = vmatpush1.bf16.msra.mxu0 %v1542
      %1567 = vmatprep.subr.bf16.mxu0 0
      %1568 = vmatpush1.bf16.msra.mxu0 0
      %1569 = vmatprep.subr.bf16.mxu0 0
      %1570 = vmatpush1.bf16.msra.mxu0 0
      %1571 = vmatprep.subr.bf16.mxu0 0
      %1572 = vmatpush1.bf16.msra.mxu0 0
      %1573 = vmatprep.subr.bf16.mxu0 0
      %1574 = vmatpush1.bf16.msra.mxu0 0
      %1575 = vmatprep.subr.bf16.mxu0 0
      %1576 = vmatpush1.bf16.msra.mxu0 0
      %1577 = vmatprep.subr.bf16.mxu0 0
      %1578 = vmatpush1.bf16.msra.mxu0 0
      %1579 = vmatprep.subr.bf16.mxu0 0
      %1580 = vmatpush1.bf16.msra.mxu0 0
      %1581 = vmatprep.subr.bf16.mxu0 0
      %1582 = vmatpush1.bf16.msra.mxu0 0
      %1583 = vmatprep.mubr.bf16.mxu0 0
      %1584 = vmatmul.mubr.bf16.gmra.mrb[0].mxu0 %v1472
      %v1585 = vpop.f32.mrb[0].mxu0
      %v1586 = vadd.f32 %v1501, %v1585
      %v1587 = vpop.f32.mrb[0].mxu0
      %v1588 = vpop.f32.mrb[0].mxu0
      %v1589 = vadd.f32 %v1501, %v1588
      %v1590 = vpop.f32.mrb[0].mxu0
      %1591 = vmatprep.mubr.bf16.mxu0 0
      %1592 = vmatmul.mubr.bf16.gmra.mrb[0].mxu0 %v1473
      %v1593 = vpop.f32.mrb[0].mxu0
      %v1594 = vadd.f32 %v1501, %v1593
      %v1595 = vpop.f32.mrb[0].mxu0
      %v1596 = vpop.f32.mrb[0].mxu0
      %v1597 = vadd.f32 %v1501, %v1596
      %v1598 = vpop.f32.mrb[0].mxu0
      %1599 = vmatprep.mubr.bf16.mxu0 0
      %1600 = vmatmul.mubr.bf16.gmra.mrb[0].mxu0 %v1474
      %v1601 = vpop.f32.mrb[0].mxu0
      %v1602 = vadd.f32 %v1501, %v1601
      %v1603 = vpop.f32.mrb[0].mxu0
      %v1604 = vpop.f32.mrb[0].mxu0
      %v1605 = vadd.f32 %v1501, %v1604
      %v1606 = vpop.f32.mrb[0].mxu0
      %1607 = vmatprep.mubr.bf16.mxu0 0
      %1608 = vmatmul.mubr.bf16.gmra.mrb[0].mxu0 %v1475
      %v1609 = vpop.f32.mrb[0].mxu0
      %v1610 = vadd.f32 %v1501, %v1609
      %v1611 = vpop.f32.mrb[0].mxu0
      %v1612 = vpop.f32.mrb[0].mxu0
      %v1613 = vadd.f32 %v1501, %v1612
      %v1614 = vpop.f32.mrb[0].mxu0
      %1615 = vmatprep.mubr.bf16.mxu0 0
      %1616 = vmatmul.mubr.bf16.gmra.mrb[0].mxu0 %v1476
      %v1617 = vpop.f32.mrb[0].mxu0
      %v1618 = vadd.f32 %v1501, %v1617
      %v1619 = vpop.f32.mrb[0].mxu0
      %v1620 = vpop.f32.mrb[0].mxu0
      %v1621 = vadd.f32 %v1501, %v1620
      %v1622 = vpop.f32.mrb[0].mxu0
      %1623 = vmatprep.mubr.bf16.mxu0 0
      %1624 = vmatmul.mubr.bf16.gmra.mrb[0].mxu0 %v1477
      %v1625 = vpop.f32.mrb[0].mxu0
      %v1626 = vadd.f32 %v1501, %v1625
      %v1627 = vpop.f32.mrb[0].mxu0
      %v1628 = vpop.f32.mrb[0].mxu0
      %v1629 = vadd.f32 %v1501, %v1628
      %v1630 = vpop.f32.mrb[0].mxu0
      %1631 = vmatprep.mubr.bf16.mxu0 0
      %1632 = vmatmul.mubr.bf16.gmra.mrb[0].mxu0 %v1478
      %v1633 = vpop.f32.mrb[0].mxu0
      %v1634 = vadd.f32 %v1501, %v1633
      %v1635 = vpop.f32.mrb[0].mxu0
      %v1636 = vpop.f32.mrb[0].mxu0
      %v1637 = vadd.f32 %v1501, %v1636
      %v1638 = vpop.f32.mrb[0].mxu0
      %1639 = vmatprep.mubr.bf16.mxu0 0
      %1640 = vmatmul.mubr.bf16.gmra.mrb[0].mxu0 %v1479
      %v1641 = vpop.f32.mrb[0].mxu0
      %v1642 = vadd.f32 %v1501, %v1641
      %v1643 = vpop.f32.mrb[0].mxu0
      %v1644 = vpop.f32.mrb[0].mxu0
      %v1645 = vadd.f32 %v1501, %v1644
      %v1646 = vpop.f32.mrb[0].mxu0
      %1647 = vdwg.mxu0
      %v1648 = vxor.u32 %v1586, 2147483648
      %v1649 = vxor.u32 %v1589, 2147483648
      %v1650 = vxor.u32 %v1594, 2147483648
      %v1651 = vxor.u32 %v1597, 2147483648
      %v1652 = vxor.u32 %v1602, 2147483648
      %v1653 = vxor.u32 %v1605, 2147483648
      %v1654 = vxor.u32 %v1610, 2147483648
      %v1655 = vxor.u32 %v1613, 2147483648
      %v1656 = vxor.u32 %v1618, 2147483648
      %v1657 = vxor.u32 %v1621, 2147483648
      %v1658 = vxor.u32 %v1626, 2147483648
      %v1659 = vxor.u32 %v1629, 2147483648
      %v1660 = vxor.u32 %v1634, 2147483648
      %v1661 = vxor.u32 %v1637, 2147483648
      %v1662 = vxor.u32 %v1642, 2147483648
      %v1663 = vxor.u32 %v1645, 2147483648
      %v1664 = vmul.f32 %v1648, 1.442695
      %v1665 = vpow.pop %v1664
      %v1666 = vmul.f32 %v1649, 1.442695
      %v1667 = vpow.pop %v1666
      %v1668 = vmul.f32 %v1650, 1.442695
      %v1669 = vpow.pop %v1668
      %v1670 = vmul.f32 %v1651, 1.442695
      %v1671 = vpow.pop %v1670
      %v1672 = vmul.f32 %v1652, 1.442695
      %v1673 = vpow.pop %v1672
      %v1674 = vmul.f32 %v1653, 1.442695
      %v1675 = vpow.pop %v1674
      %v1676 = vmul.f32 %v1654, 1.442695
      %v1677 = vpow.pop %v1676
      %v1678 = vmul.f32 %v1655, 1.442695
      %v1679 = vpow.pop %v1678
      %v1680 = vmul.f32 %v1656, 1.442695
      %v1681 = vpow.pop %v1680
      %v1682 = vmul.f32 %v1657, 1.442695
      %v1683 = vpow.pop %v1682
      %v1684 = vmul.f32 %v1658, 1.442695
      %v1685 = vpow.pop %v1684
      %v1686 = vmul.f32 %v1659, 1.442695
      %v1687 = vpow.pop %v1686
      %v1688 = vmul.f32 %v1660, 1.442695
      %v1689 = vpow.pop %v1688
      %v1690 = vmul.f32 %v1661, 1.442695
      %v1691 = vpow.pop %v1690
      %v1692 = vmul.f32 %v1662, 1.442695
      %v1693 = vpow.pop %v1692
      %v1694 = vmul.f32 %v1663, 1.442695
      %v1695 = vpow.pop %v1694
      %v1696 = vadd.f32 %v1665, 1.0
      %v1697 = vadd.f32 %v1667, 1.0
      %v1698 = vadd.f32 %v1669, 1.0
      %v1699 = vadd.f32 %v1671, 1.0
      %v1700 = vadd.f32 %v1673, 1.0
      %v1701 = vadd.f32 %v1675, 1.0
      %v1702 = vadd.f32 %v1677, 1.0
      %v1703 = vadd.f32 %v1679, 1.0
      %v1704 = vadd.f32 %v1681, 1.0
      %v1705 = vadd.f32 %v1683, 1.0
      %v1706 = vadd.f32 %v1685, 1.0
      %v1707 = vadd.f32 %v1687, 1.0
      %v1708 = vadd.f32 %v1689, 1.0
      %v1709 = vadd.f32 %v1691, 1.0
      %v1710 = vadd.f32 %v1693, 1.0
      %v1711 = vadd.f32 %v1695, 1.0
      %v1712 = vrcp.pop %v1696
      %v1713 = vmul.f32 1.0, %v1712
      %v1714 = vrcp.pop %v1697
      %v1715 = vmul.f32 1.0, %v1714
      %v1716 = vrcp.pop %v1698
      %v1717 = vmul.f32 1.0, %v1716
      %v1718 = vrcp.pop %v1699
      %v1719 = vmul.f32 1.0, %v1718
      %v1720 = vrcp.pop %v1700
      %v1721 = vmul.f32 1.0, %v1720
      %v1722 = vrcp.pop %v1701
      %v1723 = vmul.f32 1.0, %v1722
      %v1724 = vrcp.pop %v1702
      %v1725 = vmul.f32 1.0, %v1724
      %v1726 = vrcp.pop %v1703
      %v1727 = vmul.f32 1.0, %v1726
      %v1728 = vrcp.pop %v1704
      %v1729 = vmul.f32 1.0, %v1728
      %v1730 = vrcp.pop %v1705
      %v1731 = vmul.f32 1.0, %v1730
      %v1732 = vrcp.pop %v1706
      %v1733 = vmul.f32 1.0, %v1732
      %v1734 = vrcp.pop %v1707
      %v1735 = vmul.f32 1.0, %v1734
      %v1736 = vrcp.pop %v1708
      %v1737 = vmul.f32 1.0, %v1736
      %v1738 = vrcp.pop %v1709
      %v1739 = vmul.f32 1.0, %v1738
      %v1740 = vrcp.pop %v1710
      %v1741 = vmul.f32 1.0, %v1740
      %v1742 = vrcp.pop %v1711
      %v1743 = vmul.f32 1.0, %v1742
      %v1744 = vmul.f32 %v1586, %v1713
      %v1745 = vmul.f32 %v1589, %v1715
      %v1746 = vmul.f32 %v1594, %v1717
      %v1747 = vmul.f32 %v1597, %v1719
      %v1748 = vmul.f32 %v1602, %v1721
      %v1749 = vmul.f32 %v1605, %v1723
      %v1750 = vmul.f32 %v1610, %v1725
      %v1751 = vmul.f32 %v1613, %v1727
      %v1752 = vmul.f32 %v1618, %v1729
      %v1753 = vmul.f32 %v1621, %v1731
      %v1754 = vmul.f32 %v1626, %v1733
      %v1755 = vmul.f32 %v1629, %v1735
      %v1756 = vmul.f32 %v1634, %v1737
      %v1757 = vmul.f32 %v1637, %v1739
      %v1758 = vmul.f32 %v1642, %v1741
      %v1759 = vmul.f32 %v1645, %v1743
      %v1760 = vpack.c.bf16 %v1745, %v1744
      %v1761 = vpack.c.bf16 %v1747, %v1746
      %v1762 = vpack.c.bf16 %v1749, %v1748
      %v1763 = vpack.c.bf16 %v1751, %v1750
      %v1764 = vpack.c.bf16 %v1753, %v1752
      %v1765 = vpack.c.bf16 %v1755, %v1754
      %v1766 = vpack.c.bf16 %v1757, %v1756
      %v1767 = vpack.c.bf16 %v1759, %v1758
      %v1768 = vld [vmem:[%s12] sm:$0xf]
      %v1769 = vld [vmem:[%s12 + $0x4] sm:$0xf]
      %v1770 = vld [vmem:[%s12 + $0x8] sm:$0xf]
      %v1771 = vld [vmem:[%s12 + $0xc] sm:$0xf]
      %v1772 = vld [vmem:[%s12 + $0x10] sm:$0xf]
      %v1773 = vld [vmem:[%s12 + $0x14] sm:$0xf]
      %v1774 = vld [vmem:[%s12 + $0x18] sm:$0xf]
      %v1775 = vld [vmem:[%s12 + $0x1c] sm:$0xf]
      %v1776 = vld [vmem:[%s12 + $0x20] sm:$0xf]
      %v1777 = vld [vmem:[%s12 + $0x24] sm:$0xf]
      %v1778 = vld [vmem:[%s12 + $0x28] sm:$0xf]
      %v1779 = vld [vmem:[%s12 + $0x2c] sm:$0xf]
      %v1780 = vld [vmem:[%s12 + $0x30] sm:$0xf]
      %v1781 = vld [vmem:[%s12 + $0x34] sm:$0xf]
      %v1782 = vld [vmem:[%s12 + $0x38] sm:$0xf]
      %v1783 = vld [vmem:[%s12 + $0x3c] sm:$0xf]
      %v1784 = vld [vmem:[%s13] sm:$0x1]
      %v1786 = vlaneseq
      %v1787 = vshrl.u32 %v1786, 7
      %v1788 = vsub.s32 0, %v1787
      %v1789 = vrot.slane %v1784, %v1788
      %v1807 = vunpack.c.l.b16 %v1768
      %v1808 = vunpack.c.l.b16 %v1769
      %v1809 = vunpack.c.l.b16 %v1770
      %v1810 = vunpack.c.l.b16 %v1771
      %v1811 = vunpack.c.l.b16 %v1772
      %v1812 = vunpack.c.l.b16 %v1773
      %v1813 = vunpack.c.l.b16 %v1774
      %v1814 = vunpack.c.l.b16 %v1775
      %v1815 = vunpack.c.l.b16 %v1776
      %v1816 = vunpack.c.l.b16 %v1777
      %v1817 = vunpack.c.l.b16 %v1778
      %v1818 = vunpack.c.l.b16 %v1779
      %v1819 = vunpack.c.l.b16 %v1780
      %v1820 = vunpack.c.l.b16 %v1781
      %v1821 = vunpack.c.l.b16 %v1782
      %v1822 = vunpack.c.l.b16 %v1783
      %v1823 = vpack.c.b16 %v1808, %v1807
      %v1824 = vpack.c.b16 %v1810, %v1809
      %v1825 = vpack.c.b16 %v1812, %v1811
      %v1826 = vpack.c.b16 %v1814, %v1813
      %v1827 = vpack.c.b16 %v1816, %v1815
      %v1828 = vpack.c.b16 %v1818, %v1817
      %v1829 = vpack.c.b16 %v1820, %v1819
      %v1830 = vpack.c.b16 %v1822, %v1821
      %1839 = vmatprep.subr.bf16.mxu0 0
      %1840 = vmatpush1.bf16.msra.mxu0 %v1823
      %1841 = vmatprep.subr.bf16.mxu0 0
      %1842 = vmatpush1.bf16.msra.mxu0 %v1824
      %1843 = vmatprep.subr.bf16.mxu0 0
      %1844 = vmatpush1.bf16.msra.mxu0 %v1825
      %1845 = vmatprep.subr.bf16.mxu0 0
      %1846 = vmatpush1.bf16.msra.mxu0 %v1826
      %1847 = vmatprep.subr.bf16.mxu0 0
      %1848 = vmatpush1.bf16.msra.mxu0 %v1827
      %1849 = vmatprep.subr.bf16.mxu0 0
      %1850 = vmatpush1.bf16.msra.mxu0 %v1828
      %1851 = vmatprep.subr.bf16.mxu0 0
      %1852 = vmatpush1.bf16.msra.mxu0 %v1829
      %1853 = vmatprep.subr.bf16.mxu0 0
      %1854 = vmatpush1.bf16.msra.mxu0 %v1830
      %1855 = vmatprep.subr.bf16.mxu0 0
      %1856 = vmatpush1.bf16.msra.mxu0 0
      %1857 = vmatprep.subr.bf16.mxu0 0
      %1858 = vmatpush1.bf16.msra.mxu0 0
      %1859 = vmatprep.subr.bf16.mxu0 0
      %1860 = vmatpush1.bf16.msra.mxu0 0
      %1861 = vmatprep.subr.bf16.mxu0 0
      %1862 = vmatpush1.bf16.msra.mxu0 0
      %1863 = vmatprep.subr.bf16.mxu0 0
      %1864 = vmatpush1.bf16.msra.mxu0 0
      %1865 = vmatprep.subr.bf16.mxu0 0
      %1866 = vmatpush1.bf16.msra.mxu0 0
      %1867 = vmatprep.subr.bf16.mxu0 0
      %1868 = vmatpush1.bf16.msra.mxu0 0
      %1869 = vmatprep.subr.bf16.mxu0 0
      %1870 = vmatpush1.bf16.msra.mxu0 0
      %1871 = vmatprep.mubr.bf16.mxu0 0
      %1872 = vmatmul.mubr.bf16.gmra.mrb[0].mxu0 %v1760
      %v1873 = vpop.f32.mrb[0].mxu0
      %v1874 = vadd.f32 %v1789, %v1873
      %v1875 = vpop.f32.mrb[0].mxu0
      %v1876 = vpop.f32.mrb[0].mxu0
      %v1877 = vadd.f32 %v1789, %v1876
      %v1878 = vpop.f32.mrb[0].mxu0
      %1879 = vmatprep.mubr.bf16.mxu0 0
      %1880 = vmatmul.mubr.bf16.gmra.mrb[0].mxu0 %v1761
      %v1881 = vpop.f32.mrb[0].mxu0
      %v1882 = vadd.f32 %v1789, %v1881
      %v1883 = vpop.f32.mrb[0].mxu0
      %v1884 = vpop.f32.mrb[0].mxu0
      %v1885 = vadd.f32 %v1789, %v1884
      %v1886 = vpop.f32.mrb[0].mxu0
      %1887 = vmatprep.mubr.bf16.mxu0 0
      %1888 = vmatmul.mubr.bf16.gmra.mrb[0].mxu0 %v1762
      %v1889 = vpop.f32.mrb[0].mxu0
      %v1890 = vadd.f32 %v1789, %v1889
      %v1891 = vpop.f32.mrb[0].mxu0
      %v1892 = vpop.f32.mrb[0].mxu0
      %v1893 = vadd.f32 %v1789, %v1892
      %v1894 = vpop.f32.mrb[0].mxu0
      %1895 = vmatprep.mubr.bf16.mxu0 0
      %1896 = vmatmul.mubr.bf16.gmra.mrb[0].mxu0 %v1763
      %v1897 = vpop.f32.mrb[0].mxu0
      %v1898 = vadd.f32 %v1789, %v1897
      %v1899 = vpop.f32.mrb[0].mxu0
      %v1900 = vpop.f32.mrb[0].mxu0
      %v1901 = vadd.f32 %v1789, %v1900
      %v1902 = vpop.f32.mrb[0].mxu0
      %1903 = vmatprep.mubr.bf16.mxu0 0
      %1904 = vmatmul.mubr.bf16.gmra.mrb[0].mxu0 %v1764
      %v1905 = vpop.f32.mrb[0].mxu0
      %v1906 = vadd.f32 %v1789, %v1905
      %v1907 = vpop.f32.mrb[0].mxu0
      %v1908 = vpop.f32.mrb[0].mxu0
      %v1909 = vadd.f32 %v1789, %v1908
      %v1910 = vpop.f32.mrb[0].mxu0
      %1911 = vmatprep.mubr.bf16.mxu0 0
      %1912 = vmatmul.mubr.bf16.gmra.mrb[0].mxu0 %v1765
      %v1913 = vpop.f32.mrb[0].mxu0
      %v1914 = vadd.f32 %v1789, %v1913
      %v1915 = vpop.f32.mrb[0].mxu0
      %v1916 = vpop.f32.mrb[0].mxu0
      %v1917 = vadd.f32 %v1789, %v1916
      %v1918 = vpop.f32.mrb[0].mxu0
      %1919 = vmatprep.mubr.bf16.mxu0 0
      %1920 = vmatmul.mubr.bf16.gmra.mrb[0].mxu0 %v1766
      %v1921 = vpop.f32.mrb[0].mxu0
      %v1922 = vadd.f32 %v1789, %v1921
      %v1923 = vpop.f32.mrb[0].mxu0
      %v1924 = vpop.f32.mrb[0].mxu0
      %v1925 = vadd.f32 %v1789, %v1924
      %v1926 = vpop.f32.mrb[0].mxu0
      %1927 = vmatprep.mubr.bf16.mxu0 0
      %1928 = vmatmul.mubr.bf16.gmra.mrb[0].mxu0 %v1767
      %v1929 = vpop.f32.mrb[0].mxu0
      %v1930 = vadd.f32 %v1789, %v1929
      %v1931 = vpop.f32.mrb[0].mxu0
      %v1932 = vpop.f32.mrb[0].mxu0
      %v1933 = vadd.f32 %v1789, %v1932
      %v1934 = vpop.f32.mrb[0].mxu0
      %1935 = vdwg.mxu0
      %v1936 = vxor.u32 %v1874, 2147483648
      %v1937 = vxor.u32 %v1877, 2147483648
      %v1938 = vxor.u32 %v1882, 2147483648
      %v1939 = vxor.u32 %v1885, 2147483648
      %v1940 = vxor.u32 %v1890, 2147483648
      %v1941 = vxor.u32 %v1893, 2147483648
      %v1942 = vxor.u32 %v1898, 2147483648
      %v1943 = vxor.u32 %v1901, 2147483648
      %v1944 = vxor.u32 %v1906, 2147483648
      %v1945 = vxor.u32 %v1909, 2147483648
      %v1946 = vxor.u32 %v1914, 2147483648
      %v1947 = vxor.u32 %v1917, 2147483648
      %v1948 = vxor.u32 %v1922, 2147483648
      %v1949 = vxor.u32 %v1925, 2147483648
      %v1950 = vxor.u32 %v1930, 2147483648
      %v1951 = vxor.u32 %v1933, 2147483648
      %v1952 = vmul.f32 %v1936, 1.442695
      %v1953 = vpow.pop %v1952
      %v1954 = vmul.f32 %v1937, 1.442695
      %v1955 = vpow.pop %v1954
      %v1956 = vmul.f32 %v1938, 1.442695
      %v1957 = vpow.pop %v1956
      %v1958 = vmul.f32 %v1939, 1.442695
      %v1959 = vpow.pop %v1958
      %v1960 = vmul.f32 %v1940, 1.442695
      %v1961 = vpow.pop %v1960
      %v1962 = vmul.f32 %v1941, 1.442695
      %v1963 = vpow.pop %v1962
      %v1964 = vmul.f32 %v1942, 1.442695
      %v1965 = vpow.pop %v1964
      %v1966 = vmul.f32 %v1943, 1.442695
      %v1967 = vpow.pop %v1966
      %v1968 = vmul.f32 %v1944, 1.442695
      %v1969 = vpow.pop %v1968
      %v1970 = vmul.f32 %v1945, 1.442695
      %v1971 = vpow.pop %v1970
      %v1972 = vmul.f32 %v1946, 1.442695
      %v1973 = vpow.pop %v1972
      %v1974 = vmul.f32 %v1947, 1.442695
      %v1975 = vpow.pop %v1974
      %v1976 = vmul.f32 %v1948, 1.442695
      %v1977 = vpow.pop %v1976
      %v1978 = vmul.f32 %v1949, 1.442695
      %v1979 = vpow.pop %v1978
      %v1980 = vmul.f32 %v1950, 1.442695
      %v1981 = vpow.pop %v1980
      %v1982 = vmul.f32 %v1951, 1.442695
      %v1983 = vpow.pop %v1982
      %v1984 = vadd.f32 %v1953, 1.0
      %v1985 = vadd.f32 %v1955, 1.0
      %v1986 = vadd.f32 %v1957, 1.0
      %v1987 = vadd.f32 %v1959, 1.0
      %v1988 = vadd.f32 %v1961, 1.0
      %v1989 = vadd.f32 %v1963, 1.0
      %v1990 = vadd.f32 %v1965, 1.0
      %v1991 = vadd.f32 %v1967, 1.0
      %v1992 = vadd.f32 %v1969, 1.0
      %v1993 = vadd.f32 %v1971, 1.0
      %v1994 = vadd.f32 %v1973, 1.0
      %v1995 = vadd.f32 %v1975, 1.0
      %v1996 = vadd.f32 %v1977, 1.0
      %v1997 = vadd.f32 %v1979, 1.0
      %v1998 = vadd.f32 %v1981, 1.0
      %v1999 = vadd.f32 %v1983, 1.0
      %v2000 = vrcp.pop %v1984
      %v2001 = vmul.f32 1.0, %v2000
      %v2002 = vrcp.pop %v1985
      %v2003 = vmul.f32 1.0, %v2002
      %v2004 = vrcp.pop %v1986
      %v2005 = vmul.f32 1.0, %v2004
      %v2006 = vrcp.pop %v1987
      %v2007 = vmul.f32 1.0, %v2006
      %v2008 = vrcp.pop %v1988
      %v2009 = vmul.f32 1.0, %v2008
      %v2010 = vrcp.pop %v1989
      %v2011 = vmul.f32 1.0, %v2010
      %v2012 = vrcp.pop %v1990
      %v2013 = vmul.f32 1.0, %v2012
      %v2014 = vrcp.pop %v1991
      %v2015 = vmul.f32 1.0, %v2014
      %v2016 = vrcp.pop %v1992
      %v2017 = vmul.f32 1.0, %v2016
      %v2018 = vrcp.pop %v1993
      %v2019 = vmul.f32 1.0, %v2018
      %v2020 = vrcp.pop %v1994
      %v2021 = vmul.f32 1.0, %v2020
      %v2022 = vrcp.pop %v1995
      %v2023 = vmul.f32 1.0, %v2022
      %v2024 = vrcp.pop %v1996
      %v2025 = vmul.f32 1.0, %v2024
      %v2026 = vrcp.pop %v1997
      %v2027 = vmul.f32 1.0, %v2026
      %v2028 = vrcp.pop %v1998
      %v2029 = vmul.f32 1.0, %v2028
      %v2030 = vrcp.pop %v1999
      %v2031 = vmul.f32 1.0, %v2030
      %v2032 = vmul.f32 %v1874, %v2001
      %v2033 = vmul.f32 %v1877, %v2003
      %v2034 = vmul.f32 %v1882, %v2005
      %v2035 = vmul.f32 %v1885, %v2007
      %v2036 = vmul.f32 %v1890, %v2009
      %v2037 = vmul.f32 %v1893, %v2011
      %v2038 = vmul.f32 %v1898, %v2013
      %v2039 = vmul.f32 %v1901, %v2015
      %v2040 = vmul.f32 %v1906, %v2017
      %v2041 = vmul.f32 %v1909, %v2019
      %v2042 = vmul.f32 %v1914, %v2021
      %v2043 = vmul.f32 %v1917, %v2023
      %v2044 = vmul.f32 %v1922, %v2025
      %v2045 = vmul.f32 %v1925, %v2027
      %v2046 = vmul.f32 %v1930, %v2029
      %v2047 = vmul.f32 %v1933, %v2031
      %v2048 = vpack.c.bf16 %v2033, %v2032
      %v2049 = vpack.c.bf16 %v2035, %v2034
      %v2050 = vpack.c.bf16 %v2037, %v2036
      %v2051 = vpack.c.bf16 %v2039, %v2038
      %v2052 = vpack.c.bf16 %v2041, %v2040
      %v2053 = vpack.c.bf16 %v2043, %v2042
      %v2054 = vpack.c.bf16 %v2045, %v2044
      %v2055 = vpack.c.bf16 %v2047, %v2046
      %v2056 = vld [vmem:[%s14] sm:$0xf]
      %v2057 = vld [vmem:[%s14 + $0x4] sm:$0xf]
      %v2058 = vld [vmem:[%s14 + $0x8] sm:$0xf]
      %v2059 = vld [vmem:[%s14 + $0xc] sm:$0xf]
      %v2060 = vld [vmem:[%s14 + $0x10] sm:$0xf]
      %v2061 = vld [vmem:[%s14 + $0x14] sm:$0xf]
      %v2062 = vld [vmem:[%s14 + $0x18] sm:$0xf]
      %v2063 = vld [vmem:[%s14 + $0x1c] sm:$0xf]
      %v2064 = vld [vmem:[%s15] sm:$0x1]
      %v2066 = vlaneseq
      %v2067 = vshrl.u32 %v2066, 7
      %v2068 = vsub.s32 0, %v2067
      %v2069 = vrot.slane %v2064, %v2068
      %v2079 = vunpack.c.l.b16 %v2056
      %v2080 = vunpack.c.l.b16 %v2057
      %v2081 = vunpack.c.l.b16 %v2058
      %v2082 = vunpack.c.l.b16 %v2059
      %v2083 = vunpack.c.l.b16 %v2060
      %v2084 = vunpack.c.l.b16 %v2061
      %v2085 = vunpack.c.l.b16 %v2062
      %v2086 = vunpack.c.l.b16 %v2063
      %v2087 = vpack.c.b16 %v2080, %v2079
      %v2088 = vpack.c.b16 %v2082, %v2081
      %v2089 = vpack.c.b16 %v2084, %v2083
      %v2090 = vpack.c.b16 %v2086, %v2085
      %vm2095 = vcmask 523264
      %v2097 = vsel %vm2095, %v2048, 0
      %v2100 = vsel %vm2095, %v2049, 0
      %v2103 = vsel %vm2095, %v2050, 0
      %v2106 = vsel %vm2095, %v2051, 0
      %v2109 = vsel %vm2095, %v2052, 0
      %v2112 = vsel %vm2095, %v2053, 0
      %v2115 = vsel %vm2095, %v2054, 0
      %v2118 = vsel %vm2095, %v2055, 0
      %2120 = vmatprep.subr.bf16.mxu0 0
      %2121 = vmatpush1.bf16.msra.mxu0 %v2087
      %2122 = vmatprep.subr.bf16.mxu0 0
      %2123 = vmatpush1.bf16.msra.mxu0 %v2088
      %2124 = vmatprep.subr.bf16.mxu0 0
      %2125 = vmatpush1.bf16.msra.mxu0 %v2089
      %2126 = vmatprep.subr.bf16.mxu0 0
      %2127 = vmatpush1.bf16.msra.mxu0 %v2090
      %2128 = vmatprep.subr.bf16.mxu0 0
      %2129 = vmatpush1.bf16.msra.mxu0 0
      %2130 = vmatprep.subr.bf16.mxu0 0
      %2131 = vmatpush1.bf16.msra.mxu0 0
      %2132 = vmatprep.subr.bf16.mxu0 0
      %2133 = vmatpush1.bf16.msra.mxu0 0
      %2134 = vmatprep.subr.bf16.mxu0 0
      %2135 = vmatpush1.bf16.msra.mxu0 0
      %2136 = vmatprep.subr.bf16.mxu0 0
      %2137 = vmatpush1.bf16.msra.mxu0 0
      %2138 = vmatprep.subr.bf16.mxu0 0
      %2139 = vmatpush1.bf16.msra.mxu0 0
      %2140 = vmatprep.subr.bf16.mxu0 0
      %2141 = vmatpush1.bf16.msra.mxu0 0
      %2142 = vmatprep.subr.bf16.mxu0 0
      %2143 = vmatpush1.bf16.msra.mxu0 0
      %2144 = vmatprep.subr.bf16.mxu0 0
      %2145 = vmatpush1.bf16.msra.mxu0 0
      %2146 = vmatprep.subr.bf16.mxu0 0
      %2147 = vmatpush1.bf16.msra.mxu0 0
      %2148 = vmatprep.subr.bf16.mxu0 0
      %2149 = vmatpush1.bf16.msra.mxu0 0
      %2150 = vmatprep.subr.bf16.mxu0 0
      %2151 = vmatpush1.bf16.msra.mxu0 0
      %2152 = vmatprep.mubr.bf16.mxu0 0
      %2153 = vmatmul.mubr.bf16.gmra.mrb[0].mxu0 %v2097
      %v2154 = vpop.f32.mrb[0].mxu0
      %v2155 = vadd.f32 %v2069, %v2154
      %v2156 = vpop.f32.mrb[0].mxu0
      %v2157 = vpop.f32.mrb[0].mxu0
      %v2158 = vadd.f32 %v2069, %v2157
      %v2159 = vpop.f32.mrb[0].mxu0
      %2160 = vmatprep.mubr.bf16.mxu0 0
      %2161 = vmatmul.mubr.bf16.gmra.mrb[0].mxu0 %v2100
      %v2162 = vpop.f32.mrb[0].mxu0
      %v2163 = vadd.f32 %v2069, %v2162
      %v2164 = vpop.f32.mrb[0].mxu0
      %v2165 = vpop.f32.mrb[0].mxu0
      %v2166 = vadd.f32 %v2069, %v2165
      %v2167 = vpop.f32.mrb[0].mxu0
      %2168 = vmatprep.mubr.bf16.mxu0 0
      %2169 = vmatmul.mubr.bf16.gmra.mrb[0].mxu0 %v2103
      %v2170 = vpop.f32.mrb[0].mxu0
      %v2171 = vadd.f32 %v2069, %v2170
      %v2172 = vpop.f32.mrb[0].mxu0
      %v2173 = vpop.f32.mrb[0].mxu0
      %v2174 = vadd.f32 %v2069, %v2173
      %v2175 = vpop.f32.mrb[0].mxu0
      %2176 = vmatprep.mubr.bf16.mxu0 0
      %2177 = vmatmul.mubr.bf16.gmra.mrb[0].mxu0 %v2106
      %v2178 = vpop.f32.mrb[0].mxu0
      %v2179 = vadd.f32 %v2069, %v2178
      %v2180 = vpop.f32.mrb[0].mxu0
      %v2181 = vpop.f32.mrb[0].mxu0
      %v2182 = vadd.f32 %v2069, %v2181
      %v2183 = vpop.f32.mrb[0].mxu0
      %2184 = vmatprep.mubr.bf16.mxu0 0
      %2185 = vmatmul.mubr.bf16.gmra.mrb[0].mxu0 %v2109
      %v2186 = vpop.f32.mrb[0].mxu0
      %v2187 = vadd.f32 %v2069, %v2186
      %v2188 = vpop.f32.mrb[0].mxu0
      %v2189 = vpop.f32.mrb[0].mxu0
      %v2190 = vadd.f32 %v2069, %v2189
      %v2191 = vpop.f32.mrb[0].mxu0
      %2192 = vmatprep.mubr.bf16.mxu0 0
      %2193 = vmatmul.mubr.bf16.gmra.mrb[0].mxu0 %v2112
      %v2194 = vpop.f32.mrb[0].mxu0
      %v2195 = vadd.f32 %v2069, %v2194
      %v2196 = vpop.f32.mrb[0].mxu0
      %v2197 = vpop.f32.mrb[0].mxu0
      %v2198 = vadd.f32 %v2069, %v2197
      %v2199 = vpop.f32.mrb[0].mxu0
      %2200 = vmatprep.mubr.bf16.mxu0 0
      %2201 = vmatmul.mubr.bf16.gmra.mrb[0].mxu0 %v2115
      %v2202 = vpop.f32.mrb[0].mxu0
      %v2203 = vadd.f32 %v2069, %v2202
      %v2204 = vpop.f32.mrb[0].mxu0
      %v2205 = vpop.f32.mrb[0].mxu0
      %v2206 = vadd.f32 %v2069, %v2205
      %v2207 = vpop.f32.mrb[0].mxu0
      %2208 = vmatprep.mubr.bf16.mxu0 0
      %2209 = vmatmul.mubr.bf16.gmra.mrb[0].mxu0 %v2118
      %v2210 = vpop.f32.mrb[0].mxu0
      %v2211 = vadd.f32 %v2069, %v2210
      %v2212 = vpop.f32.mrb[0].mxu0
      %v2213 = vpop.f32.mrb[0].mxu0
      %v2214 = vadd.f32 %v2069, %v2213
      %v2215 = vpop.f32.mrb[0].mxu0
      %2216 = vdwg.mxu0
      %vm2217 = vcmp.ge.f32.partialorder %v2155, 0.0
      %vm2218 = vcmp.ge.f32.partialorder %v2158, 0.0
      %vm2219 = vcmp.ge.f32.partialorder %v2163, 0.0
      %vm2220 = vcmp.ge.f32.partialorder %v2166, 0.0
      %vm2221 = vcmp.ge.f32.partialorder %v2171, 0.0
      %vm2222 = vcmp.ge.f32.partialorder %v2174, 0.0
      %vm2223 = vcmp.ge.f32.partialorder %v2179, 0.0
      %vm2224 = vcmp.ge.f32.partialorder %v2182, 0.0
      %vm2225 = vcmp.ge.f32.partialorder %v2187, 0.0
      %vm2226 = vcmp.ge.f32.partialorder %v2190, 0.0
      %vm2227 = vcmp.ge.f32.partialorder %v2195, 0.0
      %vm2228 = vcmp.ge.f32.partialorder %v2198, 0.0
      %vm2229 = vcmp.ge.f32.partialorder %v2203, 0.0
      %vm2230 = vcmp.ge.f32.partialorder %v2206, 0.0
      %vm2231 = vcmp.ge.f32.partialorder %v2211, 0.0
      %vm2232 = vcmp.ge.f32.partialorder %v2214, 0.0
      %v2233 = vmul.f32 %v2155, 0.01
      %v2234 = vmul.f32 %v2158, 0.01
      %v2235 = vmul.f32 %v2163, 0.01
      %v2236 = vmul.f32 %v2166, 0.01
      %v2237 = vmul.f32 %v2171, 0.01
      %v2238 = vmul.f32 %v2174, 0.01
      %v2239 = vmul.f32 %v2179, 0.01
      %v2240 = vmul.f32 %v2182, 0.01
      %v2241 = vmul.f32 %v2187, 0.01
      %v2242 = vmul.f32 %v2190, 0.01
      %v2243 = vmul.f32 %v2195, 0.01
      %v2244 = vmul.f32 %v2198, 0.01
      %v2245 = vmul.f32 %v2203, 0.01
      %v2246 = vmul.f32 %v2206, 0.01
      %v2247 = vmul.f32 %v2211, 0.01
      %v2248 = vmul.f32 %v2214, 0.01
      %v2249 = vsel %vm2217, %v2155, %v2233
      %v2250 = vsel %vm2218, %v2158, %v2234
      %v2251 = vsel %vm2219, %v2163, %v2235
      %v2252 = vsel %vm2220, %v2166, %v2236
      %v2253 = vsel %vm2221, %v2171, %v2237
      %v2254 = vsel %vm2222, %v2174, %v2238
      %v2255 = vsel %vm2223, %v2179, %v2239
      %v2256 = vsel %vm2224, %v2182, %v2240
      %v2257 = vsel %vm2225, %v2187, %v2241
      %v2258 = vsel %vm2226, %v2190, %v2242
      %v2259 = vsel %vm2227, %v2195, %v2243
      %v2260 = vsel %vm2228, %v2198, %v2244
      %v2261 = vsel %vm2229, %v2203, %v2245
      %v2262 = vsel %vm2230, %v2206, %v2246
      %v2263 = vsel %vm2231, %v2211, %v2247
      %v2264 = vsel %vm2232, %v2214, %v2248
      %v2265 = vpack.c.bf16 %v2250, %v2249
      %v2266 = vpack.c.bf16 %v2252, %v2251
      %v2267 = vpack.c.bf16 %v2254, %v2253
      %v2268 = vpack.c.bf16 %v2256, %v2255
      %v2269 = vpack.c.bf16 %v2258, %v2257
      %v2270 = vpack.c.bf16 %v2260, %v2259
      %v2271 = vpack.c.bf16 %v2262, %v2261
      %v2272 = vpack.c.bf16 %v2264, %v2263
      %v2273 = vld [vmem:[%s16] sm:$0xf]
      %v2274 = vld [vmem:[%s16 + $0x4] sm:$0xf]
      %v2275 = vld [vmem:[%s16 + $0x8] sm:$0xf]
      %v2276 = vld [vmem:[%s16 + $0xc] sm:$0xf]
      %v2277 = vld [vmem:[%s16 + $0x10] sm:$0xf]
      %v2278 = vld [vmem:[%s16 + $0x14] sm:$0xf]
      %v2279 = vld [vmem:[%s16 + $0x18] sm:$0xf]
      %v2280 = vld [vmem:[%s16 + $0x1c] sm:$0xf]
      %v2281 = vld [vmem:[%s16 + $0x20] sm:$0xf]
      %v2282 = vld [vmem:[%s16 + $0x24] sm:$0xf]
      %v2283 = vld [vmem:[%s16 + $0x28] sm:$0xf]
      %v2284 = vld [vmem:[%s16 + $0x2c] sm:$0xf]
      %v2285 = vld [vmem:[%s16 + $0x30] sm:$0xf]
      %v2286 = vld [vmem:[%s16 + $0x34] sm:$0xf]
      %v2287 = vld [vmem:[%s16 + $0x38] sm:$0xf]
      %v2288 = vld [vmem:[%s16 + $0x3c] sm:$0xf]
      %v2289 = vld [vmem:[%s17] sm:$0x1]
      %v2291 = vlaneseq
      %v2292 = vshrl.u32 %v2291, 7
      %v2293 = vsub.s32 0, %v2292
      %v2294 = vrot.slane %v2289, %v2293
      %v2312 = vunpack.c.l.b16 %v2273
      %v2313 = vunpack.c.l.b16 %v2274
      %v2314 = vunpack.c.l.b16 %v2275
      %v2315 = vunpack.c.l.b16 %v2276
      %v2316 = vunpack.c.l.b16 %v2277
      %v2317 = vunpack.c.l.b16 %v2278
      %v2318 = vunpack.c.l.b16 %v2279
      %v2319 = vunpack.c.l.b16 %v2280
      %v2320 = vunpack.c.l.b16 %v2281
      %v2321 = vunpack.c.l.b16 %v2282
      %v2322 = vunpack.c.l.b16 %v2283
      %v2323 = vunpack.c.l.b16 %v2284
      %v2324 = vunpack.c.l.b16 %v2285
      %v2325 = vunpack.c.l.b16 %v2286
      %v2326 = vunpack.c.l.b16 %v2287
      %v2327 = vunpack.c.l.b16 %v2288
      %v2328 = vpack.c.b16 %v2313, %v2312
      %v2329 = vpack.c.b16 %v2315, %v2314
      %v2330 = vpack.c.b16 %v2317, %v2316
      %v2331 = vpack.c.b16 %v2319, %v2318
      %v2332 = vpack.c.b16 %v2321, %v2320
      %v2333 = vpack.c.b16 %v2323, %v2322
      %v2334 = vpack.c.b16 %v2325, %v2324
      %v2335 = vpack.c.b16 %v2327, %v2326
      %2344 = vmatprep.subr.bf16.mxu0 0
      %2345 = vmatpush1.bf16.msra.mxu0 %v2328
      %2346 = vmatprep.subr.bf16.mxu0 0
      %2347 = vmatpush1.bf16.msra.mxu0 %v2329
      %2348 = vmatprep.subr.bf16.mxu0 0
      %2349 = vmatpush1.bf16.msra.mxu0 %v2330
      %2350 = vmatprep.subr.bf16.mxu0 0
      %2351 = vmatpush1.bf16.msra.mxu0 %v2331
      %2352 = vmatprep.subr.bf16.mxu0 0
      %2353 = vmatpush1.bf16.msra.mxu0 %v2332
      %2354 = vmatprep.subr.bf16.mxu0 0
      %2355 = vmatpush1.bf16.msra.mxu0 %v2333
      %2356 = vmatprep.subr.bf16.mxu0 0
      %2357 = vmatpush1.bf16.msra.mxu0 %v2334
      %2358 = vmatprep.subr.bf16.mxu0 0
      %2359 = vmatpush1.bf16.msra.mxu0 %v2335
      %2360 = vmatprep.subr.bf16.mxu0 0
      %2361 = vmatpush1.bf16.msra.mxu0 0
      %2362 = vmatprep.subr.bf16.mxu0 0
      %2363 = vmatpush1.bf16.msra.mxu0 0
      %2364 = vmatprep.subr.bf16.mxu0 0
      %2365 = vmatpush1.bf16.msra.mxu0 0
      %2366 = vmatprep.subr.bf16.mxu0 0
      %2367 = vmatpush1.bf16.msra.mxu0 0
      %2368 = vmatprep.subr.bf16.mxu0 0
      %2369 = vmatpush1.bf16.msra.mxu0 0
      %2370 = vmatprep.subr.bf16.mxu0 0
      %2371 = vmatpush1.bf16.msra.mxu0 0
      %2372 = vmatprep.subr.bf16.mxu0 0
      %2373 = vmatpush1.bf16.msra.mxu0 0
      %2374 = vmatprep.subr.bf16.mxu0 0
      %2375 = vmatpush1.bf16.msra.mxu0 0
      %2376 = vmatprep.mubr.bf16.mxu0 0
      %2377 = vmatmul.mubr.bf16.gmra.mrb[0].mxu0 %v2265
      %v2378 = vpop.f32.mrb[0].mxu0
      %v2379 = vadd.f32 %v2294, %v2378
      %v2380 = vpop.f32.mrb[0].mxu0
      %v2381 = vpop.f32.mrb[0].mxu0
      %v2382 = vadd.f32 %v2294, %v2381
      %v2383 = vpop.f32.mrb[0].mxu0
      %2384 = vmatprep.mubr.bf16.mxu0 0
      %2385 = vmatmul.mubr.bf16.gmra.mrb[0].mxu0 %v2266
      %v2386 = vpop.f32.mrb[0].mxu0
      %v2387 = vadd.f32 %v2294, %v2386
      %v2388 = vpop.f32.mrb[0].mxu0
      %v2389 = vpop.f32.mrb[0].mxu0
      %v2390 = vadd.f32 %v2294, %v2389
      %v2391 = vpop.f32.mrb[0].mxu0
      %2392 = vmatprep.mubr.bf16.mxu0 0
      %2393 = vmatmul.mubr.bf16.gmra.mrb[0].mxu0 %v2267
      %v2394 = vpop.f32.mrb[0].mxu0
      %v2395 = vadd.f32 %v2294, %v2394
      %v2396 = vpop.f32.mrb[0].mxu0
      %v2397 = vpop.f32.mrb[0].mxu0
      %v2398 = vadd.f32 %v2294, %v2397
      %v2399 = vpop.f32.mrb[0].mxu0
      %2400 = vmatprep.mubr.bf16.mxu0 0
      %2401 = vmatmul.mubr.bf16.gmra.mrb[0].mxu0 %v2268
      %v2402 = vpop.f32.mrb[0].mxu0
      %v2403 = vadd.f32 %v2294, %v2402
      %v2404 = vpop.f32.mrb[0].mxu0
      %v2405 = vpop.f32.mrb[0].mxu0
      %v2406 = vadd.f32 %v2294, %v2405
      %v2407 = vpop.f32.mrb[0].mxu0
      %2408 = vmatprep.mubr.bf16.mxu0 0
      %2409 = vmatmul.mubr.bf16.gmra.mrb[0].mxu0 %v2269
      %v2410 = vpop.f32.mrb[0].mxu0
      %v2411 = vadd.f32 %v2294, %v2410
      %v2412 = vpop.f32.mrb[0].mxu0
      %v2413 = vpop.f32.mrb[0].mxu0
      %v2414 = vadd.f32 %v2294, %v2413
      %v2415 = vpop.f32.mrb[0].mxu0
      %2416 = vmatprep.mubr.bf16.mxu0 0
      %2417 = vmatmul.mubr.bf16.gmra.mrb[0].mxu0 %v2270
      %v2418 = vpop.f32.mrb[0].mxu0
      %v2419 = vadd.f32 %v2294, %v2418
      %v2420 = vpop.f32.mrb[0].mxu0
      %v2421 = vpop.f32.mrb[0].mxu0
      %v2422 = vadd.f32 %v2294, %v2421
      %v2423 = vpop.f32.mrb[0].mxu0
      %2424 = vmatprep.mubr.bf16.mxu0 0
      %2425 = vmatmul.mubr.bf16.gmra.mrb[0].mxu0 %v2271
      %v2426 = vpop.f32.mrb[0].mxu0
      %v2427 = vadd.f32 %v2294, %v2426
      %v2428 = vpop.f32.mrb[0].mxu0
      %v2429 = vpop.f32.mrb[0].mxu0
      %v2430 = vadd.f32 %v2294, %v2429
      %v2431 = vpop.f32.mrb[0].mxu0
      %2432 = vmatprep.mubr.bf16.mxu0 0
      %2433 = vmatmul.mubr.bf16.gmra.mrb[0].mxu0 %v2272
      %v2434 = vpop.f32.mrb[0].mxu0
      %v2435 = vadd.f32 %v2294, %v2434
      %v2436 = vpop.f32.mrb[0].mxu0
      %v2437 = vpop.f32.mrb[0].mxu0
      %v2438 = vadd.f32 %v2294, %v2437
      %v2439 = vpop.f32.mrb[0].mxu0
      %2440 = vdwg.mxu0
      %v2441 = vxor.u32 %v2379, 2147483648
      %v2442 = vxor.u32 %v2382, 2147483648
      %v2443 = vxor.u32 %v2387, 2147483648
      %v2444 = vxor.u32 %v2390, 2147483648
      %v2445 = vxor.u32 %v2395, 2147483648
      %v2446 = vxor.u32 %v2398, 2147483648
      %v2447 = vxor.u32 %v2403, 2147483648
      %v2448 = vxor.u32 %v2406, 2147483648
      %v2449 = vxor.u32 %v2411, 2147483648
      %v2450 = vxor.u32 %v2414, 2147483648
      %v2451 = vxor.u32 %v2419, 2147483648
      %v2452 = vxor.u32 %v2422, 2147483648
      %v2453 = vxor.u32 %v2427, 2147483648
      %v2454 = vxor.u32 %v2430, 2147483648
      %v2455 = vxor.u32 %v2435, 2147483648
      %v2456 = vxor.u32 %v2438, 2147483648
      %v2457 = vmul.f32 %v2441, 1.442695
      %v2458 = vpow.pop %v2457
      %v2459 = vmul.f32 %v2442, 1.442695
      %v2460 = vpow.pop %v2459
      %v2461 = vmul.f32 %v2443, 1.442695
      %v2462 = vpow.pop %v2461
      %v2463 = vmul.f32 %v2444, 1.442695
      %v2464 = vpow.pop %v2463
      %v2465 = vmul.f32 %v2445, 1.442695
      %v2466 = vpow.pop %v2465
      %v2467 = vmul.f32 %v2446, 1.442695
      %v2468 = vpow.pop %v2467
      %v2469 = vmul.f32 %v2447, 1.442695
      %v2470 = vpow.pop %v2469
      %v2471 = vmul.f32 %v2448, 1.442695
      %v2472 = vpow.pop %v2471
      %v2473 = vmul.f32 %v2449, 1.442695
      %v2474 = vpow.pop %v2473
      %v2475 = vmul.f32 %v2450, 1.442695
      %v2476 = vpow.pop %v2475
      %v2477 = vmul.f32 %v2451, 1.442695
      %v2478 = vpow.pop %v2477
      %v2479 = vmul.f32 %v2452, 1.442695
      %v2480 = vpow.pop %v2479
      %v2481 = vmul.f32 %v2453, 1.442695
      %v2482 = vpow.pop %v2481
      %v2483 = vmul.f32 %v2454, 1.442695
      %v2484 = vpow.pop %v2483
      %v2485 = vmul.f32 %v2455, 1.442695
      %v2486 = vpow.pop %v2485
      %v2487 = vmul.f32 %v2456, 1.442695
      %v2488 = vpow.pop %v2487
      %v2489 = vadd.f32 %v2458, 1.0
      %v2490 = vadd.f32 %v2460, 1.0
      %v2491 = vadd.f32 %v2462, 1.0
      %v2492 = vadd.f32 %v2464, 1.0
      %v2493 = vadd.f32 %v2466, 1.0
      %v2494 = vadd.f32 %v2468, 1.0
      %v2495 = vadd.f32 %v2470, 1.0
      %v2496 = vadd.f32 %v2472, 1.0
      %v2497 = vadd.f32 %v2474, 1.0
      %v2498 = vadd.f32 %v2476, 1.0
      %v2499 = vadd.f32 %v2478, 1.0
      %v2500 = vadd.f32 %v2480, 1.0
      %v2501 = vadd.f32 %v2482, 1.0
      %v2502 = vadd.f32 %v2484, 1.0
      %v2503 = vadd.f32 %v2486, 1.0
      %v2504 = vadd.f32 %v2488, 1.0
      %v2505 = vrcp.pop %v2489
      %v2506 = vmul.f32 1.0, %v2505
      %v2507 = vrcp.pop %v2490
      %v2508 = vmul.f32 1.0, %v2507
      %v2509 = vrcp.pop %v2491
      %v2510 = vmul.f32 1.0, %v2509
      %v2511 = vrcp.pop %v2492
      %v2512 = vmul.f32 1.0, %v2511
      %v2513 = vrcp.pop %v2493
      %v2514 = vmul.f32 1.0, %v2513
      %v2515 = vrcp.pop %v2494
      %v2516 = vmul.f32 1.0, %v2515
      %v2517 = vrcp.pop %v2495
      %v2518 = vmul.f32 1.0, %v2517
      %v2519 = vrcp.pop %v2496
      %v2520 = vmul.f32 1.0, %v2519
      %v2521 = vrcp.pop %v2497
      %v2522 = vmul.f32 1.0, %v2521
      %v2523 = vrcp.pop %v2498
      %v2524 = vmul.f32 1.0, %v2523
      %v2525 = vrcp.pop %v2499
      %v2526 = vmul.f32 1.0, %v2525
      %v2527 = vrcp.pop %v2500
      %v2528 = vmul.f32 1.0, %v2527
      %v2529 = vrcp.pop %v2501
      %v2530 = vmul.f32 1.0, %v2529
      %v2531 = vrcp.pop %v2502
      %v2532 = vmul.f32 1.0, %v2531
      %v2533 = vrcp.pop %v2503
      %v2534 = vmul.f32 1.0, %v2533
      %v2535 = vrcp.pop %v2504
      %v2536 = vmul.f32 1.0, %v2535
      %v2537 = vmul.f32 %v2379, %v2506
      %v2538 = vmul.f32 %v2382, %v2508
      %v2539 = vmul.f32 %v2387, %v2510
      %v2540 = vmul.f32 %v2390, %v2512
      %v2541 = vmul.f32 %v2395, %v2514
      %v2542 = vmul.f32 %v2398, %v2516
      %v2543 = vmul.f32 %v2403, %v2518
      %v2544 = vmul.f32 %v2406, %v2520
      %v2545 = vmul.f32 %v2411, %v2522
      %v2546 = vmul.f32 %v2414, %v2524
      %v2547 = vmul.f32 %v2419, %v2526
      %v2548 = vmul.f32 %v2422, %v2528
      %v2549 = vmul.f32 %v2427, %v2530
      %v2550 = vmul.f32 %v2430, %v2532
      %v2551 = vmul.f32 %v2435, %v2534
      %v2552 = vmul.f32 %v2438, %v2536
      %v2553 = vpack.c.bf16 %v2538, %v2537
      %v2554 = vpack.c.bf16 %v2540, %v2539
      %v2555 = vpack.c.bf16 %v2542, %v2541
      %v2556 = vpack.c.bf16 %v2544, %v2543
      %v2557 = vpack.c.bf16 %v2546, %v2545
      %v2558 = vpack.c.bf16 %v2548, %v2547
      %v2559 = vpack.c.bf16 %v2550, %v2549
      %v2560 = vpack.c.bf16 %v2552, %v2551
      %v2561 = vld [vmem:[%s18] sm:$0xf]
      %v2562 = vld [vmem:[%s18 + $0x4] sm:$0xf]
      %v2563 = vld [vmem:[%s18 + $0x8] sm:$0xf]
      %v2564 = vld [vmem:[%s18 + $0xc] sm:$0xf]
      %v2565 = vld [vmem:[%s18 + $0x10] sm:$0xf]
      %v2566 = vld [vmem:[%s18 + $0x14] sm:$0xf]
      %v2567 = vld [vmem:[%s18 + $0x18] sm:$0xf]
      %v2568 = vld [vmem:[%s18 + $0x1c] sm:$0xf]
      %v2569 = vld [vmem:[%s18 + $0x20] sm:$0xf]
      %v2570 = vld [vmem:[%s18 + $0x24] sm:$0xf]
      %v2571 = vld [vmem:[%s18 + $0x28] sm:$0xf]
      %v2572 = vld [vmem:[%s18 + $0x2c] sm:$0xf]
      %v2573 = vld [vmem:[%s18 + $0x30] sm:$0xf]
      %v2574 = vld [vmem:[%s18 + $0x34] sm:$0xf]
      %v2575 = vld [vmem:[%s18 + $0x38] sm:$0xf]
      %v2576 = vld [vmem:[%s18 + $0x3c] sm:$0xf]
      %v2577 = vld [vmem:[%s19] sm:$0x1]
      %v2579 = vlaneseq
      %v2580 = vshrl.u32 %v2579, 7
      %v2581 = vsub.s32 0, %v2580
      %v2582 = vrot.slane %v2577, %v2581
      %v2600 = vunpack.c.l.b16 %v2561
      %v2601 = vunpack.c.l.b16 %v2562
      %v2602 = vunpack.c.l.b16 %v2563
      %v2603 = vunpack.c.l.b16 %v2564
      %v2604 = vunpack.c.l.b16 %v2565
      %v2605 = vunpack.c.l.b16 %v2566
      %v2606 = vunpack.c.l.b16 %v2567
      %v2607 = vunpack.c.l.b16 %v2568
      %v2608 = vunpack.c.l.b16 %v2569
      %v2609 = vunpack.c.l.b16 %v2570
      %v2610 = vunpack.c.l.b16 %v2571
      %v2611 = vunpack.c.l.b16 %v2572
      %v2612 = vunpack.c.l.b16 %v2573
      %v2613 = vunpack.c.l.b16 %v2574
      %v2614 = vunpack.c.l.b16 %v2575
      %v2615 = vunpack.c.l.b16 %v2576
      %v2616 = vpack.c.b16 %v2601, %v2600
      %v2617 = vpack.c.b16 %v2603, %v2602
      %v2618 = vpack.c.b16 %v2605, %v2604
      %v2619 = vpack.c.b16 %v2607, %v2606
      %v2620 = vpack.c.b16 %v2609, %v2608
      %v2621 = vpack.c.b16 %v2611, %v2610
      %v2622 = vpack.c.b16 %v2613, %v2612
      %v2623 = vpack.c.b16 %v2615, %v2614
      %2632 = vmatprep.subr.bf16.mxu0 0
      %2633 = vmatpush1.bf16.msra.mxu0 %v2616
      %2634 = vmatprep.subr.bf16.mxu0 0
      %2635 = vmatpush1.bf16.msra.mxu0 %v2617
      %2636 = vmatprep.subr.bf16.mxu0 0
      %2637 = vmatpush1.bf16.msra.mxu0 %v2618
      %2638 = vmatprep.subr.bf16.mxu0 0
      %2639 = vmatpush1.bf16.msra.mxu0 %v2619
      %2640 = vmatprep.subr.bf16.mxu0 0
      %2641 = vmatpush1.bf16.msra.mxu0 %v2620
      %2642 = vmatprep.subr.bf16.mxu0 0
      %2643 = vmatpush1.bf16.msra.mxu0 %v2621
      %2644 = vmatprep.subr.bf16.mxu0 0
      %2645 = vmatpush1.bf16.msra.mxu0 %v2622
      %2646 = vmatprep.subr.bf16.mxu0 0
      %2647 = vmatpush1.bf16.msra.mxu0 %v2623
      %2648 = vmatprep.subr.bf16.mxu0 0
      %2649 = vmatpush1.bf16.msra.mxu0 0
      %2650 = vmatprep.subr.bf16.mxu0 0
      %2651 = vmatpush1.bf16.msra.mxu0 0
      %2652 = vmatprep.subr.bf16.mxu0 0
      %2653 = vmatpush1.bf16.msra.mxu0 0
      %2654 = vmatprep.subr.bf16.mxu0 0
      %2655 = vmatpush1.bf16.msra.mxu0 0
      %2656 = vmatprep.subr.bf16.mxu0 0
      %2657 = vmatpush1.bf16.msra.mxu0 0
      %2658 = vmatprep.subr.bf16.mxu0 0
      %2659 = vmatpush1.bf16.msra.mxu0 0
      %2660 = vmatprep.subr.bf16.mxu0 0
      %2661 = vmatpush1.bf16.msra.mxu0 0
      %2662 = vmatprep.subr.bf16.mxu0 0
      %2663 = vmatpush1.bf16.msra.mxu0 0
      %2664 = vmatprep.mubr.bf16.mxu0 0
      %2665 = vmatmul.mubr.bf16.gmra.mrb[0].mxu0 %v2553
      %v2666 = vpop.f32.mrb[0].mxu0
      %v2667 = vadd.f32 %v2582, %v2666
      %v2668 = vpop.f32.mrb[0].mxu0
      %v2669 = vpop.f32.mrb[0].mxu0
      %v2670 = vadd.f32 %v2582, %v2669
      %v2671 = vpop.f32.mrb[0].mxu0
      %2672 = vmatprep.mubr.bf16.mxu0 0
      %2673 = vmatmul.mubr.bf16.gmra.mrb[0].mxu0 %v2554
      %v2674 = vpop.f32.mrb[0].mxu0
      %v2675 = vadd.f32 %v2582, %v2674
      %v2676 = vpop.f32.mrb[0].mxu0
      %v2677 = vpop.f32.mrb[0].mxu0
      %v2678 = vadd.f32 %v2582, %v2677
      %v2679 = vpop.f32.mrb[0].mxu0
      %2680 = vmatprep.mubr.bf16.mxu0 0
      %2681 = vmatmul.mubr.bf16.gmra.mrb[0].mxu0 %v2555
      %v2682 = vpop.f32.mrb[0].mxu0
      %v2683 = vadd.f32 %v2582, %v2682
      %v2684 = vpop.f32.mrb[0].mxu0
      %v2685 = vpop.f32.mrb[0].mxu0
      %v2686 = vadd.f32 %v2582, %v2685
      %v2687 = vpop.f32.mrb[0].mxu0
      %2688 = vmatprep.mubr.bf16.mxu0 0
      %2689 = vmatmul.mubr.bf16.gmra.mrb[0].mxu0 %v2556
      %v2690 = vpop.f32.mrb[0].mxu0
      %v2691 = vadd.f32 %v2582, %v2690
      %v2692 = vpop.f32.mrb[0].mxu0
      %v2693 = vpop.f32.mrb[0].mxu0
      %v2694 = vadd.f32 %v2582, %v2693
      %v2695 = vpop.f32.mrb[0].mxu0
      %2696 = vmatprep.mubr.bf16.mxu0 0
      %2697 = vmatmul.mubr.bf16.gmra.mrb[0].mxu0 %v2557
      %v2698 = vpop.f32.mrb[0].mxu0
      %v2699 = vadd.f32 %v2582, %v2698
      %v2700 = vpop.f32.mrb[0].mxu0
      %v2701 = vpop.f32.mrb[0].mxu0
      %v2702 = vadd.f32 %v2582, %v2701
      %v2703 = vpop.f32.mrb[0].mxu0
      %2704 = vmatprep.mubr.bf16.mxu0 0
      %2705 = vmatmul.mubr.bf16.gmra.mrb[0].mxu0 %v2558
      %v2706 = vpop.f32.mrb[0].mxu0
      %v2707 = vadd.f32 %v2582, %v2706
      %v2708 = vpop.f32.mrb[0].mxu0
      %v2709 = vpop.f32.mrb[0].mxu0
      %v2710 = vadd.f32 %v2582, %v2709
      %v2711 = vpop.f32.mrb[0].mxu0
      %2712 = vmatprep.mubr.bf16.mxu0 0
      %2713 = vmatmul.mubr.bf16.gmra.mrb[0].mxu0 %v2559
      %v2714 = vpop.f32.mrb[0].mxu0
      %v2715 = vadd.f32 %v2582, %v2714
      %v2716 = vpop.f32.mrb[0].mxu0
      %v2717 = vpop.f32.mrb[0].mxu0
      %v2718 = vadd.f32 %v2582, %v2717
      %v2719 = vpop.f32.mrb[0].mxu0
      %2720 = vmatprep.mubr.bf16.mxu0 0
      %2721 = vmatmul.mubr.bf16.gmra.mrb[0].mxu0 %v2560
      %v2722 = vpop.f32.mrb[0].mxu0
      %v2723 = vadd.f32 %v2582, %v2722
      %v2724 = vpop.f32.mrb[0].mxu0
      %v2725 = vpop.f32.mrb[0].mxu0
      %v2726 = vadd.f32 %v2582, %v2725
      %v2727 = vpop.f32.mrb[0].mxu0
      %2728 = vdwg.mxu0
      %v2729 = vadd.f32 %v2667, %v867
      %v2730 = vadd.f32 %v2670, %v868
      %v2731 = vadd.f32 %v2675, %v869
      %v2732 = vadd.f32 %v2678, %v870
      %v2733 = vadd.f32 %v2683, %v871
      %v2734 = vadd.f32 %v2686, %v872
      %v2735 = vadd.f32 %v2691, %v873
      %v2736 = vadd.f32 %v2694, %v874
      %v2737 = vadd.f32 %v2699, %v875
      %v2738 = vadd.f32 %v2702, %v876
      %v2739 = vadd.f32 %v2707, %v877
      %v2740 = vadd.f32 %v2710, %v878
      %v2741 = vadd.f32 %v2715, %v879
      %v2742 = vadd.f32 %v2718, %v880
      %v2743 = vadd.f32 %v2723, %v881
      %v2744 = vadd.f32 %v2726, %v882
      %2745 = vst.msk [vmem:[%s857] sm:$0xff] %vm1199, %v2729
      %2746 = vst.msk [vmem:[%s857 + $0x8] sm:$0xff] %vm1199, %v2730
      %2747 = vst.msk [vmem:[%s857 + $0x10] sm:$0xff] %vm1199, %v2731
      %2748 = vst.msk [vmem:[%s857 + $0x18] sm:$0xff] %vm1199, %v2732
      %2749 = vst.msk [vmem:[%s857 + $0x20] sm:$0xff] %vm1199, %v2733
      %2750 = vst.msk [vmem:[%s857 + $0x28] sm:$0xff] %vm1199, %v2734
      %2751 = vst.msk [vmem:[%s857 + $0x30] sm:$0xff] %vm1199, %v2735
      %2752 = vst.msk [vmem:[%s857 + $0x38] sm:$0xff] %vm1199, %v2736
      %2753 = vst.msk [vmem:[%s857 + $0x40] sm:$0xff] %vm1199, %v2737
      %2754 = vst.msk [vmem:[%s857 + $0x48] sm:$0xff] %vm1199, %v2738
      %2755 = vst.msk [vmem:[%s857 + $0x50] sm:$0xff] %vm1199, %v2739
      %2756 = vst.msk [vmem:[%s857 + $0x58] sm:$0xff] %vm1199, %v2740
      %2757 = vst.msk [vmem:[%s857 + $0x60] sm:$0xff] %vm1199, %v2741
      %2758 = vst.msk [vmem:[%s857 + $0x68] sm:$0xff] %vm1199, %v2742
      %2759 = vst.msk [vmem:[%s857 + $0x70] sm:$0xff] %vm1199, %v2743
      %2760 = vst.msk [vmem:[%s857 + $0x78] sm:$0xff] %vm1199, %v2744
      %v2761 = vld [vmem:[%s839] sm:$0xff]
      %v2762 = vld [vmem:[%s839 + $0x8] sm:$0xff]
      %v2763 = vld [vmem:[%s839 + $0x10] sm:$0xff]
      %v2764 = vld [vmem:[%s839 + $0x18] sm:$0xff]
      %v2765 = vld [vmem:[%s839 + $0x20] sm:$0xff]
      %v2766 = vld [vmem:[%s839 + $0x28] sm:$0xff]
      %v2767 = vld [vmem:[%s839 + $0x30] sm:$0xff]
      %v2768 = vld [vmem:[%s839 + $0x38] sm:$0xff]
      %v2769 = vld [vmem:[%s839 + $0x40] sm:$0xff]
      %v2770 = vld [vmem:[%s839 + $0x48] sm:$0xff]
      %v2771 = vld [vmem:[%s839 + $0x50] sm:$0xff]
      %v2772 = vld [vmem:[%s839 + $0x58] sm:$0xff]
      %v2773 = vld [vmem:[%s839 + $0x60] sm:$0xff]
      %v2774 = vld [vmem:[%s839 + $0x68] sm:$0xff]
      %v2775 = vld [vmem:[%s839 + $0x70] sm:$0xff]
      %v2776 = vld [vmem:[%s839 + $0x78] sm:$0xff]
      %v2777 = vpack.c.bf16 %v2762, %v2761
      %v2778 = vpack.c.bf16 %v2764, %v2763
      %v2779 = vpack.c.bf16 %v2766, %v2765
      %v2780 = vpack.c.bf16 %v2768, %v2767
      %v2781 = vpack.c.bf16 %v2770, %v2769
      %v2782 = vpack.c.bf16 %v2772, %v2771
      %v2783 = vpack.c.bf16 %v2774, %v2773
      %v2784 = vpack.c.bf16 %v2776, %v2775
      %v2785 = vld [vmem:[%s20] sm:$0xf]
      %v2786 = vpack.c.bf16 %v2730, %v2729
      %v2787 = vpack.c.bf16 %v2732, %v2731
      %v2788 = vpack.c.bf16 %v2734, %v2733
      %v2789 = vpack.c.bf16 %v2736, %v2735
      %v2790 = vpack.c.bf16 %v2738, %v2737
      %v2791 = vpack.c.bf16 %v2740, %v2739
      %v2792 = vpack.c.bf16 %v2742, %v2741
      %v2793 = vpack.c.bf16 %v2744, %v2743
      %v2794 = vld [vmem:[%s21] sm:$0xf]
      %v2795 = vld [vmem:[%s21 + $0x4] sm:$0xf]
      %v2798 = vunpack.c.l.b16 %v2794
      %v2799 = vunpack.c.l.b16 %v2795
      %v2800 = vpack.c.b16 %v2799, %v2798
      %v2803 = vsel %vm1199, %v2786, 0
      %v2806 = vsel %vm1199, %v2787, 0
      %v2809 = vsel %vm1199, %v2788, 0
      %v2812 = vsel %vm1199, %v2789, 0
      %v2815 = vsel %vm1199, %v2790, 0
      %v2818 = vsel %vm1199, %v2791, 0
      %v2821 = vsel %vm1199, %v2792, 0
      %v2824 = vsel %vm1199, %v2793, 0
      %2826 = vmatprep.subr.bf16.mxu0 0
      %2827 = vmatpush1.bf16.msra.mxu0 %v2800
      %2828 = vmatprep.subr.bf16.mxu0 0
      %2829 = vmatpush1.bf16.msra.mxu0 0
      %2830 = vmatprep.subr.bf16.mxu0 0
      %2831 = vmatpush1.bf16.msra.mxu0 0
      %2832 = vmatprep.subr.bf16.mxu0 0
      %2833 = vmatpush1.bf16.msra.mxu0 0
      %2834 = vmatprep.subr.bf16.mxu0 0
      %2835 = vmatpush1.bf16.msra.mxu0 0
      %2836 = vmatprep.subr.bf16.mxu0 0
      %2837 = vmatpush1.bf16.msra.mxu0 0
      %2838 = vmatprep.subr.bf16.mxu0 0
      %2839 = vmatpush1.bf16.msra.mxu0 0
      %2840 = vmatprep.subr.bf16.mxu0 0
      %2841 = vmatpush1.bf16.msra.mxu0 0
      %2842 = vmatprep.subr.bf16.mxu0 0
      %2843 = vmatpush1.bf16.msra.mxu0 0
      %2844 = vmatprep.subr.bf16.mxu0 0
      %2845 = vmatpush1.bf16.msra.mxu0 0
      %2846 = vmatprep.subr.bf16.mxu0 0
      %2847 = vmatpush1.bf16.msra.mxu0 0
      %2848 = vmatprep.subr.bf16.mxu0 0
      %2849 = vmatpush1.bf16.msra.mxu0 0
      %2850 = vmatprep.subr.bf16.mxu0 0
      %2851 = vmatpush1.bf16.msra.mxu0 0
      %2852 = vmatprep.subr.bf16.mxu0 0
      %2853 = vmatpush1.bf16.msra.mxu0 0
      %2854 = vmatprep.subr.bf16.mxu0 0
      %2855 = vmatpush1.bf16.msra.mxu0 0
      %2856 = vmatprep.subr.bf16.mxu0 0
      %2857 = vmatpush1.bf16.msra.mxu0 0
      %2858 = vmatprep.mubr.bf16.mxu0 0
      %2859 = vmatmul.mubr.bf16.gmra.mrb[0].mxu0 %v2803
      %v2860 = vpop.f32.mrb[0].mxu0
      %v2861 = vadd.f32 0.0, %v2860
      %v2862 = vpop.f32.mrb[0].mxu0
      %v2863 = vpop.f32.mrb[0].mxu0
      %v2864 = vadd.f32 0.0, %v2863
      %v2865 = vpop.f32.mrb[0].mxu0
      %2866 = vmatprep.mubr.bf16.mxu0 0
      %2867 = vmatmul.mubr.bf16.gmra.mrb[0].mxu0 %v2806
      %v2868 = vpop.f32.mrb[0].mxu0
      %v2869 = vadd.f32 0.0, %v2868
      %v2870 = vpop.f32.mrb[0].mxu0
      %v2871 = vpop.f32.mrb[0].mxu0
      %v2872 = vadd.f32 0.0, %v2871
      %v2873 = vpop.f32.mrb[0].mxu0
      %2874 = vmatprep.mubr.bf16.mxu0 0
      %2875 = vmatmul.mubr.bf16.gmra.mrb[0].mxu0 %v2809
      %v2876 = vpop.f32.mrb[0].mxu0
      %v2877 = vadd.f32 0.0, %v2876
      %v2878 = vpop.f32.mrb[0].mxu0
      %v2879 = vpop.f32.mrb[0].mxu0
      %v2880 = vadd.f32 0.0, %v2879
      %v2881 = vpop.f32.mrb[0].mxu0
      %2882 = vmatprep.mubr.bf16.mxu0 0
      %2883 = vmatmul.mubr.bf16.gmra.mrb[0].mxu0 %v2812
      %v2884 = vpop.f32.mrb[0].mxu0
      %v2885 = vadd.f32 0.0, %v2884
      %v2886 = vpop.f32.mrb[0].mxu0
      %v2887 = vpop.f32.mrb[0].mxu0
      %v2888 = vadd.f32 0.0, %v2887
      %v2889 = vpop.f32.mrb[0].mxu0
      %2890 = vmatprep.mubr.bf16.mxu0 0
      %2891 = vmatmul.mubr.bf16.gmra.mrb[0].mxu0 %v2815
      %v2892 = vpop.f32.mrb[0].mxu0
      %v2893 = vadd.f32 0.0, %v2892
      %v2894 = vpop.f32.mrb[0].mxu0
      %v2895 = vpop.f32.mrb[0].mxu0
      %v2896 = vadd.f32 0.0, %v2895
      %v2897 = vpop.f32.mrb[0].mxu0
      %2898 = vmatprep.mubr.bf16.mxu0 0
      %2899 = vmatmul.mubr.bf16.gmra.mrb[0].mxu0 %v2818
      %v2900 = vpop.f32.mrb[0].mxu0
      %v2901 = vadd.f32 0.0, %v2900
      %v2902 = vpop.f32.mrb[0].mxu0
      %v2903 = vpop.f32.mrb[0].mxu0
      %v2904 = vadd.f32 0.0, %v2903
      %v2905 = vpop.f32.mrb[0].mxu0
      %2906 = vmatprep.mubr.bf16.mxu0 0
      %2907 = vmatmul.mubr.bf16.gmra.mrb[0].mxu0 %v2821
      %v2908 = vpop.f32.mrb[0].mxu0
      %v2909 = vadd.f32 0.0, %v2908
      %v2910 = vpop.f32.mrb[0].mxu0
      %v2911 = vpop.f32.mrb[0].mxu0
      %v2912 = vadd.f32 0.0, %v2911
      %v2913 = vpop.f32.mrb[0].mxu0
      %2914 = vmatprep.mubr.bf16.mxu0 0
      %2915 = vmatmul.mubr.bf16.gmra.mrb[0].mxu0 %v2824
      %v2916 = vpop.f32.mrb[0].mxu0
      %v2917 = vadd.f32 0.0, %v2916
      %v2918 = vpop.f32.mrb[0].mxu0
      %v2919 = vpop.f32.mrb[0].mxu0
      %v2920 = vadd.f32 0.0, %v2919
      %v2921 = vpop.f32.mrb[0].mxu0
      %2922 = vdwg.mxu0
      %v2924 = vsel %vm933, %v2777, 0
      %v2927 = vsel %vm933, %v2778, 0
      %v2930 = vsel %vm933, %v2779, 0
      %v2933 = vsel %vm933, %v2780, 0
      %v2936 = vsel %vm933, %v2781, 0
      %v2939 = vsel %vm933, %v2782, 0
      %v2942 = vsel %vm933, %v2783, 0
      %v2945 = vsel %vm933, %v2784, 0
      %v2948 = vsel %vm958, %v2785, 0
      %2950 = vmatprep.subr.bf16.mxu0 0
      %2951 = vmatpush1.bf16.msra.mxu0 %v2948
      %2952 = vmatprep.subr.bf16.mxu0 0
      %2953 = vmatpush1.bf16.msra.mxu0 0
      %2954 = vmatprep.subr.bf16.mxu0 0
      %2955 = vmatpush1.bf16.msra.mxu0 0
      %2956 = vmatprep.subr.bf16.mxu0 0
      %2957 = vmatpush1.bf16.msra.mxu0 0
      %2958 = vmatprep.subr.bf16.mxu0 0
      %2959 = vmatpush1.bf16.msra.mxu0 0
      %2960 = vmatprep.subr.bf16.mxu0 0
      %2961 = vmatpush1.bf16.msra.mxu0 0
      %2962 = vmatprep.subr.bf16.mxu0 0
      %2963 = vmatpush1.bf16.msra.mxu0 0
      %2964 = vmatprep.subr.bf16.mxu0 0
      %2965 = vmatpush1.bf16.msra.mxu0 0
      %2966 = vmatprep.subr.bf16.mxu0 0
      %2967 = vmatpush1.bf16.msra.mxu0 0
      %2968 = vmatprep.subr.bf16.mxu0 0
      %2969 = vmatpush1.bf16.msra.mxu0 0
      %2970 = vmatprep.subr.bf16.mxu0 0
      %2971 = vmatpush1.bf16.msra.mxu0 0
      %2972 = vmatprep.subr.bf16.mxu0 0
      %2973 = vmatpush1.bf16.msra.mxu0 0
      %2974 = vmatprep.subr.bf16.mxu0 0
      %2975 = vmatpush1.bf16.msra.mxu0 0
      %2976 = vmatprep.subr.bf16.mxu0 0
      %2977 = vmatpush1.bf16.msra.mxu0 0
      %2978 = vmatprep.subr.bf16.mxu0 0
      %2979 = vmatpush1.bf16.msra.mxu0 0
      %2980 = vmatprep.subr.bf16.mxu0 0
      %2981 = vmatpush1.bf16.msra.mxu0 0
      %2982 = vmatprep.mubr.bf16.mxu0 0
      %2983 = vmatmul.mubr.bf16.gmra.mrb[0].mxu0 %v2924
      %v2984 = vpop.f32.mrb[0].mxu0
      %v2985 = vadd.f32 %v2861, %v2984
      %v2986 = vpop.f32.mrb[0].mxu0
      %v2987 = vpop.f32.mrb[0].mxu0
      %v2988 = vadd.f32 %v2864, %v2987
      %v2989 = vpop.f32.mrb[0].mxu0
      %2990 = vmatprep.mubr.bf16.mxu0 0
      %2991 = vmatmul.mubr.bf16.gmra.mrb[0].mxu0 %v2927
      %v2992 = vpop.f32.mrb[0].mxu0
      %v2993 = vadd.f32 %v2869, %v2992
      %v2994 = vpop.f32.mrb[0].mxu0
      %v2995 = vpop.f32.mrb[0].mxu0
      %v2996 = vadd.f32 %v2872, %v2995
      %v2997 = vpop.f32.mrb[0].mxu0
      %2998 = vmatprep.mubr.bf16.mxu0 0
      %2999 = vmatmul.mubr.bf16.gmra.mrb[0].mxu0 %v2930
      %v3000 = vpop.f32.mrb[0].mxu0
      %v3001 = vadd.f32 %v2877, %v3000
      %v3002 = vpop.f32.mrb[0].mxu0
      %v3003 = vpop.f32.mrb[0].mxu0
      %v3004 = vadd.f32 %v2880, %v3003
      %v3005 = vpop.f32.mrb[0].mxu0
      %3006 = vmatprep.mubr.bf16.mxu0 0
      %3007 = vmatmul.mubr.bf16.gmra.mrb[0].mxu0 %v2933
      %v3008 = vpop.f32.mrb[0].mxu0
      %v3009 = vadd.f32 %v2885, %v3008
      %v3010 = vpop.f32.mrb[0].mxu0
      %v3011 = vpop.f32.mrb[0].mxu0
      %v3012 = vadd.f32 %v2888, %v3011
      %v3013 = vpop.f32.mrb[0].mxu0
      %3014 = vmatprep.mubr.bf16.mxu0 0
      %3015 = vmatmul.mubr.bf16.gmra.mrb[0].mxu0 %v2936
      %v3016 = vpop.f32.mrb[0].mxu0
      %v3017 = vadd.f32 %v2893, %v3016
      %v3018 = vpop.f32.mrb[0].mxu0
      %v3019 = vpop.f32.mrb[0].mxu0
      %v3020 = vadd.f32 %v2896, %v3019
      %v3021 = vpop.f32.mrb[0].mxu0
      %3022 = vmatprep.mubr.bf16.mxu0 0
      %3023 = vmatmul.mubr.bf16.gmra.mrb[0].mxu0 %v2939
      %v3024 = vpop.f32.mrb[0].mxu0
      %v3025 = vadd.f32 %v2901, %v3024
      %v3026 = vpop.f32.mrb[0].mxu0
      %v3027 = vpop.f32.mrb[0].mxu0
      %v3028 = vadd.f32 %v2904, %v3027
      %v3029 = vpop.f32.mrb[0].mxu0
      %3030 = vmatprep.mubr.bf16.mxu0 0
      %3031 = vmatmul.mubr.bf16.gmra.mrb[0].mxu0 %v2942
      %v3032 = vpop.f32.mrb[0].mxu0
      %v3033 = vadd.f32 %v2909, %v3032
      %v3034 = vpop.f32.mrb[0].mxu0
      %v3035 = vpop.f32.mrb[0].mxu0
      %v3036 = vadd.f32 %v2912, %v3035
      %v3037 = vpop.f32.mrb[0].mxu0
      %3038 = vmatprep.mubr.bf16.mxu0 0
      %3039 = vmatmul.mubr.bf16.gmra.mrb[0].mxu0 %v2945
      %v3040 = vpop.f32.mrb[0].mxu0
      %v3041 = vadd.f32 %v2917, %v3040
      %v3042 = vpop.f32.mrb[0].mxu0
      %v3043 = vpop.f32.mrb[0].mxu0
      %v3044 = vadd.f32 %v2920, %v3043
      %v3045 = vpop.f32.mrb[0].mxu0
      %3046 = vdwg.mxu0
      %v3047 = vld [vmem:[%s22] sm:$0x1]
      %v3049 = vlaneseq
      %v3050 = vshrl.u32 %v3049, 7
      %v3051 = vsub.s32 0, %v3050
      %v3052 = vrot.slane %v3047, %v3051
      %v3054 = vadd.f32 %v2985, %v3052
      %v3055 = vadd.f32 %v2988, %v3052
      %v3056 = vadd.f32 %v2993, %v3052
      %v3057 = vadd.f32 %v2996, %v3052
      %v3058 = vadd.f32 %v3001, %v3052
      %v3059 = vadd.f32 %v3004, %v3052
      %v3060 = vadd.f32 %v3009, %v3052
      %v3061 = vadd.f32 %v3012, %v3052
      %v3062 = vadd.f32 %v3017, %v3052
      %v3063 = vadd.f32 %v3020, %v3052
      %v3064 = vadd.f32 %v3025, %v3052
      %v3065 = vadd.f32 %v3028, %v3052
      %v3066 = vadd.f32 %v3033, %v3052
      %v3067 = vadd.f32 %v3036, %v3052
      %v3068 = vadd.f32 %v3041, %v3052
      %v3069 = vadd.f32 %v3044, %v3052
      %v3070 = vxor.u32 %v3054, 2147483648
      %v3071 = vxor.u32 %v3055, 2147483648
      %v3072 = vxor.u32 %v3056, 2147483648
      %v3073 = vxor.u32 %v3057, 2147483648
      %v3074 = vxor.u32 %v3058, 2147483648
      %v3075 = vxor.u32 %v3059, 2147483648
      %v3076 = vxor.u32 %v3060, 2147483648
      %v3077 = vxor.u32 %v3061, 2147483648
      %v3078 = vxor.u32 %v3062, 2147483648
      %v3079 = vxor.u32 %v3063, 2147483648
      %v3080 = vxor.u32 %v3064, 2147483648
      %v3081 = vxor.u32 %v3065, 2147483648
      %v3082 = vxor.u32 %v3066, 2147483648
      %v3083 = vxor.u32 %v3067, 2147483648
      %v3084 = vxor.u32 %v3068, 2147483648
      %v3085 = vxor.u32 %v3069, 2147483648
      %v3086 = vmul.f32 %v3070, 1.442695
      %v3087 = vpow.pop %v3086
      %v3088 = vmul.f32 %v3071, 1.442695
      %v3089 = vpow.pop %v3088
      %v3090 = vmul.f32 %v3072, 1.442695
      %v3091 = vpow.pop %v3090
      %v3092 = vmul.f32 %v3073, 1.442695
      %v3093 = vpow.pop %v3092
      %v3094 = vmul.f32 %v3074, 1.442695
      %v3095 = vpow.pop %v3094
      %v3096 = vmul.f32 %v3075, 1.442695
      %v3097 = vpow.pop %v3096
      %v3098 = vmul.f32 %v3076, 1.442695
      %v3099 = vpow.pop %v3098
      %v3100 = vmul.f32 %v3077, 1.442695
      %v3101 = vpow.pop %v3100
      %v3102 = vmul.f32 %v3078, 1.442695
      %v3103 = vpow.pop %v3102
      %v3104 = vmul.f32 %v3079, 1.442695
      %v3105 = vpow.pop %v3104
      %v3106 = vmul.f32 %v3080, 1.442695
      %v3107 = vpow.pop %v3106
      %v3108 = vmul.f32 %v3081, 1.442695
      %v3109 = vpow.pop %v3108
      %v3110 = vmul.f32 %v3082, 1.442695
      %v3111 = vpow.pop %v3110
      %v3112 = vmul.f32 %v3083, 1.442695
      %v3113 = vpow.pop %v3112
      %v3114 = vmul.f32 %v3084, 1.442695
      %v3115 = vpow.pop %v3114
      %v3116 = vmul.f32 %v3085, 1.442695
      %v3117 = vpow.pop %v3116
      %v3118 = vadd.f32 %v3087, 1.0
      %v3119 = vadd.f32 %v3089, 1.0
      %v3120 = vadd.f32 %v3091, 1.0
      %v3121 = vadd.f32 %v3093, 1.0
      %v3122 = vadd.f32 %v3095, 1.0
      %v3123 = vadd.f32 %v3097, 1.0
      %v3124 = vadd.f32 %v3099, 1.0
      %v3125 = vadd.f32 %v3101, 1.0
      %v3126 = vadd.f32 %v3103, 1.0
      %v3127 = vadd.f32 %v3105, 1.0
      %v3128 = vadd.f32 %v3107, 1.0
      %v3129 = vadd.f32 %v3109, 1.0
      %v3130 = vadd.f32 %v3111, 1.0
      %v3131 = vadd.f32 %v3113, 1.0
      %v3132 = vadd.f32 %v3115, 1.0
      %v3133 = vadd.f32 %v3117, 1.0
      %v3134 = vrcp.pop %v3118
      %v3135 = vmul.f32 1.0, %v3134
      %v3136 = vrcp.pop %v3119
      %v3137 = vmul.f32 1.0, %v3136
      %v3138 = vrcp.pop %v3120
      %v3139 = vmul.f32 1.0, %v3138
      %v3140 = vrcp.pop %v3121
      %v3141 = vmul.f32 1.0, %v3140
      %v3142 = vrcp.pop %v3122
      %v3143 = vmul.f32 1.0, %v3142
      %v3144 = vrcp.pop %v3123
      %v3145 = vmul.f32 1.0, %v3144
      %v3146 = vrcp.pop %v3124
      %v3147 = vmul.f32 1.0, %v3146
      %v3148 = vrcp.pop %v3125
      %v3149 = vmul.f32 1.0, %v3148
      %v3150 = vrcp.pop %v3126
      %v3151 = vmul.f32 1.0, %v3150
      %v3152 = vrcp.pop %v3127
      %v3153 = vmul.f32 1.0, %v3152
      %v3154 = vrcp.pop %v3128
      %v3155 = vmul.f32 1.0, %v3154
      %v3156 = vrcp.pop %v3129
      %v3157 = vmul.f32 1.0, %v3156
      %v3158 = vrcp.pop %v3130
      %v3159 = vmul.f32 1.0, %v3158
      %v3160 = vrcp.pop %v3131
      %v3161 = vmul.f32 1.0, %v3160
      %v3162 = vrcp.pop %v3132
      %v3163 = vmul.f32 1.0, %v3162
      %v3164 = vrcp.pop %v3133
      %v3165 = vmul.f32 1.0, %v3164
      %v3166 = vmul.f32 %v3054, %v3135
      %v3167 = vmul.f32 %v3055, %v3137
      %v3168 = vmul.f32 %v3056, %v3139
      %v3169 = vmul.f32 %v3057, %v3141
      %v3170 = vmul.f32 %v3058, %v3143
      %v3171 = vmul.f32 %v3059, %v3145
      %v3172 = vmul.f32 %v3060, %v3147
      %v3173 = vmul.f32 %v3061, %v3149
      %v3174 = vmul.f32 %v3062, %v3151
      %v3175 = vmul.f32 %v3063, %v3153
      %v3176 = vmul.f32 %v3064, %v3155
      %v3177 = vmul.f32 %v3065, %v3157
      %v3178 = vmul.f32 %v3066, %v3159
      %v3179 = vmul.f32 %v3067, %v3161
      %v3180 = vmul.f32 %v3068, %v3163
      %v3181 = vmul.f32 %v3069, %v3165
      %v3182 = vpack.c.bf16 %v3167, %v3166
      %v3183 = vpack.c.bf16 %v3169, %v3168
      %v3184 = vpack.c.bf16 %v3171, %v3170
      %v3185 = vpack.c.bf16 %v3173, %v3172
      %v3186 = vpack.c.bf16 %v3175, %v3174
      %v3187 = vpack.c.bf16 %v3177, %v3176
      %v3188 = vpack.c.bf16 %v3179, %v3178
      %v3189 = vpack.c.bf16 %v3181, %v3180
      %v3190 = vld [vmem:[%s23] sm:$0xf]
      %v3191 = vld [vmem:[%s23 + $0x4] sm:$0xf]
      %v3192 = vld [vmem:[%s23 + $0x8] sm:$0xf]
      %v3193 = vld [vmem:[%s23 + $0xc] sm:$0xf]
      %v3194 = vld [vmem:[%s23 + $0x10] sm:$0xf]
      %v3195 = vld [vmem:[%s23 + $0x14] sm:$0xf]
      %v3196 = vld [vmem:[%s23 + $0x18] sm:$0xf]
      %v3197 = vld [vmem:[%s23 + $0x1c] sm:$0xf]
      %v3198 = vld [vmem:[%s23 + $0x20] sm:$0xf]
      %v3199 = vld [vmem:[%s23 + $0x24] sm:$0xf]
      %v3200 = vld [vmem:[%s23 + $0x28] sm:$0xf]
      %v3201 = vld [vmem:[%s23 + $0x2c] sm:$0xf]
      %v3202 = vld [vmem:[%s23 + $0x30] sm:$0xf]
      %v3203 = vld [vmem:[%s23 + $0x34] sm:$0xf]
      %v3204 = vld [vmem:[%s23 + $0x38] sm:$0xf]
      %v3205 = vld [vmem:[%s23 + $0x3c] sm:$0xf]
      %v3206 = vld [vmem:[%s24] sm:$0x1]
      %v3208 = vlaneseq
      %v3209 = vshrl.u32 %v3208, 7
      %v3210 = vsub.s32 0, %v3209
      %v3211 = vrot.slane %v3206, %v3210
      %v3229 = vunpack.c.l.b16 %v3190
      %v3230 = vunpack.c.l.b16 %v3191
      %v3231 = vunpack.c.l.b16 %v3192
      %v3232 = vunpack.c.l.b16 %v3193
      %v3233 = vunpack.c.l.b16 %v3194
      %v3234 = vunpack.c.l.b16 %v3195
      %v3235 = vunpack.c.l.b16 %v3196
      %v3236 = vunpack.c.l.b16 %v3197
      %v3237 = vunpack.c.l.b16 %v3198
      %v3238 = vunpack.c.l.b16 %v3199
      %v3239 = vunpack.c.l.b16 %v3200
      %v3240 = vunpack.c.l.b16 %v3201
      %v3241 = vunpack.c.l.b16 %v3202
      %v3242 = vunpack.c.l.b16 %v3203
      %v3243 = vunpack.c.l.b16 %v3204
      %v3244 = vunpack.c.l.b16 %v3205
      %v3245 = vpack.c.b16 %v3230, %v3229
      %v3246 = vpack.c.b16 %v3232, %v3231
      %v3247 = vpack.c.b16 %v3234, %v3233
      %v3248 = vpack.c.b16 %v3236, %v3235
      %v3249 = vpack.c.b16 %v3238, %v3237
      %v3250 = vpack.c.b16 %v3240, %v3239
      %v3251 = vpack.c.b16 %v3242, %v3241
      %v3252 = vpack.c.b16 %v3244, %v3243
      %3261 = vmatprep.subr.bf16.mxu0 0
      %3262 = vmatpush1.bf16.msra.mxu0 %v3245
      %3263 = vmatprep.subr.bf16.mxu0 0
      %3264 = vmatpush1.bf16.msra.mxu0 %v3246
      %3265 = vmatprep.subr.bf16.mxu0 0
      %3266 = vmatpush1.bf16.msra.mxu0 %v3247
      %3267 = vmatprep.subr.bf16.mxu0 0
      %3268 = vmatpush1.bf16.msra.mxu0 %v3248
      %3269 = vmatprep.subr.bf16.mxu0 0
      %3270 = vmatpush1.bf16.msra.mxu0 %v3249
      %3271 = vmatprep.subr.bf16.mxu0 0
      %3272 = vmatpush1.bf16.msra.mxu0 %v3250
      %3273 = vmatprep.subr.bf16.mxu0 0
      %3274 = vmatpush1.bf16.msra.mxu0 %v3251
      %3275 = vmatprep.subr.bf16.mxu0 0
      %3276 = vmatpush1.bf16.msra.mxu0 %v3252
      %3277 = vmatprep.subr.bf16.mxu0 0
      %3278 = vmatpush1.bf16.msra.mxu0 0
      %3279 = vmatprep.subr.bf16.mxu0 0
      %3280 = vmatpush1.bf16.msra.mxu0 0
      %3281 = vmatprep.subr.bf16.mxu0 0
      %3282 = vmatpush1.bf16.msra.mxu0 0
      %3283 = vmatprep.subr.bf16.mxu0 0
      %3284 = vmatpush1.bf16.msra.mxu0 0
      %3285 = vmatprep.subr.bf16.mxu0 0
      %3286 = vmatpush1.bf16.msra.mxu0 0
      %3287 = vmatprep.subr.bf16.mxu0 0
      %3288 = vmatpush1.bf16.msra.mxu0 0
      %3289 = vmatprep.subr.bf16.mxu0 0
      %3290 = vmatpush1.bf16.msra.mxu0 0
      %3291 = vmatprep.subr.bf16.mxu0 0
      %3292 = vmatpush1.bf16.msra.mxu0 0
      %3293 = vmatprep.mubr.bf16.mxu0 0
      %3294 = vmatmul.mubr.bf16.gmra.mrb[0].mxu0 %v3182
      %v3295 = vpop.f32.mrb[0].mxu0
      %v3296 = vadd.f32 %v3211, %v3295
      %v3297 = vpop.f32.mrb[0].mxu0
      %v3298 = vpop.f32.mrb[0].mxu0
      %v3299 = vadd.f32 %v3211, %v3298
      %v3300 = vpop.f32.mrb[0].mxu0
      %3301 = vmatprep.mubr.bf16.mxu0 0
      %3302 = vmatmul.mubr.bf16.gmra.mrb[0].mxu0 %v3183
      %v3303 = vpop.f32.mrb[0].mxu0
      %v3304 = vadd.f32 %v3211, %v3303
      %v3305 = vpop.f32.mrb[0].mxu0
      %v3306 = vpop.f32.mrb[0].mxu0
      %v3307 = vadd.f32 %v3211, %v3306
      %v3308 = vpop.f32.mrb[0].mxu0
      %3309 = vmatprep.mubr.bf16.mxu0 0
      %3310 = vmatmul.mubr.bf16.gmra.mrb[0].mxu0 %v3184
      %v3311 = vpop.f32.mrb[0].mxu0
      %v3312 = vadd.f32 %v3211, %v3311
      %v3313 = vpop.f32.mrb[0].mxu0
      %v3314 = vpop.f32.mrb[0].mxu0
      %v3315 = vadd.f32 %v3211, %v3314
      %v3316 = vpop.f32.mrb[0].mxu0
      %3317 = vmatprep.mubr.bf16.mxu0 0
      %3318 = vmatmul.mubr.bf16.gmra.mrb[0].mxu0 %v3185
      %v3319 = vpop.f32.mrb[0].mxu0
      %v3320 = vadd.f32 %v3211, %v3319
      %v3321 = vpop.f32.mrb[0].mxu0
      %v3322 = vpop.f32.mrb[0].mxu0
      %v3323 = vadd.f32 %v3211, %v3322
      %v3324 = vpop.f32.mrb[0].mxu0
      %3325 = vmatprep.mubr.bf16.mxu0 0
      %3326 = vmatmul.mubr.bf16.gmra.mrb[0].mxu0 %v3186
      %v3327 = vpop.f32.mrb[0].mxu0
      %v3328 = vadd.f32 %v3211, %v3327
      %v3329 = vpop.f32.mrb[0].mxu0
      %v3330 = vpop.f32.mrb[0].mxu0
      %v3331 = vadd.f32 %v3211, %v3330
      %v3332 = vpop.f32.mrb[0].mxu0
      %3333 = vmatprep.mubr.bf16.mxu0 0
      %3334 = vmatmul.mubr.bf16.gmra.mrb[0].mxu0 %v3187
      %v3335 = vpop.f32.mrb[0].mxu0
      %v3336 = vadd.f32 %v3211, %v3335
      %v3337 = vpop.f32.mrb[0].mxu0
      %v3338 = vpop.f32.mrb[0].mxu0
      %v3339 = vadd.f32 %v3211, %v3338
      %v3340 = vpop.f32.mrb[0].mxu0
      %3341 = vmatprep.mubr.bf16.mxu0 0
      %3342 = vmatmul.mubr.bf16.gmra.mrb[0].mxu0 %v3188
      %v3343 = vpop.f32.mrb[0].mxu0
      %v3344 = vadd.f32 %v3211, %v3343
      %v3345 = vpop.f32.mrb[0].mxu0
      %v3346 = vpop.f32.mrb[0].mxu0
      %v3347 = vadd.f32 %v3211, %v3346
      %v3348 = vpop.f32.mrb[0].mxu0
      %3349 = vmatprep.mubr.bf16.mxu0 0
      %3350 = vmatmul.mubr.bf16.gmra.mrb[0].mxu0 %v3189
      %v3351 = vpop.f32.mrb[0].mxu0
      %v3352 = vadd.f32 %v3211, %v3351
      %v3353 = vpop.f32.mrb[0].mxu0
      %v3354 = vpop.f32.mrb[0].mxu0
      %v3355 = vadd.f32 %v3211, %v3354
      %v3356 = vpop.f32.mrb[0].mxu0
      %3357 = vdwg.mxu0
      %v3358 = vlaneseq
      %v3359 = vand.u32 %v3358, 127
      %v3360 = vld [vmem:[%s851] sm:$0xff]
      %v3361 = vld [vmem:[%s851 + $0x8] sm:$0xff]
      %v3362 = vld [vmem:[%s851 + $0x10] sm:$0xff]
      %v3363 = vld [vmem:[%s851 + $0x18] sm:$0xff]
      %v3364 = vld [vmem:[%s851 + $0x20] sm:$0xff]
      %v3365 = vld [vmem:[%s851 + $0x28] sm:$0xff]
      %v3366 = vld [vmem:[%s851 + $0x30] sm:$0xff]
      %v3367 = vld [vmem:[%s851 + $0x38] sm:$0xff]
      %v3368 = vld [vmem:[%s851 + $0x40] sm:$0xff]
      %v3369 = vld [vmem:[%s851 + $0x48] sm:$0xff]
      %v3370 = vld [vmem:[%s851 + $0x50] sm:$0xff]
      %v3371 = vld [vmem:[%s851 + $0x58] sm:$0xff]
      %v3372 = vld [vmem:[%s851 + $0x60] sm:$0xff]
      %v3373 = vld [vmem:[%s851 + $0x68] sm:$0xff]
      %v3374 = vld [vmem:[%s851 + $0x70] sm:$0xff]
      %v3375 = vld [vmem:[%s851 + $0x78] sm:$0xff]
      %3376 = vset.pattern.permute.xlu0 0
      %3377 = vperm.xlu0 %3376, %v3360
      %v3378 = vpop.permute.xlu0 %3377
      %3379 = vset.pattern.permute.xlu0 0
      %3380 = vperm.xlu0 %3379, %v3361
      %v3381 = vpop.permute.xlu0 %3380
      %3382 = vset.pattern.permute.xlu0 0
      %3383 = vperm.xlu0 %3382, %v3362
      %v3384 = vpop.permute.xlu0 %3383
      %3385 = vset.pattern.permute.xlu0 0
      %3386 = vperm.xlu0 %3385, %v3363
      %v3387 = vpop.permute.xlu0 %3386
      %3388 = vset.pattern.permute.xlu0 0
      %3389 = vperm.xlu0 %3388, %v3364
      %v3390 = vpop.permute.xlu0 %3389
      %3391 = vset.pattern.permute.xlu0 0
      %3392 = vperm.xlu0 %3391, %v3365
      %v3393 = vpop.permute.xlu0 %3392
      %3394 = vset.pattern.permute.xlu0 0
      %3395 = vperm.xlu0 %3394, %v3366
      %v3396 = vpop.permute.xlu0 %3395
      %3397 = vset.pattern.permute.xlu0 0
      %3398 = vperm.xlu0 %3397, %v3367
      %v3399 = vpop.permute.xlu0 %3398
      %3400 = vset.pattern.permute.xlu0 0
      %3401 = vperm.xlu0 %3400, %v3368
      %v3402 = vpop.permute.xlu0 %3401
      %3403 = vset.pattern.permute.xlu0 0
      %3404 = vperm.xlu0 %3403, %v3369
      %v3405 = vpop.permute.xlu0 %3404
      %3406 = vset.pattern.permute.xlu0 0
      %3407 = vperm.xlu0 %3406, %v3370
      %v3408 = vpop.permute.xlu0 %3407
      %3409 = vset.pattern.permute.xlu0 0
      %3410 = vperm.xlu0 %3409, %v3371
      %v3411 = vpop.permute.xlu0 %3410
      %3412 = vset.pattern.permute.xlu0 0
      %3413 = vperm.xlu0 %3412, %v3372
      %v3414 = vpop.permute.xlu0 %3413
      %3415 = vset.pattern.permute.xlu0 0
      %3416 = vperm.xlu0 %3415, %v3373
      %v3417 = vpop.permute.xlu0 %3416
      %3418 = vset.pattern.permute.xlu0 0
      %3419 = vperm.xlu0 %3418, %v3374
      %v3420 = vpop.permute.xlu0 %3419
      %3421 = vset.pattern.permute.xlu0 0
      %3422 = vperm.xlu0 %3421, %v3375
      %v3423 = vpop.permute.xlu0 %3422
      %vm3424 = vcmp.eq.s32.totalorder %v3359, %v3378
      %vm3425 = vcmp.eq.s32.totalorder %v3359, %v3381
      %vm3426 = vcmp.eq.s32.totalorder %v3359, %v3384
      %vm3427 = vcmp.eq.s32.totalorder %v3359, %v3387
      %vm3428 = vcmp.eq.s32.totalorder %v3359, %v3390
      %vm3429 = vcmp.eq.s32.totalorder %v3359, %v3393
      %vm3430 = vcmp.eq.s32.totalorder %v3359, %v3396
      %vm3431 = vcmp.eq.s32.totalorder %v3359, %v3399
      %vm3432 = vcmp.eq.s32.totalorder %v3359, %v3402
      %vm3433 = vcmp.eq.s32.totalorder %v3359, %v3405
      %vm3434 = vcmp.eq.s32.totalorder %v3359, %v3408
      %vm3435 = vcmp.eq.s32.totalorder %v3359, %v3411
      %vm3436 = vcmp.eq.s32.totalorder %v3359, %v3414
      %vm3437 = vcmp.eq.s32.totalorder %v3359, %v3417
      %vm3438 = vcmp.eq.s32.totalorder %v3359, %v3420
      %vm3439 = vcmp.eq.s32.totalorder %v3359, %v3423
      %v3440 = vsel %vm3424, 1, 0
      %v3441 = vsel %vm3425, 1, 0
      %v3442 = vsel %vm3426, 1, 0
      %v3443 = vsel %vm3427, 1, 0
      %v3444 = vsel %vm3428, 1, 0
      %v3445 = vsel %vm3429, 1, 0
      %v3446 = vsel %vm3430, 1, 0
      %v3447 = vsel %vm3431, 1, 0
      %v3448 = vsel %vm3432, 1, 0
      %v3449 = vsel %vm3433, 1, 0
      %v3450 = vsel %vm3434, 1, 0
      %v3451 = vsel %vm3435, 1, 0
      %v3452 = vsel %vm3436, 1, 0
      %v3453 = vsel %vm3437, 1, 0
      %v3454 = vsel %vm3438, 1, 0
      %v3455 = vsel %vm3439, 1, 0
      %v3456 = vcvt.s32.f32 %v3440
      %v3457 = vcvt.s32.f32 %v3441
      %v3458 = vcvt.s32.f32 %v3442
      %v3459 = vcvt.s32.f32 %v3443
      %v3460 = vcvt.s32.f32 %v3444
      %v3461 = vcvt.s32.f32 %v3445
      %v3462 = vcvt.s32.f32 %v3446
      %v3463 = vcvt.s32.f32 %v3447
      %v3464 = vcvt.s32.f32 %v3448
      %v3465 = vcvt.s32.f32 %v3449
      %v3466 = vcvt.s32.f32 %v3450
      %v3467 = vcvt.s32.f32 %v3451
      %v3468 = vcvt.s32.f32 %v3452
      %v3469 = vcvt.s32.f32 %v3453
      %v3470 = vcvt.s32.f32 %v3454
      %v3471 = vcvt.s32.f32 %v3455
      %v3472 = vld [vmem:[#allocation2] sm:$0xff]
      %v3473 = vld [vmem:[#allocation2 + $0x8] sm:$0xff]
      %3474 = vxpose.xlu0.b32.start [1/16] %v3456, 128
      %3475 = vxpose.xlu0.b32.cont [2/16] %v3457, 128
      %3476 = vxpose.xlu0.b32.cont [3/16] %v3458, 128
      %3477 = vxpose.xlu0.b32.cont [4/16] %v3459, 128
      %3478 = vxpose.xlu0.b32.cont [5/16] %v3460, 128
      %3479 = vxpose.xlu0.b32.cont [6/16] %v3461, 128
      %3480 = vxpose.xlu0.b32.cont [7/16] %v3462, 128
      %3481 = vxpose.xlu0.b32.cont [8/16] %v3463, 128
      %3482 = vxpose.xlu0.b32.cont [9/16] %v3464, 128
      %3483 = vxpose.xlu0.b32.cont [10/16] %v3465, 128
      %3484 = vxpose.xlu0.b32.cont [11/16] %v3466, 128
      %3485 = vxpose.xlu0.b32.cont [12/16] %v3467, 128
      %3486 = vxpose.xlu0.b32.cont [13/16] %v3468, 128
      %3487 = vxpose.xlu0.b32.cont [14/16] %v3469, 128
      %3488 = vxpose.xlu0.b32.cont [15/16] %v3470, 128
      %3489 = vxpose.xlu0.b32.end [16/16] %v3471, 128
      %v3490 = vpop.trf.xlu0
      %v3491 = vpop.trf.xlu0
      %v3492 = vpop.trf.xlu0
      %v3493 = vpop.trf.xlu0
      %v3494 = vpop.trf.xlu0
      %v3495 = vpop.trf.xlu0
      %v3496 = vpop.trf.xlu0
      %v3497 = vpop.trf.xlu0
      %v3498 = vpop.trf.xlu0
      %v3499 = vpop.trf.xlu0
      %v3500 = vpop.trf.xlu0
      %v3501 = vpop.trf.xlu0
      %v3502 = vpop.trf.xlu0
      %v3503 = vpop.trf.xlu0
      %v3504 = vpop.trf.xlu0
      %v3505 = vpop.trf.xlu0
      %3506 = vmatprep.subr.mxu0 0.0
      %3507 = vmatpush1.msra.mxu0 %v3296
      %3508 = vmatprep.subr.mxu0 0.0
      %3509 = vmatpush1.msra.mxu0 %v3299
      %3510 = vmatprep.subr.mxu0 0.0
      %3511 = vmatpush1.msra.mxu0 %v3304
      %3512 = vmatprep.subr.mxu0 0.0
      %3513 = vmatpush1.msra.mxu0 %v3307
      %3514 = vmatprep.subr.mxu0 0.0
      %3515 = vmatpush1.msra.mxu0 %v3312
      %3516 = vmatprep.subr.mxu0 0.0
      %3517 = vmatpush1.msra.mxu0 %v3315
      %3518 = vmatprep.subr.mxu0 0.0
      %3519 = vmatpush1.msra.mxu0 %v3320
      %3520 = vmatprep.subr.mxu0 0.0
      %3521 = vmatpush1.msra.mxu0 %v3323
      %3522 = vmatprep.subr.mxu0 0.0
      %3523 = vmatpush1.msra.mxu0 %v3328
      %3524 = vmatprep.subr.mxu0 0.0
      %3525 = vmatpush1.msra.mxu0 %v3331
      %3526 = vmatprep.subr.mxu0 0.0
      %3527 = vmatpush1.msra.mxu0 %v3336
      %3528 = vmatprep.subr.mxu0 0.0
      %3529 = vmatpush1.msra.mxu0 %v3339
      %3530 = vmatprep.subr.mxu0 0.0
      %3531 = vmatpush1.msra.mxu0 %v3344
      %3532 = vmatprep.subr.mxu0 0.0
      %3533 = vmatpush1.msra.mxu0 %v3347
      %3534 = vmatprep.subr.mxu0 0.0
      %3535 = vmatpush1.msra.mxu0 %v3352
      %3536 = vmatprep.subr.mxu0 0.0
      %3537 = vmatpush1.msra.mxu0 %v3355
      %3538 = vmatprep.subr.mxu0 0.0
      %3539 = vmatpush1.msra.mxu0 0.0
      %3540 = vmatprep.subr.mxu0 0.0
      %3541 = vmatpush1.msra.mxu0 0.0
      %3542 = vmatprep.subr.mxu0 0.0
      %3543 = vmatpush1.msra.mxu0 0.0
      %3544 = vmatprep.subr.mxu0 0.0
      %3545 = vmatpush1.msra.mxu0 0.0
      %3546 = vmatprep.subr.mxu0 0.0
      %3547 = vmatpush1.msra.mxu0 0.0
      %3548 = vmatprep.subr.mxu0 0.0
      %3549 = vmatpush1.msra.mxu0 0.0
      %3550 = vmatprep.subr.mxu0 0.0
      %3551 = vmatpush1.msra.mxu0 0.0
      %3552 = vmatprep.subr.mxu0 0.0
      %3553 = vmatpush1.msra.mxu0 0.0
      %3554 = vmatprep.subr.mxu0 0.0
      %3555 = vmatpush1.msra.mxu0 0.0
      %3556 = vmatprep.subr.mxu0 0.0
      %3557 = vmatpush1.msra.mxu0 0.0
      %3558 = vmatprep.subr.mxu0 0.0
      %3559 = vmatpush1.msra.mxu0 0.0
      %3560 = vmatprep.subr.mxu0 0.0
      %3561 = vmatpush1.msra.mxu0 0.0
      %3562 = vmatprep.subr.mxu0 0.0
      %3563 = vmatpush1.msra.mxu0 0.0
      %3564 = vmatprep.subr.mxu0 0.0
      %3565 = vmatpush1.msra.mxu0 0.0
      %3566 = vmatprep.subr.mxu0 0.0
      %3567 = vmatpush1.msra.mxu0 0.0
      %3568 = vmatprep.subr.mxu0 0.0
      %3569 = vmatpush1.msra.mxu0 0.0
      %3570 = vmatprep.mubr.f32.mxu0 0.0
      %3571 = vmatmul.mubr.f32.gmra.mrb[0].mxu0 %v3490
      %v3572 = vpop.f32.mrb[0].mxu0
      %v3573 = vadd.f32 0.0, %v3572
      %v3574 = vpop.f32.mrb[0].mxu0
      %3575 = vmatprep.mubr.f32.mxu0 0.0
      %3576 = vmatmul.mubr.f32.gmra.mrb[0].mxu0 %v3491
      %v3577 = vpop.f32.mrb[0].mxu0
      %v3578 = vadd.f32 0.0, %v3577
      %v3579 = vpop.f32.mrb[0].mxu0
      %3580 = vdwg.mxu0
      %v3581 = vadd.f32 %v3472, %v3573
      %v3582 = vadd.f32 %v3473, %v3578
      %3583 = vst.msk [vmem:[#allocation2] sm:$0xff] %vm933, %v3581
      %3584 = vst.msk [vmem:[#allocation2 + $0x8] sm:$0xff] %vm933, %v3582
      %p3585 = scmp.eq.s32.totalorder %s38, 1
      // Predicated region
      $region125: #{tpu_custom_call.1} parent=119 // pred_check
        %p3586 = pneg %p3585
      $region126: #{tpu_custom_call.1} parent=119 // pred_check_branch
        %3588 = sbr.rel (%p3586) target = $region128
      $region127: #{tpu_custom_call.1} parent=119 // pred_region
        %v3589 = vld [vmem:[#allocation2] sm:$0xff]
        %v3590 = vld [vmem:[#allocation2 + $0x8] sm:$0xff]
        %v3591 = vld [vmem:[%s5] sm:$0xff]
        %v3592 = vld [vmem:[%s5 + $0x8] sm:$0xff]
        %3594 = vset.pattern.permute.xlu0 0
        %3595 = vperm.xlu0 %3594, %v3591
        %v3596 = vpop.permute.xlu0 %3595
        %3599 = vset.pattern.permute.xlu0 0
        %3600 = vperm.xlu0 %3599, %v3592
        %v3601 = vpop.permute.xlu0 %3600
        %v3603 = vmul.f32 %v3589, %v3596
        %v3604 = vmul.f32 %v3590, %v3601
        %v3605 = vld [vmem:[%s4] sm:$0xff]
        %v3606 = vld [vmem:[%s4 + $0x8] sm:$0xff]
        %v3607 = vadd.f32 %v3603, %v3605
        %v3608 = vadd.f32 %v3604, %v3606
        %3609 = vst.msk [vmem:[%s26] sm:$0xff] %vm933, %v3607
        %3610 = vst.msk [vmem:[%s26 + $0x8] sm:$0xff] %vm933, %v3608
      $region128: #{tpu_custom_call.1} parent=119 // pred_fallthru
        _
      %s3611 = smul.u32 16, %s38
      %p3612 = scmp.lt.s32.totalorder %s3611, 31
      %s3613 = scalar_select %p3612, %s3611, 31
      %s3614 = smul.addr %s3613, 8
      %s3615 = scalar_lea.vmem %s25, %s3614
      // Predicated region
      $region129: #{tpu_custom_call.1} parent=119 // pred_check
        %p3616 = pneg %p601
      $region130: #{tpu_custom_call.1} parent=119 // pred_check_branch
        %3618 = sbr.rel (%p3616) target = $region132
      $region131: #{tpu_custom_call.1} parent=119 // pred_region
        %s3619 = smul.u32 16, %s38
      $region132: #{tpu_custom_call.1} parent=119 // pred_fallthru
        _
      // Predicated region
      $region133: #{tpu_custom_call.1} parent=119 // pred_check
        %p3620 = pneg %p622
      $region134: #{tpu_custom_call.1} parent=119 // pred_check_branch
        %3622 = sbr.rel (%p3620) target = $region136
      $region135: #{tpu_custom_call.1} parent=119 // pred_region
        _
      $region136: #{tpu_custom_call.1} parent=119 // pred_fallthru
        _
      // Predicated region
      $region137: #{tpu_custom_call.1} parent=119 // pred_check
        %p3623 = pneg %p622
      $region138: #{tpu_custom_call.1} parent=119 // pred_check_branch
        %3625 = sbr.rel (%p3623) target = $region140
      $region139: #{tpu_custom_call.1} parent=119 // pred_region
        _
      $region140: #{tpu_custom_call.1} parent=119 // pred_fallthru
        _
    $region120: #{tpu_custom_call.1} parent=5 // pred_fallthru
      _
    %p3626 = scmp.le.s32.totalorder 2, %s33
    // Predicated region
    $region141: #{tpu_custom_call.1} parent=5 // pred_check
      %p3627 = pneg %p3626
    $region142: #{tpu_custom_call.1} parent=5 // pred_check_branch
      %3629 = sbr.rel (%p3627) target = $region144
    $region143: #{tpu_custom_call.1} parent=5 // pred_region
      %s3630 = ssub.s32 %s33, 2
      // Predicated region
      $region145: #{tpu_custom_call.1} parent=143 // pred_check
        %p3631 = pneg %p607
      $region146: #{tpu_custom_call.1} parent=143 // pred_check_branch
        %3633 = sbr.rel (%p3631) target = $region148
      $region147: #{tpu_custom_call.1} parent=143 // pred_region
        %s3634 = smul.u32 16, %s39
        %p3635 = scmp.lt.s32.totalorder %s3634, 31
        %s3636 = scalar_select %p3635, %s3634, 31
        %s3637 = smul.addr %s3636, 8
        %s3638 = scalar_lea.vmem %s25, %s3637
      $region148: #{tpu_custom_call.1} parent=143 // pred_fallthru
        _
    $region144: #{tpu_custom_call.1} parent=5 // pred_fallthru
      _
  $region6: #{tpu_custom_call.1} parent=0 // loop_footer
    %s37 = sadd.s32 1, %s33
  $region7: #{tpu_custom_call.1} parent=0 // loop_footer_branch
    %32 = sbr.rel target = $region3
  $region8: #{tpu_custom_call.1} parent=0 // loop_exit
    _

</llo_original>
